<compile_context>
chip_gen: v5e
topology: v5e:2x2
jax: 0.10.0
libtpu: 0.0.40
codegen_flags: <defaults>
</compile_context>

<pallas_src>
import functools
import math

import jax
import jax.numpy as jnp
from jax.experimental import pallas as pl
from jax.experimental.pallas import tpu as pltpu

# ---- small, lane-friendly shapes consistent with the module ----
BN_GROUP = 8          # rows per reference-module forward() call (BN group size)
BATCH = 32            # demo: 4 independent 8-row requests in one pallas_call
FEAT = 1024           # feature-extractor output dim (hardcoded 1024 in the module)
EMBED = 128           # embed_dim
RECON = 128           # reconstruction_size
PROJ = 256            # projection_dim (shrunk from 3000 for the demo; pad to 3072 for real)
CLUSTER_LOGICAL = 50  # cluster_size in the reference module
CLUSTER = 128         # padded to full lanes; padded weight cols/rows are zeroed
BN_EPS = 1e-5
L2_EPS = 1e-12


def _mxu_is_256_wide() -> bool:
    """256-wide MXU (v6e/v7x) -> fuse per-modality weight pairs; v5e & older -> don't."""
    try:
        kind = jax.devices()[0].device_kind.lower()
    except Exception:  # pragma: no cover - be permissive off-TPU
        return True
    return not any(v in kind for v in ("v2", "v3", "v4", "v5"))


def _mmt_kernel(
    acc_ref, gyro_ref,
    # fused Gated_Embedding_Unit fc: [wg_acc ‖ wg_gyro] (1024, 256)
    wg, bg,
    # fused Context_Gating fc: [wcg_acc ‖ wcg_gyro] (128, 256)
    wcg, bcg,
    # fused reconstruction Linear #1: [wr1_acc ‖ wr1_gyro] (128, 256)
    wr1, br1,
    # reconstruction Linear #2 per modality (128 -> 1024); N already fills MXU
    wr2_a, br2_a, wr2_g, br2_g,
    # projection head: Linear(128->PROJ) BN ReLU Linear(PROJ->CLUSTER)
    wp1, bp1, gamma, beta, wp2, bp2,
    # classification: Linear(CLUSTER->PROJ, bias=False)
    wc,
    # outputs
    acc_gated_out, gyro_gated_out, cls_acc_out, cls_gyro_out, loss_out,
    *, batch, bn_group, fuse_pairs,
):
    f32 = jnp.float32
    bf16 = jnp.bfloat16
    B = batch

    def mm(x, w, b=None):
        # bf16 operands on the MXU, f32 accumulation.
        y = jnp.dot(x.astype(bf16), w, preferred_element_type=f32)
        if b is not None:
            y = y + b
        return y

    def pair_mm(x_acc, x_gyro, w_ref, b_ref):
        """Per-modality Linear pair whose weights are packed 2x128-wide.

        fuse_pairs=True (256-wide MXU): batch-concat the two modalities, run a
        single 256-wide matmul, slice each modality's 128-column half.
        fuse_pairs=False (128-wide MXU): run the two 128-wide matmuls separately.
        """
        n = w_ref.shape[1] // 2
        if fuse_pairs:
            both = jnp.concatenate([x_acc, x_gyro], axis=0)          # (2B, K)
            y = mm(both, w_ref[...], b_ref[...])                     # (2B, 2n)
            return y[:B, :n], y[B:, n:]
        y_a = mm(x_acc, w_ref[:, :n], b_ref[:, :n])
        y_g = mm(x_gyro, w_ref[:, n:], b_ref[:, n:])
        return y_a, y_g

    acc = acc_ref[...]       # (B, FEAT) bf16
    gyro = gyro_ref[...]

    # Gated_Embedding_Unit: fc -> Context_Gating (glu(cat(h, fc(h)), 1) == h*sigmoid(fc(h)))
    h_a, h_g = pair_mm(acc, gyro, wg, bg)                            # (B, EMBED) f32
    g_a, g_g = pair_mm(h_a, h_g, wcg, bcg)
    acc_gated = h_a * jax.nn.sigmoid(g_a)
    gyro_gated = h_g * jax.nn.sigmoid(g_g)

    # Reconstruction heads: Linear ReLU Linear ReLU (second Linear kept per-modality)
    r1_a, r1_g = pair_mm(acc_gated, gyro_gated, wr1, br1)
    r1_a = jnp.maximum(r1_a, 0.0)
    r1_g = jnp.maximum(r1_g, 0.0)
    rec_a = jnp.maximum(mm(r1_a, wr2_a[...], br2_a[...]), 0.0)       # (B, FEAT)
    rec_g = jnp.maximum(mm(r1_g, wr2_g[...], br2_g[...]), 0.0)

    # Shared projection + classification path on the modality-concat batch
    # (doubles MXU row occupancy; BN statistics stay per-modality below).
    both_gated = jnp.concatenate([acc_gated, gyro_gated], axis=0)    # (2B, EMBED)
    p = mm(both_gated, wp1[...], bp1[...])                           # (2B, PROJ)

    # BatchNorm1d with training-mode batch statistics (biased variance),
    # computed per bn_group-row group per modality: each 8-row group maps to
    # one reference-module forward() call.  Static sublane-aligned slices keep
    # the grouping independent of the (now collapsed) grid.
    gamma_v = gamma[...]
    beta_v = beta[...]

    def batchnorm_relu(h):
        mu = jnp.mean(h, axis=0, keepdims=True)
        var = jnp.mean((h - mu) ** 2, axis=0, keepdims=True)
        y = (h - mu) * jax.lax.rsqrt(var + BN_EPS) * gamma_v + beta_v
        return jnp.maximum(y, 0.0)

    n_groups = (2 * B) // bn_group
    p_bn = jnp.concatenate(
        [batchnorm_relu(p[g * bn_group:(g + 1) * bn_group]) for g in range(n_groups)],
        axis=0)                                                      # (2B, PROJ)

    c = mm(p_bn, wp2[...], bp2[...])                                 # (2B, CLUSTER)

    # F.normalize(x, dim=1, p=2): x / max(||x||_2, eps)  (rsqrt -> EUP slot)
    ss = jnp.sum(c * c, axis=1, keepdims=True)
    c_n = c * jax.lax.rsqrt(jnp.maximum(ss, L2_EPS * L2_EPS))
    cls = mm(c_n, wc[...])                                           # (2B, PROJ)

    # MSELoss(reduction='none') then mean over last dim, summed over modalities.
    # (Reconstruction GT is the bf16-shipped feature vector, upcast to f32.)
    loss_a = jnp.mean((rec_a - acc.astype(f32)) ** 2, axis=-1, keepdims=True)
    loss_g = jnp.mean((rec_g - gyro.astype(f32)) ** 2, axis=-1, keepdims=True)

    acc_gated_out[...] = acc_gated
    gyro_gated_out[...] = gyro_gated
    cls_acc_out[...] = cls[:B]
    cls_gyro_out[...] = cls[B:]
    # Lane-dense loss block: broadcast the per-row scalar across 128 lanes
    # (unmasked stores); wrapper slices column 0.
    loss_out[...] = jnp.broadcast_to(loss_a + loss_g, (B, 128))


def multimodal_transformer(acc_feat, gyro_feat, params, *, fuse_pairs=None):
    """Fused single-grid-step forward pass; whole batch + weights resident in VMEM."""
    batch = acc_feat.shape[0]
    assert batch % BN_GROUP == 0
    if fuse_pairs is None:
        fuse_pairs = _mxu_is_256_wide()

    # Ship activations to the kernel in bf16 (kernel math already casts to bf16
    # at every matmul); halves input HBM->VMEM traffic.
    acc_feat = acc_feat.astype(jnp.bfloat16)
    gyro_feat = gyro_feat.astype(jnp.bfloat16)
    weights = list(params)

    io_map = lambda i: (0, 0)   # single grid step -> every block is the full array

    in_specs = [
        pl.BlockSpec((batch, FEAT), io_map),
        pl.BlockSpec((batch, FEAT), io_map),
    ] + [pl.BlockSpec(w.shape, io_map) for w in weights]

    out_shapes = (
        jax.ShapeDtypeStruct((batch, EMBED), jnp.float32),   # acc_gated_features
        jax.ShapeDtypeStruct((batch, EMBED), jnp.float32),   # gyro_gated_features
        jax.ShapeDtypeStruct((batch, PROJ), jnp.float32),    # classification_acc
        jax.ShapeDtypeStruct((batch, PROJ), jnp.float32),    # classification_gyro
        jax.ShapeDtypeStruct((batch, 128), jnp.float32),     # recon loss (lane-dense)
    )
    out_specs = (
        pl.BlockSpec((batch, EMBED), io_map),
        pl.BlockSpec((batch, EMBED), io_map),
        pl.BlockSpec((batch, PROJ), io_map),
        pl.BlockSpec((batch, PROJ), io_map),
        pl.BlockSpec((batch, 128), io_map),
    )

    kernel = functools.partial(
        _mmt_kernel, batch=batch, bn_group=BN_GROUP, fuse_pairs=bool(fuse_pairs))

    outs = pl.pallas_call(
        kernel,
        out_shape=out_shapes,
        grid_spec=pltpu.PrefetchScalarGridSpec(
            num_scalar_prefetch=0,
            grid=(1,),
            in_specs=in_specs,
            out_specs=out_specs,
        ),
        compiler_params=pltpu.CompilerParams(
            dimension_semantics=("arbitrary",),   # single step; megacore split not worth 2x weight DMA
            vmem_limit_bytes=16 << 20,            # total footprint ~4 MB incl. double buffers
        ),
    )(acc_feat, gyro_feat, *weights)

    acc_g, gyro_g, cls_a, cls_g, loss = outs
    return acc_g, gyro_g, cls_a, cls_g, loss[:, 0]


def init_params(key):
    """Deterministic PyTorch-style (uniform +-1/sqrt(fan_in)) initialization.

    Per-modality weight pairs are packed 256-wide ([acc ‖ gyro] along the
    output dim) and stored in bf16; biases / BN affine params stay f32.  The
    padded cluster columns (50 -> 128) of wp2/bp2 and rows of wc are zeroed so
    the padded math matches the 50-wide reference exactly.
    """
    def uni(k, shape, fan_in):
        bound = 1.0 / math.sqrt(fan_in)
        return jax.random.uniform(k, shape, jnp.float32, -bound, bound)

    ks = iter(jax.random.split(key, 24))

    # Gated_Embedding_Unit fc (1024 -> 128), per modality
    wg_a, bg_a = uni(next(ks), (FEAT, EMBED), FEAT), uni(next(ks), (1, EMBED), FEAT)
    wg_g, bg_g = uni(next(ks), (FEAT, EMBED), FEAT), uni(next(ks), (1, EMBED), FEAT)
    # Context_Gating fc (128 -> 128)
    wcg_a, bcg_a = uni(next(ks), (EMBED, EMBED), EMBED), uni(next(ks), (1, EMBED), EMBED)
    wcg_g, bcg_g = uni(next(ks), (EMBED, EMBED), EMBED), uni(next(ks), (1, EMBED), EMBED)
    # reconstruction Linear #1 (128 -> 128)
    wr1_a, br1_a = uni(next(ks), (EMBED, RECON), EMBED), uni(next(ks), (1, RECON), EMBED)
    wr1_g, br1_g = uni(next(ks), (EMBED, RECON), EMBED), uni(next(ks), (1, RECON), EMBED)
    # reconstruction Linear #2 (128 -> 1024)
    wr2_a, br2_a = uni(next(ks), (RECON, FEAT), RECON), uni(next(ks), (1, FEAT), RECON)
    wr2_g, br2_g = uni(next(ks), (RECON, FEAT), RECON), uni(next(ks), (1, FEAT), RECON)
    # projection head
    wp1, bp1 = uni(next(ks), (EMBED, PROJ), EMBED), uni(next(ks), (1, PROJ), EMBED)
    gamma = jnp.ones((1, PROJ), jnp.float32)
    beta = jnp.zeros((1, PROJ), jnp.float32)
    wp2, bp2 = uni(next(ks), (PROJ, CLUSTER), PROJ), uni(next(ks), (1, CLUSTER), PROJ)
    # classification Linear(cluster_size -> projection_dim, bias=False); logical fan_in = 50
    wc = uni(next(ks), (CLUSTER, PROJ), CLUSTER_LOGICAL)

    # Zero padded cluster lanes so L2-norm + classification match the 50-wide reference.
    col_mask = (jnp.arange(CLUSTER) < CLUSTER_LOGICAL).astype(jnp.float32)
    wp2 = wp2 * col_mask[None, :]
    bp2 = bp2 * col_mask[None, :]
    wc = wc * col_mask[:, None]

    bf = lambda w: w.astype(jnp.bfloat16)
    return [
        bf(jnp.concatenate([wg_a, wg_g], axis=1)),    # wg  (1024, 256)
        jnp.concatenate([bg_a, bg_g], axis=1),        # bg  (1, 256)
        bf(jnp.concatenate([wcg_a, wcg_g], axis=1)),  # wcg (128, 256)
        jnp.concatenate([bcg_a, bcg_g], axis=1),      # bcg (1, 256)
        bf(jnp.concatenate([wr1_a, wr1_g], axis=1)),  # wr1 (128, 256)
        jnp.concatenate([br1_a, br1_g], axis=1),      # br1 (1, 256)
        bf(wr2_a), br2_a, bf(wr2_g), br2_g,           # recon Linear #2
        bf(wp1), bp1, gamma, beta,                    # projection head Linear + BN
        bf(wp2), bp2,                                 # projection head -> cluster
        bf(wc),                                       # classification (bias=False)
    ]


if __name__ == "__main__":
    key = jax.random.PRNGKey(0)
    k_acc, k_gyro, k_params = jax.random.split(key, 3)

    # 1024-d features that the frozen pretrained extractors would produce.
    acc_feat = jax.random.normal(k_acc, (BATCH, FEAT), jnp.float32)
    gyro_feat = jax.random.normal(k_gyro, (BATCH, FEAT), jnp.float32)

    params = init_params(k_params)

    fn = jax.jit(multimodal_transformer)
    acc_g, gyro_g, cls_a, cls_g, recon_loss = fn(acc_feat, gyro_feat, params)
    jax.block_until_ready((acc_g, gyro_g, cls_a, cls_g, recon_loss))

    assert acc_g.shape == (BATCH, EMBED)
    assert gyro_g.shape == (BATCH, EMBED)
    assert cls_a.shape == (BATCH, PROJ)
    assert cls_g.shape == (BATCH, PROJ)
    assert recon_loss.shape == (BATCH,)
    print("KERNEL_OK")
</pallas_src>

<mosaic_0001>
module attributes {stable_mosaic.version = 11 : i64} {
  func.func @_mmt_kernel(%arg0: i32, %arg1: memref<32x1024xbf16, #tpu.memory_space<vmem>>, %arg2: memref<32x1024xbf16, #tpu.memory_space<vmem>>, %arg3: memref<1024x256xbf16, #tpu.memory_space<vmem>>, %arg4: memref<1x256xf32, #tpu.memory_space<vmem>>, %arg5: memref<128x256xbf16, #tpu.memory_space<vmem>>, %arg6: memref<1x256xf32, #tpu.memory_space<vmem>>, %arg7: memref<128x256xbf16, #tpu.memory_space<vmem>>, %arg8: memref<1x256xf32, #tpu.memory_space<vmem>>, %arg9: memref<128x1024xbf16, #tpu.memory_space<vmem>>, %arg10: memref<1x1024xf32, #tpu.memory_space<vmem>>, %arg11: memref<128x1024xbf16, #tpu.memory_space<vmem>>, %arg12: memref<1x1024xf32, #tpu.memory_space<vmem>>, %arg13: memref<128x256xbf16, #tpu.memory_space<vmem>>, %arg14: memref<1x256xf32, #tpu.memory_space<vmem>>, %arg15: memref<1x256xf32, #tpu.memory_space<vmem>>, %arg16: memref<1x256xf32, #tpu.memory_space<vmem>>, %arg17: memref<256x128xbf16, #tpu.memory_space<vmem>>, %arg18: memref<1x128xf32, #tpu.memory_space<vmem>>, %arg19: memref<128x256xbf16, #tpu.memory_space<vmem>>, %arg20: memref<32x128xf32, #tpu.memory_space<vmem>>, %arg21: memref<32x128xf32, #tpu.memory_space<vmem>>, %arg22: memref<32x256xf32, #tpu.memory_space<vmem>>, %arg23: memref<32x256xf32, #tpu.memory_space<vmem>>, %arg24: memref<32x128xf32, #tpu.memory_space<vmem>>) attributes {dimension_semantics = [#tpu.dimension_semantics<arbitrary>], iteration_bounds = array<i64: 1>, scalar_prefetch = 0 : i64, scratch_operands = 0 : i64, tpu.core_type = #tpu.core_type<tc>, window_params = [{pipeline_mode = #tpu.pipeline_mode<synchronous>, transform_indices = @transform_0, window_bounds = array<i64: 32, 1024>}, {pipeline_mode = #tpu.pipeline_mode<synchronous>, transform_indices = @transform_1, window_bounds = array<i64: 32, 1024>}, {pipeline_mode = #tpu.pipeline_mode<synchronous>, transform_indices = @transform_2, window_bounds = array<i64: 1024, 256>}, {pipeline_mode = #tpu.pipeline_mode<synchronous>, transform_indices = @transform_3, window_bounds = array<i64: 1, 256>}, {pipeline_mode = #tpu.pipeline_mode<synchronous>, transform_indices = @transform_4, window_bounds = array<i64: 128, 256>}, {pipeline_mode = #tpu.pipeline_mode<synchronous>, transform_indices = @transform_5, window_bounds = array<i64: 1, 256>}, {pipeline_mode = #tpu.pipeline_mode<synchronous>, transform_indices = @transform_6, window_bounds = array<i64: 128, 256>}, {pipeline_mode = #tpu.pipeline_mode<synchronous>, transform_indices = @transform_7, window_bounds = array<i64: 1, 256>}, {pipeline_mode = #tpu.pipeline_mode<synchronous>, transform_indices = @transform_8, window_bounds = array<i64: 128, 1024>}, {pipeline_mode = #tpu.pipeline_mode<synchronous>, transform_indices = @transform_9, window_bounds = array<i64: 1, 1024>}, {pipeline_mode = #tpu.pipeline_mode<synchronous>, transform_indices = @transform_10, window_bounds = array<i64: 128, 1024>}, {pipeline_mode = #tpu.pipeline_mode<synchronous>, transform_indices = @transform_11, window_bounds = array<i64: 1, 1024>}, {pipeline_mode = #tpu.pipeline_mode<synchronous>, transform_indices = @transform_12, window_bounds = array<i64: 128, 256>}, {pipeline_mode = #tpu.pipeline_mode<synchronous>, transform_indices = @transform_13, window_bounds = array<i64: 1, 256>}, {pipeline_mode = #tpu.pipeline_mode<synchronous>, transform_indices = @transform_14, window_bounds = array<i64: 1, 256>}, {pipeline_mode = #tpu.pipeline_mode<synchronous>, transform_indices = @transform_15, window_bounds = array<i64: 1, 256>}, {pipeline_mode = #tpu.pipeline_mode<synchronous>, transform_indices = @transform_16, window_bounds = array<i64: 256, 128>}, {pipeline_mode = #tpu.pipeline_mode<synchronous>, transform_indices = @transform_17, window_bounds = array<i64: 1, 128>}, {pipeline_mode = #tpu.pipeline_mode<synchronous>, transform_indices = @transform_18, window_bounds = array<i64: 128, 256>}, {pipeline_mode = #tpu.pipeline_mode<synchronous>, transform_indices = @transform_19, window_bounds = array<i64: 32, 128>}, {pipeline_mode = #tpu.pipeline_mode<synchronous>, transform_indices = @transform_20, window_bounds = array<i64: 32, 128>}, {pipeline_mode = #tpu.pipeline_mode<synchronous>, transform_indices = @transform_21, window_bounds = array<i64: 32, 256>}, {pipeline_mode = #tpu.pipeline_mode<synchronous>, transform_indices = @transform_22, window_bounds = array<i64: 32, 256>}, {pipeline_mode = #tpu.pipeline_mode<synchronous>, transform_indices = @transform_23, window_bounds = array<i64: 32, 128>}]} {
    %c0 = arith.constant 0 : index
    %c0_0 = arith.constant 0 : index
    %0 = vector.load %arg1[%c0, %c0_0] : memref<32x1024xbf16, #tpu.memory_space<vmem>>, vector<32x1024xbf16>
    %c0_1 = arith.constant 0 : index
    %c0_2 = arith.constant 0 : index
    %1 = vector.load %arg2[%c0_1, %c0_2] : memref<32x1024xbf16, #tpu.memory_space<vmem>>, vector<32x1024xbf16>
    %2 = tpu.concatenate %0, %1 in 0 : vector<32x1024xbf16>, vector<32x1024xbf16> -> vector<64x1024xbf16>
    %c0_3 = arith.constant 0 : index
    %c0_4 = arith.constant 0 : index
    %3 = vector.load %arg3[%c0_3, %c0_4] : memref<1024x256xbf16, #tpu.memory_space<vmem>>, vector<1024x256xbf16>
    %c0_5 = arith.constant 0 : index
    %c0_6 = arith.constant 0 : index
    %4 = vector.load %arg4[%c0_5, %c0_6] : memref<1x256xf32, #tpu.memory_space<vmem>>, vector<1x256xf32>
    %cst = arith.constant dense<0.000000e+00> : vector<64x256xf32>
    %5 = tpu.matmul %2, %3, %cst {dimension_numbers = #tpu.dot_dimension_numbers<[1], [0], [0], [1], [0, 0, 1, 1], [], []>} : vector<64x1024xbf16>, vector<1024x256xbf16>, vector<64x256xf32> -> vector<64x256xf32>
    %6 = vector.broadcast %4 : vector<1x256xf32> to vector<64x256xf32>
    %7 = arith.addf %5, %6 : vector<64x256xf32>
    %8 = vector.extract_strided_slice %7 {offsets = [0, 0], sizes = [32, 128], strides = [1, 1]} : vector<64x256xf32> to vector<32x128xf32>
    %9 = vector.extract_strided_slice %7 {offsets = [32, 128], sizes = [32, 128], strides = [1, 1]} : vector<64x256xf32> to vector<32x128xf32>
    %10 = tpu.concatenate %8, %9 in 0 : vector<32x128xf32>, vector<32x128xf32> -> vector<64x128xf32>
    %c0_7 = arith.constant 0 : index
    %c0_8 = arith.constant 0 : index
    %11 = vector.load %arg5[%c0_7, %c0_8] : memref<128x256xbf16, #tpu.memory_space<vmem>>, vector<128x256xbf16>
    %c0_9 = arith.constant 0 : index
    %c0_10 = arith.constant 0 : index
    %12 = vector.load %arg6[%c0_9, %c0_10] : memref<1x256xf32, #tpu.memory_space<vmem>>, vector<1x256xf32>
    %13 = arith.truncf %10 : vector<64x128xf32> to vector<64x128xbf16>
    %cst_11 = arith.constant dense<0.000000e+00> : vector<64x256xf32>
    %14 = tpu.matmul %13, %11, %cst_11 {dimension_numbers = #tpu.dot_dimension_numbers<[1], [0], [0], [1], [0, 0, 1, 1], [], []>} : vector<64x128xbf16>, vector<128x256xbf16>, vector<64x256xf32> -> vector<64x256xf32>
    %15 = vector.broadcast %12 : vector<1x256xf32> to vector<64x256xf32>
    %16 = arith.addf %14, %15 : vector<64x256xf32>
    %17 = vector.extract_strided_slice %16 {offsets = [0, 0], sizes = [32, 128], strides = [1, 1]} : vector<64x256xf32> to vector<32x128xf32>
    %18 = vector.extract_strided_slice %16 {offsets = [32, 128], sizes = [32, 128], strides = [1, 1]} : vector<64x256xf32> to vector<32x128xf32>
    %19 = arith.negf %17 : vector<32x128xf32>
    %20 = math.exp %19 : vector<32x128xf32>
    %cst_12 = arith.constant 1.000000e+00 : f32
    %21 = vector.broadcast %cst_12 : f32 to vector<32x128xf32>
    %22 = arith.addf %21, %20 : vector<32x128xf32>
    %23 = arith.divf %21, %22 : vector<32x128xf32>
    %24 = arith.mulf %8, %23 : vector<32x128xf32>
    %25 = arith.negf %18 : vector<32x128xf32>
    %26 = math.exp %25 : vector<32x128xf32>
    %cst_13 = arith.constant 1.000000e+00 : f32
    %27 = vector.broadcast %cst_13 : f32 to vector<32x128xf32>
    %28 = arith.addf %27, %26 : vector<32x128xf32>
    %29 = arith.divf %27, %28 : vector<32x128xf32>
    %30 = arith.mulf %9, %29 : vector<32x128xf32>
    %31 = tpu.concatenate %24, %30 in 0 : vector<32x128xf32>, vector<32x128xf32> -> vector<64x128xf32>
    %c0_14 = arith.constant 0 : index
    %c0_15 = arith.constant 0 : index
    %32 = vector.load %arg7[%c0_14, %c0_15] : memref<128x256xbf16, #tpu.memory_space<vmem>>, vector<128x256xbf16>
    %c0_16 = arith.constant 0 : index
    %c0_17 = arith.constant 0 : index
    %33 = vector.load %arg8[%c0_16, %c0_17] : memref<1x256xf32, #tpu.memory_space<vmem>>, vector<1x256xf32>
    %34 = arith.truncf %31 : vector<64x128xf32> to vector<64x128xbf16>
    %cst_18 = arith.constant dense<0.000000e+00> : vector<64x256xf32>
    %35 = tpu.matmul %34, %32, %cst_18 {dimension_numbers = #tpu.dot_dimension_numbers<[1], [0], [0], [1], [0, 0, 1, 1], [], []>} : vector<64x128xbf16>, vector<128x256xbf16>, vector<64x256xf32> -> vector<64x256xf32>
    %36 = vector.broadcast %33 : vector<1x256xf32> to vector<64x256xf32>
    %37 = arith.addf %35, %36 : vector<64x256xf32>
    %38 = vector.extract_strided_slice %37 {offsets = [0, 0], sizes = [32, 128], strides = [1, 1]} : vector<64x256xf32> to vector<32x128xf32>
    %39 = vector.extract_strided_slice %37 {offsets = [32, 128], sizes = [32, 128], strides = [1, 1]} : vector<64x256xf32> to vector<32x128xf32>
    %cst_19 = arith.constant 0.000000e+00 : f32
    %40 = vector.broadcast %cst_19 : f32 to vector<32x128xf32>
    %41 = arith.maximumf %38, %40 : vector<32x128xf32>
    %cst_20 = arith.constant 0.000000e+00 : f32
    %42 = vector.broadcast %cst_20 : f32 to vector<32x128xf32>
    %43 = arith.maximumf %39, %42 : vector<32x128xf32>
    %c0_21 = arith.constant 0 : index
    %c0_22 = arith.constant 0 : index
    %44 = vector.load %arg9[%c0_21, %c0_22] : memref<128x1024xbf16, #tpu.memory_space<vmem>>, vector<128x1024xbf16>
    %c0_23 = arith.constant 0 : index
    %c0_24 = arith.constant 0 : index
    %45 = vector.load %arg10[%c0_23, %c0_24] : memref<1x1024xf32, #tpu.memory_space<vmem>>, vector<1x1024xf32>
    %46 = arith.truncf %41 : vector<32x128xf32> to vector<32x128xbf16>
    %cst_25 = arith.constant dense<0.000000e+00> : vector<32x1024xf32>
    %47 = tpu.matmul %46, %44, %cst_25 {dimension_numbers = #tpu.dot_dimension_numbers<[1], [0], [0], [1], [0, 0, 1, 1], [], []>} : vector<32x128xbf16>, vector<128x1024xbf16>, vector<32x1024xf32> -> vector<32x1024xf32>
    %48 = vector.broadcast %45 : vector<1x1024xf32> to vector<32x1024xf32>
    %49 = arith.addf %47, %48 : vector<32x1024xf32>
    %cst_26 = arith.constant 0.000000e+00 : f32
    %50 = vector.broadcast %cst_26 : f32 to vector<32x1024xf32>
    %51 = arith.maximumf %49, %50 : vector<32x1024xf32>
    %c0_27 = arith.constant 0 : index
    %c0_28 = arith.constant 0 : index
    %52 = vector.load %arg11[%c0_27, %c0_28] : memref<128x1024xbf16, #tpu.memory_space<vmem>>, vector<128x1024xbf16>
    %c0_29 = arith.constant 0 : index
    %c0_30 = arith.constant 0 : index
    %53 = vector.load %arg12[%c0_29, %c0_30] : memref<1x1024xf32, #tpu.memory_space<vmem>>, vector<1x1024xf32>
    %54 = arith.truncf %43 : vector<32x128xf32> to vector<32x128xbf16>
    %cst_31 = arith.constant dense<0.000000e+00> : vector<32x1024xf32>
    %55 = tpu.matmul %54, %52, %cst_31 {dimension_numbers = #tpu.dot_dimension_numbers<[1], [0], [0], [1], [0, 0, 1, 1], [], []>} : vector<32x128xbf16>, vector<128x1024xbf16>, vector<32x1024xf32> -> vector<32x1024xf32>
    %56 = vector.broadcast %53 : vector<1x1024xf32> to vector<32x1024xf32>
    %57 = arith.addf %55, %56 : vector<32x1024xf32>
    %cst_32 = arith.constant 0.000000e+00 : f32
    %58 = vector.broadcast %cst_32 : f32 to vector<32x1024xf32>
    %59 = arith.maximumf %57, %58 : vector<32x1024xf32>
    %60 = tpu.concatenate %24, %30 in 0 : vector<32x128xf32>, vector<32x128xf32> -> vector<64x128xf32>
    %c0_33 = arith.constant 0 : index
    %c0_34 = arith.constant 0 : index
    %61 = vector.load %arg13[%c0_33, %c0_34] : memref<128x256xbf16, #tpu.memory_space<vmem>>, vector<128x256xbf16>
    %c0_35 = arith.constant 0 : index
    %c0_36 = arith.constant 0 : index
    %62 = vector.load %arg14[%c0_35, %c0_36] : memref<1x256xf32, #tpu.memory_space<vmem>>, vector<1x256xf32>
    %63 = arith.truncf %60 : vector<64x128xf32> to vector<64x128xbf16>
    %cst_37 = arith.constant dense<0.000000e+00> : vector<64x256xf32>
    %64 = tpu.matmul %63, %61, %cst_37 {dimension_numbers = #tpu.dot_dimension_numbers<[1], [0], [0], [1], [0, 0, 1, 1], [], []>} : vector<64x128xbf16>, vector<128x256xbf16>, vector<64x256xf32> -> vector<64x256xf32>
    %65 = vector.broadcast %62 : vector<1x256xf32> to vector<64x256xf32>
    %66 = arith.addf %64, %65 : vector<64x256xf32>
    %c0_38 = arith.constant 0 : index
    %c0_39 = arith.constant 0 : index
    %67 = vector.load %arg15[%c0_38, %c0_39] : memref<1x256xf32, #tpu.memory_space<vmem>>, vector<1x256xf32>
    %c0_40 = arith.constant 0 : index
    %c0_41 = arith.constant 0 : index
    %68 = vector.load %arg16[%c0_40, %c0_41] : memref<1x256xf32, #tpu.memory_space<vmem>>, vector<1x256xf32>
    %69 = vector.extract_strided_slice %66 {offsets = [0, 0], sizes = [8, 256], strides = [1, 1]} : vector<64x256xf32> to vector<8x256xf32>
    %cst_42 = arith.constant dense<0.000000e+00> : vector<256xf32>
    %70 = vector.multi_reduction <add>, %69, %cst_42 [0] : vector<8x256xf32> to vector<256xf32>
    %71 = vector.shape_cast %70 : vector<256xf32> to vector<1x256xf32>
    %cst_43 = arith.constant 8.000000e+00 : f32
    %72 = vector.broadcast %cst_43 : f32 to vector<1x256xf32>
    %73 = arith.divf %71, %72 : vector<1x256xf32>
    %74 = vector.broadcast %73 : vector<1x256xf32> to vector<8x256xf32>
    %75 = arith.subf %69, %74 : vector<8x256xf32>
    %76 = arith.mulf %75, %75 : vector<8x256xf32>
    %cst_44 = arith.constant dense<0.000000e+00> : vector<256xf32>
    %77 = vector.multi_reduction <add>, %76, %cst_44 [0] : vector<8x256xf32> to vector<256xf32>
    %78 = vector.shape_cast %77 : vector<256xf32> to vector<1x256xf32>
    %cst_45 = arith.constant 8.000000e+00 : f32
    %79 = vector.broadcast %cst_45 : f32 to vector<1x256xf32>
    %80 = arith.divf %78, %79 : vector<1x256xf32>
    %81 = vector.broadcast %73 : vector<1x256xf32> to vector<8x256xf32>
    %82 = arith.subf %69, %81 : vector<8x256xf32>
    %cst_46 = arith.constant 9.99999974E-6 : f32
    %83 = vector.broadcast %cst_46 : f32 to vector<1x256xf32>
    %84 = arith.addf %80, %83 : vector<1x256xf32>
    %85 = math.rsqrt %84 : vector<1x256xf32>
    %86 = vector.broadcast %85 : vector<1x256xf32> to vector<8x256xf32>
    %87 = arith.mulf %82, %86 : vector<8x256xf32>
    %88 = vector.broadcast %67 : vector<1x256xf32> to vector<8x256xf32>
    %89 = arith.mulf %87, %88 : vector<8x256xf32>
    %90 = vector.broadcast %68 : vector<1x256xf32> to vector<8x256xf32>
    %91 = arith.addf %89, %90 : vector<8x256xf32>
    %cst_47 = arith.constant 0.000000e+00 : f32
    %92 = vector.broadcast %cst_47 : f32 to vector<8x256xf32>
    %93 = arith.maximumf %91, %92 : vector<8x256xf32>
    %94 = vector.extract_strided_slice %66 {offsets = [8, 0], sizes = [8, 256], strides = [1, 1]} : vector<64x256xf32> to vector<8x256xf32>
    %cst_48 = arith.constant dense<0.000000e+00> : vector<256xf32>
    %95 = vector.multi_reduction <add>, %94, %cst_48 [0] : vector<8x256xf32> to vector<256xf32>
    %96 = vector.shape_cast %95 : vector<256xf32> to vector<1x256xf32>
    %cst_49 = arith.constant 8.000000e+00 : f32
    %97 = vector.broadcast %cst_49 : f32 to vector<1x256xf32>
    %98 = arith.divf %96, %97 : vector<1x256xf32>
    %99 = vector.broadcast %98 : vector<1x256xf32> to vector<8x256xf32>
    %100 = arith.subf %94, %99 : vector<8x256xf32>
    %101 = arith.mulf %100, %100 : vector<8x256xf32>
    %cst_50 = arith.constant dense<0.000000e+00> : vector<256xf32>
    %102 = vector.multi_reduction <add>, %101, %cst_50 [0] : vector<8x256xf32> to vector<256xf32>
    %103 = vector.shape_cast %102 : vector<256xf32> to vector<1x256xf32>
    %cst_51 = arith.constant 8.000000e+00 : f32
    %104 = vector.broadcast %cst_51 : f32 to vector<1x256xf32>
    %105 = arith.divf %103, %104 : vector<1x256xf32>
    %106 = vector.broadcast %98 : vector<1x256xf32> to vector<8x256xf32>
    %107 = arith.subf %94, %106 : vector<8x256xf32>
    %cst_52 = arith.constant 9.99999974E-6 : f32
    %108 = vector.broadcast %cst_52 : f32 to vector<1x256xf32>
    %109 = arith.addf %105, %108 : vector<1x256xf32>
    %110 = math.rsqrt %109 : vector<1x256xf32>
    %111 = vector.broadcast %110 : vector<1x256xf32> to vector<8x256xf32>
    %112 = arith.mulf %107, %111 : vector<8x256xf32>
    %113 = vector.broadcast %67 : vector<1x256xf32> to vector<8x256xf32>
    %114 = arith.mulf %112, %113 : vector<8x256xf32>
    %115 = vector.broadcast %68 : vector<1x256xf32> to vector<8x256xf32>
    %116 = arith.addf %114, %115 : vector<8x256xf32>
    %cst_53 = arith.constant 0.000000e+00 : f32
    %117 = vector.broadcast %cst_53 : f32 to vector<8x256xf32>
    %118 = arith.maximumf %116, %117 : vector<8x256xf32>
    %119 = vector.extract_strided_slice %66 {offsets = [16, 0], sizes = [8, 256], strides = [1, 1]} : vector<64x256xf32> to vector<8x256xf32>
    %cst_54 = arith.constant dense<0.000000e+00> : vector<256xf32>
    %120 = vector.multi_reduction <add>, %119, %cst_54 [0] : vector<8x256xf32> to vector<256xf32>
    %121 = vector.shape_cast %120 : vector<256xf32> to vector<1x256xf32>
    %cst_55 = arith.constant 8.000000e+00 : f32
    %122 = vector.broadcast %cst_55 : f32 to vector<1x256xf32>
    %123 = arith.divf %121, %122 : vector<1x256xf32>
    %124 = vector.broadcast %123 : vector<1x256xf32> to vector<8x256xf32>
    %125 = arith.subf %119, %124 : vector<8x256xf32>
    %126 = arith.mulf %125, %125 : vector<8x256xf32>
    %cst_56 = arith.constant dense<0.000000e+00> : vector<256xf32>
    %127 = vector.multi_reduction <add>, %126, %cst_56 [0] : vector<8x256xf32> to vector<256xf32>
    %128 = vector.shape_cast %127 : vector<256xf32> to vector<1x256xf32>
    %cst_57 = arith.constant 8.000000e+00 : f32
    %129 = vector.broadcast %cst_57 : f32 to vector<1x256xf32>
    %130 = arith.divf %128, %129 : vector<1x256xf32>
    %131 = vector.broadcast %123 : vector<1x256xf32> to vector<8x256xf32>
    %132 = arith.subf %119, %131 : vector<8x256xf32>
    %cst_58 = arith.constant 9.99999974E-6 : f32
    %133 = vector.broadcast %cst_58 : f32 to vector<1x256xf32>
    %134 = arith.addf %130, %133 : vector<1x256xf32>
    %135 = math.rsqrt %134 : vector<1x256xf32>
    %136 = vector.broadcast %135 : vector<1x256xf32> to vector<8x256xf32>
    %137 = arith.mulf %132, %136 : vector<8x256xf32>
    %138 = vector.broadcast %67 : vector<1x256xf32> to vector<8x256xf32>
    %139 = arith.mulf %137, %138 : vector<8x256xf32>
    %140 = vector.broadcast %68 : vector<1x256xf32> to vector<8x256xf32>
    %141 = arith.addf %139, %140 : vector<8x256xf32>
    %cst_59 = arith.constant 0.000000e+00 : f32
    %142 = vector.broadcast %cst_59 : f32 to vector<8x256xf32>
    %143 = arith.maximumf %141, %142 : vector<8x256xf32>
    %144 = vector.extract_strided_slice %66 {offsets = [24, 0], sizes = [8, 256], strides = [1, 1]} : vector<64x256xf32> to vector<8x256xf32>
    %cst_60 = arith.constant dense<0.000000e+00> : vector<256xf32>
    %145 = vector.multi_reduction <add>, %144, %cst_60 [0] : vector<8x256xf32> to vector<256xf32>
    %146 = vector.shape_cast %145 : vector<256xf32> to vector<1x256xf32>
    %cst_61 = arith.constant 8.000000e+00 : f32
    %147 = vector.broadcast %cst_61 : f32 to vector<1x256xf32>
    %148 = arith.divf %146, %147 : vector<1x256xf32>
    %149 = vector.broadcast %148 : vector<1x256xf32> to vector<8x256xf32>
    %150 = arith.subf %144, %149 : vector<8x256xf32>
    %151 = arith.mulf %150, %150 : vector<8x256xf32>
    %cst_62 = arith.constant dense<0.000000e+00> : vector<256xf32>
    %152 = vector.multi_reduction <add>, %151, %cst_62 [0] : vector<8x256xf32> to vector<256xf32>
    %153 = vector.shape_cast %152 : vector<256xf32> to vector<1x256xf32>
    %cst_63 = arith.constant 8.000000e+00 : f32
    %154 = vector.broadcast %cst_63 : f32 to vector<1x256xf32>
    %155 = arith.divf %153, %154 : vector<1x256xf32>
    %156 = vector.broadcast %148 : vector<1x256xf32> to vector<8x256xf32>
    %157 = arith.subf %144, %156 : vector<8x256xf32>
    %cst_64 = arith.constant 9.99999974E-6 : f32
    %158 = vector.broadcast %cst_64 : f32 to vector<1x256xf32>
    %159 = arith.addf %155, %158 : vector<1x256xf32>
    %160 = math.rsqrt %159 : vector<1x256xf32>
    %161 = vector.broadcast %160 : vector<1x256xf32> to vector<8x256xf32>
    %162 = arith.mulf %157, %161 : vector<8x256xf32>
    %163 = vector.broadcast %67 : vector<1x256xf32> to vector<8x256xf32>
    %164 = arith.mulf %162, %163 : vector<8x256xf32>
    %165 = vector.broadcast %68 : vector<1x256xf32> to vector<8x256xf32>
    %166 = arith.addf %164, %165 : vector<8x256xf32>
    %cst_65 = arith.constant 0.000000e+00 : f32
    %167 = vector.broadcast %cst_65 : f32 to vector<8x256xf32>
    %168 = arith.maximumf %166, %167 : vector<8x256xf32>
    %169 = vector.extract_strided_slice %66 {offsets = [32, 0], sizes = [8, 256], strides = [1, 1]} : vector<64x256xf32> to vector<8x256xf32>
    %cst_66 = arith.constant dense<0.000000e+00> : vector<256xf32>
    %170 = vector.multi_reduction <add>, %169, %cst_66 [0] : vector<8x256xf32> to vector<256xf32>
    %171 = vector.shape_cast %170 : vector<256xf32> to vector<1x256xf32>
    %cst_67 = arith.constant 8.000000e+00 : f32
    %172 = vector.broadcast %cst_67 : f32 to vector<1x256xf32>
    %173 = arith.divf %171, %172 : vector<1x256xf32>
    %174 = vector.broadcast %173 : vector<1x256xf32> to vector<8x256xf32>
    %175 = arith.subf %169, %174 : vector<8x256xf32>
    %176 = arith.mulf %175, %175 : vector<8x256xf32>
    %cst_68 = arith.constant dense<0.000000e+00> : vector<256xf32>
    %177 = vector.multi_reduction <add>, %176, %cst_68 [0] : vector<8x256xf32> to vector<256xf32>
    %178 = vector.shape_cast %177 : vector<256xf32> to vector<1x256xf32>
    %cst_69 = arith.constant 8.000000e+00 : f32
    %179 = vector.broadcast %cst_69 : f32 to vector<1x256xf32>
    %180 = arith.divf %178, %179 : vector<1x256xf32>
    %181 = vector.broadcast %173 : vector<1x256xf32> to vector<8x256xf32>
    %182 = arith.subf %169, %181 : vector<8x256xf32>
    %cst_70 = arith.constant 9.99999974E-6 : f32
    %183 = vector.broadcast %cst_70 : f32 to vector<1x256xf32>
    %184 = arith.addf %180, %183 : vector<1x256xf32>
    %185 = math.rsqrt %184 : vector<1x256xf32>
    %186 = vector.broadcast %185 : vector<1x256xf32> to vector<8x256xf32>
    %187 = arith.mulf %182, %186 : vector<8x256xf32>
    %188 = vector.broadcast %67 : vector<1x256xf32> to vector<8x256xf32>
    %189 = arith.mulf %187, %188 : vector<8x256xf32>
    %190 = vector.broadcast %68 : vector<1x256xf32> to vector<8x256xf32>
    %191 = arith.addf %189, %190 : vector<8x256xf32>
    %cst_71 = arith.constant 0.000000e+00 : f32
    %192 = vector.broadcast %cst_71 : f32 to vector<8x256xf32>
    %193 = arith.maximumf %191, %192 : vector<8x256xf32>
    %194 = vector.extract_strided_slice %66 {offsets = [40, 0], sizes = [8, 256], strides = [1, 1]} : vector<64x256xf32> to vector<8x256xf32>
    %cst_72 = arith.constant dense<0.000000e+00> : vector<256xf32>
    %195 = vector.multi_reduction <add>, %194, %cst_72 [0] : vector<8x256xf32> to vector<256xf32>
    %196 = vector.shape_cast %195 : vector<256xf32> to vector<1x256xf32>
    %cst_73 = arith.constant 8.000000e+00 : f32
    %197 = vector.broadcast %cst_73 : f32 to vector<1x256xf32>
    %198 = arith.divf %196, %197 : vector<1x256xf32>
    %199 = vector.broadcast %198 : vector<1x256xf32> to vector<8x256xf32>
    %200 = arith.subf %194, %199 : vector<8x256xf32>
    %201 = arith.mulf %200, %200 : vector<8x256xf32>
    %cst_74 = arith.constant dense<0.000000e+00> : vector<256xf32>
    %202 = vector.multi_reduction <add>, %201, %cst_74 [0] : vector<8x256xf32> to vector<256xf32>
    %203 = vector.shape_cast %202 : vector<256xf32> to vector<1x256xf32>
    %cst_75 = arith.constant 8.000000e+00 : f32
    %204 = vector.broadcast %cst_75 : f32 to vector<1x256xf32>
    %205 = arith.divf %203, %204 : vector<1x256xf32>
    %206 = vector.broadcast %198 : vector<1x256xf32> to vector<8x256xf32>
    %207 = arith.subf %194, %206 : vector<8x256xf32>
    %cst_76 = arith.constant 9.99999974E-6 : f32
    %208 = vector.broadcast %cst_76 : f32 to vector<1x256xf32>
    %209 = arith.addf %205, %208 : vector<1x256xf32>
    %210 = math.rsqrt %209 : vector<1x256xf32>
    %211 = vector.broadcast %210 : vector<1x256xf32> to vector<8x256xf32>
    %212 = arith.mulf %207, %211 : vector<8x256xf32>
    %213 = vector.broadcast %67 : vector<1x256xf32> to vector<8x256xf32>
    %214 = arith.mulf %212, %213 : vector<8x256xf32>
    %215 = vector.broadcast %68 : vector<1x256xf32> to vector<8x256xf32>
    %216 = arith.addf %214, %215 : vector<8x256xf32>
    %cst_77 = arith.constant 0.000000e+00 : f32
    %217 = vector.broadcast %cst_77 : f32 to vector<8x256xf32>
    %218 = arith.maximumf %216, %217 : vector<8x256xf32>
    %219 = vector.extract_strided_slice %66 {offsets = [48, 0], sizes = [8, 256], strides = [1, 1]} : vector<64x256xf32> to vector<8x256xf32>
    %cst_78 = arith.constant dense<0.000000e+00> : vector<256xf32>
    %220 = vector.multi_reduction <add>, %219, %cst_78 [0] : vector<8x256xf32> to vector<256xf32>
    %221 = vector.shape_cast %220 : vector<256xf32> to vector<1x256xf32>
    %cst_79 = arith.constant 8.000000e+00 : f32
    %222 = vector.broadcast %cst_79 : f32 to vector<1x256xf32>
    %223 = arith.divf %221, %222 : vector<1x256xf32>
    %224 = vector.broadcast %223 : vector<1x256xf32> to vector<8x256xf32>
    %225 = arith.subf %219, %224 : vector<8x256xf32>
    %226 = arith.mulf %225, %225 : vector<8x256xf32>
    %cst_80 = arith.constant dense<0.000000e+00> : vector<256xf32>
    %227 = vector.multi_reduction <add>, %226, %cst_80 [0] : vector<8x256xf32> to vector<256xf32>
    %228 = vector.shape_cast %227 : vector<256xf32> to vector<1x256xf32>
    %cst_81 = arith.constant 8.000000e+00 : f32
    %229 = vector.broadcast %cst_81 : f32 to vector<1x256xf32>
    %230 = arith.divf %228, %229 : vector<1x256xf32>
    %231 = vector.broadcast %223 : vector<1x256xf32> to vector<8x256xf32>
    %232 = arith.subf %219, %231 : vector<8x256xf32>
    %cst_82 = arith.constant 9.99999974E-6 : f32
    %233 = vector.broadcast %cst_82 : f32 to vector<1x256xf32>
    %234 = arith.addf %230, %233 : vector<1x256xf32>
    %235 = math.rsqrt %234 : vector<1x256xf32>
    %236 = vector.broadcast %235 : vector<1x256xf32> to vector<8x256xf32>
    %237 = arith.mulf %232, %236 : vector<8x256xf32>
    %238 = vector.broadcast %67 : vector<1x256xf32> to vector<8x256xf32>
    %239 = arith.mulf %237, %238 : vector<8x256xf32>
    %240 = vector.broadcast %68 : vector<1x256xf32> to vector<8x256xf32>
    %241 = arith.addf %239, %240 : vector<8x256xf32>
    %cst_83 = arith.constant 0.000000e+00 : f32
    %242 = vector.broadcast %cst_83 : f32 to vector<8x256xf32>
    %243 = arith.maximumf %241, %242 : vector<8x256xf32>
    %244 = vector.extract_strided_slice %66 {offsets = [56, 0], sizes = [8, 256], strides = [1, 1]} : vector<64x256xf32> to vector<8x256xf32>
    %cst_84 = arith.constant dense<0.000000e+00> : vector<256xf32>
    %245 = vector.multi_reduction <add>, %244, %cst_84 [0] : vector<8x256xf32> to vector<256xf32>
    %246 = vector.shape_cast %245 : vector<256xf32> to vector<1x256xf32>
    %cst_85 = arith.constant 8.000000e+00 : f32
    %247 = vector.broadcast %cst_85 : f32 to vector<1x256xf32>
    %248 = arith.divf %246, %247 : vector<1x256xf32>
    %249 = vector.broadcast %248 : vector<1x256xf32> to vector<8x256xf32>
    %250 = arith.subf %244, %249 : vector<8x256xf32>
    %251 = arith.mulf %250, %250 : vector<8x256xf32>
    %cst_86 = arith.constant dense<0.000000e+00> : vector<256xf32>
    %252 = vector.multi_reduction <add>, %251, %cst_86 [0] : vector<8x256xf32> to vector<256xf32>
    %253 = vector.shape_cast %252 : vector<256xf32> to vector<1x256xf32>
    %cst_87 = arith.constant 8.000000e+00 : f32
    %254 = vector.broadcast %cst_87 : f32 to vector<1x256xf32>
    %255 = arith.divf %253, %254 : vector<1x256xf32>
    %256 = vector.broadcast %248 : vector<1x256xf32> to vector<8x256xf32>
    %257 = arith.subf %244, %256 : vector<8x256xf32>
    %cst_88 = arith.constant 9.99999974E-6 : f32
    %258 = vector.broadcast %cst_88 : f32 to vector<1x256xf32>
    %259 = arith.addf %255, %258 : vector<1x256xf32>
    %260 = math.rsqrt %259 : vector<1x256xf32>
    %261 = vector.broadcast %260 : vector<1x256xf32> to vector<8x256xf32>
    %262 = arith.mulf %257, %261 : vector<8x256xf32>
    %263 = vector.broadcast %67 : vector<1x256xf32> to vector<8x256xf32>
    %264 = arith.mulf %262, %263 : vector<8x256xf32>
    %265 = vector.broadcast %68 : vector<1x256xf32> to vector<8x256xf32>
    %266 = arith.addf %264, %265 : vector<8x256xf32>
    %cst_89 = arith.constant 0.000000e+00 : f32
    %267 = vector.broadcast %cst_89 : f32 to vector<8x256xf32>
    %268 = arith.maximumf %266, %267 : vector<8x256xf32>
    %269 = tpu.concatenate %93, %118, %143, %168, %193, %218, %243, %268 in 0 : vector<8x256xf32>, vector<8x256xf32>, vector<8x256xf32>, vector<8x256xf32>, vector<8x256xf32>, vector<8x256xf32>, vector<8x256xf32>, vector<8x256xf32> -> vector<64x256xf32>
    %c0_90 = arith.constant 0 : index
    %c0_91 = arith.constant 0 : index
    %270 = vector.load %arg17[%c0_90, %c0_91] : memref<256x128xbf16, #tpu.memory_space<vmem>>, vector<256x128xbf16>
    %c0_92 = arith.constant 0 : index
    %c0_93 = arith.constant 0 : index
    %271 = vector.load %arg18[%c0_92, %c0_93] : memref<1x128xf32, #tpu.memory_space<vmem>>, vector<1x128xf32>
    %272 = arith.truncf %269 : vector<64x256xf32> to vector<64x256xbf16>
    %cst_94 = arith.constant dense<0.000000e+00> : vector<64x128xf32>
    %273 = tpu.matmul %272, %270, %cst_94 {dimension_numbers = #tpu.dot_dimension_numbers<[1], [0], [0], [1], [0, 0, 1, 1], [], []>} : vector<64x256xbf16>, vector<256x128xbf16>, vector<64x128xf32> -> vector<64x128xf32>
    %274 = vector.broadcast %271 : vector<1x128xf32> to vector<64x128xf32>
    %275 = arith.addf %273, %274 : vector<64x128xf32>
    %276 = arith.mulf %275, %275 : vector<64x128xf32>
    %cst_95 = arith.constant dense<0.000000e+00> : vector<64xf32>
    %277 = vector.multi_reduction <add>, %276, %cst_95 [1] : vector<64x128xf32> to vector<64xf32>
    %278 = vector.shape_cast %277 : vector<64xf32> to vector<64x1xf32>
    %cst_96 = arith.constant 1.000000e-24 : f32
    %279 = vector.broadcast %cst_96 : f32 to vector<64x1xf32>
    %280 = arith.maximumf %278, %279 : vector<64x1xf32>
    %281 = math.rsqrt %280 : vector<64x1xf32>
    %282 = vector.broadcast %281 : vector<64x1xf32> to vector<64x128xf32>
    %283 = arith.mulf %275, %282 : vector<64x128xf32>
    %c0_97 = arith.constant 0 : index
    %c0_98 = arith.constant 0 : index
    %284 = vector.load %arg19[%c0_97, %c0_98] : memref<128x256xbf16, #tpu.memory_space<vmem>>, vector<128x256xbf16>
    %285 = arith.truncf %283 : vector<64x128xf32> to vector<64x128xbf16>
    %cst_99 = arith.constant dense<0.000000e+00> : vector<64x256xf32>
    %286 = tpu.matmul %285, %284, %cst_99 {dimension_numbers = #tpu.dot_dimension_numbers<[1], [0], [0], [1], [0, 0, 1, 1], [], []>} : vector<64x128xbf16>, vector<128x256xbf16>, vector<64x256xf32> -> vector<64x256xf32>
    %287 = arith.extf %0 : vector<32x1024xbf16> to vector<32x1024xf32>
    %288 = arith.subf %51, %287 : vector<32x1024xf32>
    %289 = arith.mulf %288, %288 : vector<32x1024xf32>
    %cst_100 = arith.constant dense<0.000000e+00> : vector<32xf32>
    %290 = vector.multi_reduction <add>, %289, %cst_100 [1] : vector<32x1024xf32> to vector<32xf32>
    %291 = vector.shape_cast %290 : vector<32xf32> to vector<32x1xf32>
    %cst_101 = arith.constant 1.024000e+03 : f32
    %292 = vector.broadcast %cst_101 : f32 to vector<32x1xf32>
    %293 = arith.divf %291, %292 : vector<32x1xf32>
    %294 = arith.extf %1 : vector<32x1024xbf16> to vector<32x1024xf32>
    %295 = arith.subf %59, %294 : vector<32x1024xf32>
    %296 = arith.mulf %295, %295 : vector<32x1024xf32>
    %cst_102 = arith.constant dense<0.000000e+00> : vector<32xf32>
    %297 = vector.multi_reduction <add>, %296, %cst_102 [1] : vector<32x1024xf32> to vector<32xf32>
    %298 = vector.shape_cast %297 : vector<32xf32> to vector<32x1xf32>
    %cst_103 = arith.constant 1.024000e+03 : f32
    %299 = vector.broadcast %cst_103 : f32 to vector<32x1xf32>
    %300 = arith.divf %298, %299 : vector<32x1xf32>
    %c0_104 = arith.constant 0 : index
    %c0_105 = arith.constant 0 : index
    %301 = vector.load %arg20[%c0_104, %c0_105] : memref<32x128xf32, #tpu.memory_space<vmem>>, vector<32x128xf32>
    tpu.vector_store %arg20[%c0_104, %c0_105], %24 {strides = array<i32>} : memref<32x128xf32, #tpu.memory_space<vmem>>, vector<32x128xf32>,
    %c0_106 = arith.constant 0 : index
    %c0_107 = arith.constant 0 : index
    %302 = vector.load %arg21[%c0_106, %c0_107] : memref<32x128xf32, #tpu.memory_space<vmem>>, vector<32x128xf32>
    tpu.vector_store %arg21[%c0_106, %c0_107], %30 {strides = array<i32>} : memref<32x128xf32, #tpu.memory_space<vmem>>, vector<32x128xf32>,
    %303 = vector.extract_strided_slice %286 {offsets = [0, 0], sizes = [32, 256], strides = [1, 1]} : vector<64x256xf32> to vector<32x256xf32>
    %c0_108 = arith.constant 0 : index
    %c0_109 = arith.constant 0 : index
    %304 = vector.load %arg22[%c0_108, %c0_109] : memref<32x256xf32, #tpu.memory_space<vmem>>, vector<32x256xf32>
    tpu.vector_store %arg22[%c0_108, %c0_109], %303 {strides = array<i32>} : memref<32x256xf32, #tpu.memory_space<vmem>>, vector<32x256xf32>,
    %305 = vector.extract_strided_slice %286 {offsets = [32, 0], sizes = [32, 256], strides = [1, 1]} : vector<64x256xf32> to vector<32x256xf32>
    %c0_110 = arith.constant 0 : index
    %c0_111 = arith.constant 0 : index
    %306 = vector.load %arg23[%c0_110, %c0_111] : memref<32x256xf32, #tpu.memory_space<vmem>>, vector<32x256xf32>
    tpu.vector_store %arg23[%c0_110, %c0_111], %305 {strides = array<i32>} : memref<32x256xf32, #tpu.memory_space<vmem>>, vector<32x256xf32>,
    %307 = arith.addf %293, %300 : vector<32x1xf32>
    %308 = vector.shape_cast %307 : vector<32x1xf32> to vector<32x1xf32>
    %309 = vector.broadcast %308 : vector<32x1xf32> to vector<32x128xf32>
    %c0_112 = arith.constant 0 : index
    %c0_113 = arith.constant 0 : index
    %310 = vector.load %arg24[%c0_112, %c0_113] : memref<32x128xf32, #tpu.memory_space<vmem>>, vector<32x128xf32>
    tpu.vector_store %arg24[%c0_112, %c0_113], %309 {strides = array<i32>} : memref<32x128xf32, #tpu.memory_space<vmem>>, vector<32x128xf32>,
    return
  }
  func.func @transform_0(%arg0: i32) -> (i32, i32) {
    %c0_i32 = arith.constant 0 : i32
    %c0_i32_0 = arith.constant 0 : i32
    %c0_i32_1 = arith.constant 0 : i32
    return %c0_i32, %c0_i32_0 : i32, i32
  }
  func.func @transform_1(%arg0: i32) -> (i32, i32) {
    %c0_i32 = arith.constant 0 : i32
    %c0_i32_0 = arith.constant 0 : i32
    %c0_i32_1 = arith.constant 0 : i32
    return %c0_i32, %c0_i32_0 : i32, i32
  }
  func.func @transform_2(%arg0: i32) -> (i32, i32) {
    %c0_i32 = arith.constant 0 : i32
    %c0_i32_0 = arith.constant 0 : i32
    %c0_i32_1 = arith.constant 0 : i32
    return %c0_i32, %c0_i32_0 : i32, i32
  }
  func.func @transform_3(%arg0: i32) -> (i32, i32) {
    %c0_i32 = arith.constant 0 : i32
    %c0_i32_0 = arith.constant 0 : i32
    %c0_i32_1 = arith.constant 0 : i32
    return %c0_i32, %c0_i32_0 : i32, i32
  }
  func.func @transform_4(%arg0: i32) -> (i32, i32) {
    %c0_i32 = arith.constant 0 : i32
    %c0_i32_0 = arith.constant 0 : i32
    %c0_i32_1 = arith.constant 0 : i32
    return %c0_i32, %c0_i32_0 : i32, i32
  }
  func.func @transform_5(%arg0: i32) -> (i32, i32) {
    %c0_i32 = arith.constant 0 : i32
    %c0_i32_0 = arith.constant 0 : i32
    %c0_i32_1 = arith.constant 0 : i32
    return %c0_i32, %c0_i32_0 : i32, i32
  }
  func.func @transform_6(%arg0: i32) -> (i32, i32) {
    %c0_i32 = arith.constant 0 : i32
    %c0_i32_0 = arith.constant 0 : i32
    %c0_i32_1 = arith.constant 0 : i32
    return %c0_i32, %c0_i32_0 : i32, i32
  }
  func.func @transform_7(%arg0: i32) -> (i32, i32) {
    %c0_i32 = arith.constant 0 : i32
    %c0_i32_0 = arith.constant 0 : i32
    %c0_i32_1 = arith.constant 0 : i32
    return %c0_i32, %c0_i32_0 : i32, i32
  }
  func.func @transform_8(%arg0: i32) -> (i32, i32) {
    %c0_i32 = arith.constant 0 : i32
    %c0_i32_0 = arith.constant 0 : i32
    %c0_i32_1 = arith.constant 0 : i32
    return %c0_i32, %c0_i32_0 : i32, i32
  }
  func.func @transform_9(%arg0: i32) -> (i32, i32) {
    %c0_i32 = arith.constant 0 : i32
    %c0_i32_0 = arith.constant 0 : i32
    %c0_i32_1 = arith.constant 0 : i32
    return %c0_i32, %c0_i32_0 : i32, i32
  }
  func.func @transform_10(%arg0: i32) -> (i32, i32) {
    %c0_i32 = arith.constant 0 : i32
    %c0_i32_0 = arith.constant 0 : i32
    %c0_i32_1 = arith.constant 0 : i32
    return %c0_i32, %c0_i32_0 : i32, i32
  }
  func.func @transform_11(%arg0: i32) -> (i32, i32) {
    %c0_i32 = arith.constant 0 : i32
    %c0_i32_0 = arith.constant 0 : i32
    %c0_i32_1 = arith.constant 0 : i32
    return %c0_i32, %c0_i32_0 : i32, i32
  }
  func.func @transform_12(%arg0: i32) -> (i32, i32) {
    %c0_i32 = arith.constant 0 : i32
    %c0_i32_0 = arith.constant 0 : i32
    %c0_i32_1 = arith.constant 0 : i32
    return %c0_i32, %c0_i32_0 : i32, i32
  }
  func.func @transform_13(%arg0: i32) -> (i32, i32) {
    %c0_i32 = arith.constant 0 : i32
    %c0_i32_0 = arith.constant 0 : i32
    %c0_i32_1 = arith.constant 0 : i32
    return %c0_i32, %c0_i32_0 : i32, i32
  }
  func.func @transform_14(%arg0: i32) -> (i32, i32) {
    %c0_i32 = arith.constant 0 : i32
    %c0_i32_0 = arith.constant 0 : i32
    %c0_i32_1 = arith.constant 0 : i32
    return %c0_i32, %c0_i32_0 : i32, i32
  }
  func.func @transform_15(%arg0: i32) -> (i32, i32) {
    %c0_i32 = arith.constant 0 : i32
    %c0_i32_0 = arith.constant 0 : i32
    %c0_i32_1 = arith.constant 0 : i32
    return %c0_i32, %c0_i32_0 : i32, i32
  }
  func.func @transform_16(%arg0: i32) -> (i32, i32) {
    %c0_i32 = arith.constant 0 : i32
    %c0_i32_0 = arith.constant 0 : i32
    %c0_i32_1 = arith.constant 0 : i32
    return %c0_i32, %c0_i32_0 : i32, i32
  }
  func.func @transform_17(%arg0: i32) -> (i32, i32) {
    %c0_i32 = arith.constant 0 : i32
    %c0_i32_0 = arith.constant 0 : i32
    %c0_i32_1 = arith.constant 0 : i32
    return %c0_i32, %c0_i32_0 : i32, i32
  }
  func.func @transform_18(%arg0: i32) -> (i32, i32) {
    %c0_i32 = arith.constant 0 : i32
    %c0_i32_0 = arith.constant 0 : i32
    %c0_i32_1 = arith.constant 0 : i32
    return %c0_i32, %c0_i32_0 : i32, i32
  }
  func.func @transform_19(%arg0: i32) -> (i32, i32) {
    %c0_i32 = arith.constant 0 : i32
    %c0_i32_0 = arith.constant 0 : i32
    %c0_i32_1 = arith.constant 0 : i32
    return %c0_i32, %c0_i32_0 : i32, i32
  }
  func.func @transform_20(%arg0: i32) -> (i32, i32) {
    %c0_i32 = arith.constant 0 : i32
    %c0_i32_0 = arith.constant 0 : i32
    %c0_i32_1 = arith.constant 0 : i32
    return %c0_i32, %c0_i32_0 : i32, i32
  }
  func.func @transform_21(%arg0: i32) -> (i32, i32) {
    %c0_i32 = arith.constant 0 : i32
    %c0_i32_0 = arith.constant 0 : i32
    %c0_i32_1 = arith.constant 0 : i32
    return %c0_i32, %c0_i32_0 : i32, i32
  }
  func.func @transform_22(%arg0: i32) -> (i32, i32) {
    %c0_i32 = arith.constant 0 : i32
    %c0_i32_0 = arith.constant 0 : i32
    %c0_i32_1 = arith.constant 0 : i32
    return %c0_i32, %c0_i32_0 : i32, i32
  }
  func.func @transform_23(%arg0: i32) -> (i32, i32) {
    %c0_i32 = arith.constant 0 : i32
    %c0_i32_0 = arith.constant 0 : i32
    %c0_i32_1 = arith.constant 0 : i32
    return %c0_i32, %c0_i32_0 : i32, i32
  }
}

</mosaic_0001>

<llo_original>
// kernel: multimodal_transformer.1
$region0: #{multimodal_transformer.1}
  #allocation0 [shape = 'u32[]', space=smem, size = 0x4, offset = 0x4, fixed_abs, tag = 'smem constant byte address 0x4 - core index']
  #allocation1 [shape = 'u32[72,128]{1,0:T(1,128)}', space=vmem, size = 0x9000, scoped, tag = 'internal scratch']
  %s0 = inlined_call_operand.vmem [shape: bf16[32,1024], index: 0, kind: input, shape index: {}]
  %s1 = inlined_call_operand.vmem [shape: bf16[32,1024], index: 1, kind: input, shape index: {}]
  %s2 = inlined_call_operand.hbm [shape: bf16[1024,256], index: 2, kind: input, shape index: {}]
  %s3 = inlined_call_operand.hbm [shape: f32[1,256], index: 3, kind: input, shape index: {}]
  %s4 = inlined_call_operand.hbm [shape: bf16[128,256], index: 4, kind: input, shape index: {}]
  %s5 = inlined_call_operand.hbm [shape: f32[1,256], index: 5, kind: input, shape index: {}]
  %s6 = inlined_call_operand.hbm [shape: bf16[128,256], index: 6, kind: input, shape index: {}]
  %s7 = inlined_call_operand.hbm [shape: f32[1,256], index: 7, kind: input, shape index: {}]
  %s8 = inlined_call_operand.vmem [shape: bf16[128,1024], index: 8, kind: input, shape index: {}]
  %s9 = inlined_call_operand.vmem [shape: f32[1,1024], index: 9, kind: input, shape index: {}]
  %s10 = inlined_call_operand.hbm [shape: bf16[128,1024], index: 10, kind: input, shape index: {}]
  %s11 = inlined_call_operand.hbm [shape: f32[1,1024], index: 11, kind: input, shape index: {}]
  %s12 = inlined_call_operand.hbm [shape: bf16[128,256], index: 12, kind: input, shape index: {}]
  %s13 = inlined_call_operand.hbm [shape: f32[1,256], index: 13, kind: input, shape index: {}]
  %s14 = inlined_call_operand.hbm [shape: f32[1,256], index: 14, kind: input, shape index: {}]
  %s15 = inlined_call_operand.hbm [shape: f32[1,256], index: 15, kind: input, shape index: {}]
  %s16 = inlined_call_operand.hbm [shape: bf16[256,128], index: 16, kind: input, shape index: {}]
  %s17 = inlined_call_operand.hbm [shape: f32[1,128], index: 17, kind: input, shape index: {}]
  %s18 = inlined_call_operand.hbm [shape: bf16[128,256], index: 18, kind: input, shape index: {}]
  %s19 = inlined_call_operand.hbm [shape: f32[32,128], index: 19, kind: output, shape index: {0}]
  %s20 = inlined_call_operand.hbm [shape: f32[32,128], index: 20, kind: output, shape index: {1}]
  %s21 = inlined_call_operand.hbm [shape: f32[32,256], index: 21, kind: output, shape index: {2}]
  %s22 = inlined_call_operand.hbm [shape: f32[32,256], index: 22, kind: output, shape index: {3}]
  %s23 = inlined_call_operand.vmem [shape: f32[32,128], index: 23, kind: output, shape index: {4}]
  %24 = xla_tuple %s19, %s20, %s21, %s22, %s23
  %s25 = sld [smem:[#allocation0]]
  $region178: #{multimodal_transformer.1} parent=0
    _
  %s27 = ssub.s32 1, %s25
  %s28 = scalar_select 0, %s27, %s25
  $region1: #{multimodal_transformer.1} parent=0
    #allocation2 [shape = 'u8[524288]{0}', space=vmem, size = 0x80000, scoped, tag = 'input window, operand 2, single buffered']
    #allocation3 [shape = 's32[1]{0}', space=sflag, size = 0x4, scoped, tag = 'scoped memory for multimodal_transformer.1']
    #allocation4 [shape = 's32[1]{0}', space=sflag, size = 0x4, scoped, tag = 'scoped memory for multimodal_transformer.1']
    #allocation5 [shape = 'u8[1024]{0}', space=vmem, size = 0x400, scoped, tag = 'input window, operand 3, single buffered']
    #allocation6 [shape = 's32[1]{0}', space=sflag, size = 0x4, scoped, tag = 'scoped memory for multimodal_transformer.1']
    #allocation7 [shape = 'u8[65536]{0}', space=vmem, size = 0x10000, scoped, tag = 'input window, operand 4, single buffered']
    #allocation8 [shape = 'u8[1024]{0}', space=vmem, size = 0x400, scoped, tag = 'input window, operand 5, single buffered']
    #allocation9 [shape = 's32[1]{0}', space=sflag, size = 0x4, scoped, tag = 'scoped memory for multimodal_transformer.1']
    #allocation10 [shape = 'u8[65536]{0}', space=vmem, size = 0x10000, scoped, tag = 'input window, operand 6, single buffered']
    #allocation11 [shape = 'u8[1024]{0}', space=vmem, size = 0x400, scoped, tag = 'input window, operand 7, single buffered']
    #allocation12 [shape = 's32[1]{0}', space=sflag, size = 0x4, scoped, tag = 'scoped memory for multimodal_transformer.1']
    #allocation13 [shape = 'u8[262144]{0}', space=vmem, size = 0x40000, scoped, tag = 'input window, operand 10, single buffered']
    #allocation14 [shape = 'u8[4096]{0}', space=vmem, size = 0x1000, scoped, tag = 'input window, operand 11, single buffered']
    #allocation15 [shape = 's32[1]{0}', space=sflag, size = 0x4, scoped, tag = 'scoped memory for multimodal_transformer.1']
    #allocation16 [shape = 'u8[65536]{0}', space=vmem, size = 0x10000, scoped, tag = 'input window, operand 12, single buffered']
    #allocation17 [shape = 'u8[1024]{0}', space=vmem, size = 0x400, scoped, tag = 'input window, operand 13, single buffered']
    #allocation18 [shape = 's32[1]{0}', space=sflag, size = 0x4, scoped, tag = 'scoped memory for multimodal_transformer.1']
    #allocation19 [shape = 'u8[1024]{0}', space=vmem, size = 0x400, scoped, tag = 'input window, operand 14, single buffered']
    #allocation20 [shape = 'u8[1024]{0}', space=vmem, size = 0x400, scoped, tag = 'input window, operand 15, single buffered']
    #allocation21 [shape = 's32[1]{0}', space=sflag, size = 0x4, scoped, tag = 'scoped memory for multimodal_transformer.1']
    #allocation22 [shape = 'u8[65536]{0}', space=vmem, size = 0x10000, scoped, tag = 'input window, operand 16, single buffered']
    #allocation23 [shape = 'u8[512]{0}', space=vmem, size = 0x400, scoped, tag = 'input window, operand 17, single buffered']
    #allocation24 [shape = 's32[1]{0}', space=sflag, size = 0x4, scoped, tag = 'scoped memory for multimodal_transformer.1']
    #allocation25 [shape = 'u8[65536]{0}', space=vmem, size = 0x10000, scoped, tag = 'input window, operand 18, single buffered']
    #allocation26 [shape = 'u8[16384]{0}', space=vmem, size = 0x4000, scoped, tag = 'output window, operand 0, single buffered']
    #allocation27 [shape = 'u8[16384]{0}', space=vmem, size = 0x4000, scoped, tag = 'output window, operand 1, single buffered']
    #allocation28 [shape = 's32[1]{0}', space=sflag, size = 0x4, scoped, tag = 'scoped memory for multimodal_transformer.1']
    #allocation29 [shape = 'u8[32768]{0}', space=vmem, size = 0x8000, scoped, tag = 'output window, operand 2, single buffered']
    #allocation30 [shape = 'u8[32768]{0}', space=vmem, size = 0x8000, scoped, tag = 'output window, operand 3, single buffered']
    #allocation31 [shape = 's32[1]{0}', space=sflag, size = 0x4, scoped, tag = 'scoped memory for multimodal_transformer.1']
    %29 = vsyncpa [#allocation3], 0
    %30 = vsyncpa [#allocation6], 0
    %31 = vsyncpa [#allocation9], 0
    %32 = vsyncpa [#allocation12], 0
    %33 = vsyncpa [#allocation15], 0
    %34 = vsyncpa [#allocation18], 0
    %35 = vsyncpa [#allocation21], 0
    %36 = vsyncpa [#allocation24], 0
    %37 = vsyncpa [#allocation4], 0
    %38 = vsyncpa [#allocation28], 0
    %39 = vsyncpa [#allocation31], 0
    // Predicated region
    $region2: #{multimodal_transformer.1} parent=1 // pred_check
      _
    $region3: #{multimodal_transformer.1} parent=1 // pred_check_branch
      %41 = sbr.rel (0) target = $region5
    $region4: #{multimodal_transformer.1} parent=1 // pred_region
      _
    $region5: #{multimodal_transformer.1} parent=1 // pred_fallthru
      _
    // Predicated region
    $region6: #{multimodal_transformer.1} parent=1 // pred_check
      _
    $region7: #{multimodal_transformer.1} parent=1 // pred_check_branch
      %43 = sbr.rel (0) target = $region9
    $region8: #{multimodal_transformer.1} parent=1 // pred_region
      _
    $region9: #{multimodal_transformer.1} parent=1 // pred_fallthru
      _
    // Predicated region
    $region10: #{multimodal_transformer.1} parent=1 // pred_check
      _
    $region11: #{multimodal_transformer.1} parent=1 // pred_check_branch
      %45 = sbr.rel (0) target = $region13
    $region12: #{multimodal_transformer.1} parent=1 // pred_region
      %47 = vsyncadd [#allocation3], 0
      %s48 = sshll.u32 %s2, 4
      %s49 = int_to_ptr.hbm [resolvable:$true] %s48
      %s50 = sshll.u32 [#allocation2], 4
      %s51 = int_to_ptr.vmem [resolvable:$true] %s50
      %56 = dma.hbm_to_vmem [thread:$0]  %s49, 16384, %s51, [#allocation3], 128, 128, 8
    $region13: #{multimodal_transformer.1} parent=1 // pred_fallthru
      _
    // Predicated region
    $region14: #{multimodal_transformer.1} parent=1 // pred_check
      _
    $region15: #{multimodal_transformer.1} parent=1 // pred_check_branch
      %58 = sbr.rel (0) target = $region17
    $region16: #{multimodal_transformer.1} parent=1 // pred_region
      %60 = vsyncadd [#allocation6], 0
      %s62 = sshll.u32 %s3, 4
      %s63 = int_to_ptr.hbm [resolvable:$true] %s62
      %s64 = sshll.u32 [#allocation5], 4
      %s65 = int_to_ptr.vmem [resolvable:$true] %s64
      %67 = dma.hbm_to_vmem [thread:$0]  %s63, 32, %s65, [#allocation6]
    $region17: #{multimodal_transformer.1} parent=1 // pred_fallthru
      _
    // Predicated region
    $region18: #{multimodal_transformer.1} parent=1 // pred_check
      _
    $region19: #{multimodal_transformer.1} parent=1 // pred_check_branch
      %69 = sbr.rel (0) target = $region21
    $region20: #{multimodal_transformer.1} parent=1 // pred_region
      %71 = vsyncadd [#allocation6], 0
      %s72 = sshll.u32 %s4, 4
      %s73 = int_to_ptr.hbm [resolvable:$true] %s72
      %s74 = sshll.u32 [#allocation7], 4
      %s75 = int_to_ptr.vmem [resolvable:$true] %s74
      %80 = dma.hbm_to_vmem [thread:$0]  %s73, 2048, %s75, [#allocation6], 128, 128, 8
    $region21: #{multimodal_transformer.1} parent=1 // pred_fallthru
      _
    // Predicated region
    $region22: #{multimodal_transformer.1} parent=1 // pred_check
      _
    $region23: #{multimodal_transformer.1} parent=1 // pred_check_branch
      %82 = sbr.rel (0) target = $region25
    $region24: #{multimodal_transformer.1} parent=1 // pred_region
      %84 = vsyncadd [#allocation9], 0
      %s86 = sshll.u32 %s5, 4
      %s87 = int_to_ptr.hbm [resolvable:$true] %s86
      %s88 = sshll.u32 [#allocation8], 4
      %s89 = int_to_ptr.vmem [resolvable:$true] %s88
      %91 = dma.hbm_to_vmem [thread:$0]  %s87, 32, %s89, [#allocation9]
    $region25: #{multimodal_transformer.1} parent=1 // pred_fallthru
      _
    // Predicated region
    $region26: #{multimodal_transformer.1} parent=1 // pred_check
      _
    $region27: #{multimodal_transformer.1} parent=1 // pred_check_branch
      %93 = sbr.rel (0) target = $region29
    $region28: #{multimodal_transformer.1} parent=1 // pred_region
      %95 = vsyncadd [#allocation9], 0
      %s96 = sshll.u32 %s6, 4
      %s97 = int_to_ptr.hbm [resolvable:$true] %s96
      %s98 = sshll.u32 [#allocation10], 4
      %s99 = int_to_ptr.vmem [resolvable:$true] %s98
      %104 = dma.hbm_to_vmem [thread:$0]  %s97, 2048, %s99, [#allocation9], 128, 128, 8
    $region29: #{multimodal_transformer.1} parent=1 // pred_fallthru
      _
    // Predicated region
    $region30: #{multimodal_transformer.1} parent=1 // pred_check
      _
    $region31: #{multimodal_transformer.1} parent=1 // pred_check_branch
      %106 = sbr.rel (0) target = $region33
    $region32: #{multimodal_transformer.1} parent=1 // pred_region
      %108 = vsyncadd [#allocation12], 0
      %s110 = sshll.u32 %s7, 4
      %s111 = int_to_ptr.hbm [resolvable:$true] %s110
      %s112 = sshll.u32 [#allocation11], 4
      %s113 = int_to_ptr.vmem [resolvable:$true] %s112
      %115 = dma.hbm_to_vmem [thread:$0]  %s111, 32, %s113, [#allocation12]
    $region33: #{multimodal_transformer.1} parent=1 // pred_fallthru
      _
    // Predicated region
    $region34: #{multimodal_transformer.1} parent=1 // pred_check
      _
    $region35: #{multimodal_transformer.1} parent=1 // pred_check_branch
      %117 = sbr.rel (0) target = $region37
    $region36: #{multimodal_transformer.1} parent=1 // pred_region
      _
    $region37: #{multimodal_transformer.1} parent=1 // pred_fallthru
      _
    // Predicated region
    $region38: #{multimodal_transformer.1} parent=1 // pred_check
      _
    $region39: #{multimodal_transformer.1} parent=1 // pred_check_branch
      %119 = sbr.rel (0) target = $region41
    $region40: #{multimodal_transformer.1} parent=1 // pred_region
      _
    $region41: #{multimodal_transformer.1} parent=1 // pred_fallthru
      _
    // Predicated region
    $region42: #{multimodal_transformer.1} parent=1 // pred_check
      _
    $region43: #{multimodal_transformer.1} parent=1 // pred_check_branch
      %121 = sbr.rel (0) target = $region45
    $region44: #{multimodal_transformer.1} parent=1 // pred_region
      %123 = vsyncadd [#allocation12], 0
      %s124 = sshll.u32 %s10, 4
      %s125 = int_to_ptr.hbm [resolvable:$true] %s124
      %s126 = sshll.u32 [#allocation13], 4
      %s127 = int_to_ptr.vmem [resolvable:$true] %s126
      %132 = dma.hbm_to_vmem [thread:$0]  %s125, 8192, %s127, [#allocation12], 512, 512, 32
    $region45: #{multimodal_transformer.1} parent=1 // pred_fallthru
      _
    // Predicated region
    $region46: #{multimodal_transformer.1} parent=1 // pred_check
      _
    $region47: #{multimodal_transformer.1} parent=1 // pred_check_branch
      %134 = sbr.rel (0) target = $region49
    $region48: #{multimodal_transformer.1} parent=1 // pred_region
      %136 = vsyncadd [#allocation15], 0
      %s138 = sshll.u32 %s11, 4
      %s139 = int_to_ptr.hbm [resolvable:$true] %s138
      %s140 = sshll.u32 [#allocation14], 4
      %s141 = int_to_ptr.vmem [resolvable:$true] %s140
      %143 = dma.hbm_to_vmem [thread:$0]  %s139, 128, %s141, [#allocation15]
    $region49: #{multimodal_transformer.1} parent=1 // pred_fallthru
      _
    // Predicated region
    $region50: #{multimodal_transformer.1} parent=1 // pred_check
      _
    $region51: #{multimodal_transformer.1} parent=1 // pred_check_branch
      %145 = sbr.rel (0) target = $region53
    $region52: #{multimodal_transformer.1} parent=1 // pred_region
      %147 = vsyncadd [#allocation15], 0
      %s148 = sshll.u32 %s12, 4
      %s149 = int_to_ptr.hbm [resolvable:$true] %s148
      %s150 = sshll.u32 [#allocation16], 4
      %s151 = int_to_ptr.vmem [resolvable:$true] %s150
      %156 = dma.hbm_to_vmem [thread:$0]  %s149, 2048, %s151, [#allocation15], 128, 128, 8
    $region53: #{multimodal_transformer.1} parent=1 // pred_fallthru
      _
    // Predicated region
    $region54: #{multimodal_transformer.1} parent=1 // pred_check
      _
    $region55: #{multimodal_transformer.1} parent=1 // pred_check_branch
      %158 = sbr.rel (0) target = $region57
    $region56: #{multimodal_transformer.1} parent=1 // pred_region
      %160 = vsyncadd [#allocation18], 0
      %s162 = sshll.u32 %s13, 4
      %s163 = int_to_ptr.hbm [resolvable:$true] %s162
      %s164 = sshll.u32 [#allocation17], 4
      %s165 = int_to_ptr.vmem [resolvable:$true] %s164
      %167 = dma.hbm_to_vmem [thread:$0]  %s163, 32, %s165, [#allocation18]
    $region57: #{multimodal_transformer.1} parent=1 // pred_fallthru
      _
    // Predicated region
    $region58: #{multimodal_transformer.1} parent=1 // pred_check
      _
    $region59: #{multimodal_transformer.1} parent=1 // pred_check_branch
      %169 = sbr.rel (0) target = $region61
    $region60: #{multimodal_transformer.1} parent=1 // pred_region
      %171 = vsyncadd [#allocation18], 0
      %s173 = sshll.u32 %s14, 4
      %s174 = int_to_ptr.hbm [resolvable:$true] %s173
      %s175 = sshll.u32 [#allocation19], 4
      %s176 = int_to_ptr.vmem [resolvable:$true] %s175
      %178 = dma.hbm_to_vmem [thread:$0]  %s174, 32, %s176, [#allocation18]
    $region61: #{multimodal_transformer.1} parent=1 // pred_fallthru
      _
    // Predicated region
    $region62: #{multimodal_transformer.1} parent=1 // pred_check
      _
    $region63: #{multimodal_transformer.1} parent=1 // pred_check_branch
      %180 = sbr.rel (0) target = $region65
    $region64: #{multimodal_transformer.1} parent=1 // pred_region
      %182 = vsyncadd [#allocation21], 0
      %s184 = sshll.u32 %s15, 4
      %s185 = int_to_ptr.hbm [resolvable:$true] %s184
      %s186 = sshll.u32 [#allocation20], 4
      %s187 = int_to_ptr.vmem [resolvable:$true] %s186
      %189 = dma.hbm_to_vmem [thread:$0]  %s185, 32, %s187, [#allocation21]
    $region65: #{multimodal_transformer.1} parent=1 // pred_fallthru
      _
    // Predicated region
    $region66: #{multimodal_transformer.1} parent=1 // pred_check
      _
    $region67: #{multimodal_transformer.1} parent=1 // pred_check_branch
      %191 = sbr.rel (0) target = $region69
    $region68: #{multimodal_transformer.1} parent=1 // pred_region
      %193 = vsyncadd [#allocation21], 0
      %s194 = sshll.u32 %s16, 4
      %s195 = int_to_ptr.hbm [resolvable:$true] %s194
      %s196 = sshll.u32 [#allocation22], 4
      %s197 = int_to_ptr.vmem [resolvable:$true] %s196
      %202 = dma.hbm_to_vmem [thread:$0]  %s195, 2048, %s197, [#allocation21], 64, 64, 4
    $region69: #{multimodal_transformer.1} parent=1 // pred_fallthru
      _
    // Predicated region
    $region70: #{multimodal_transformer.1} parent=1 // pred_check
      _
    $region71: #{multimodal_transformer.1} parent=1 // pred_check_branch
      %204 = sbr.rel (0) target = $region73
    $region72: #{multimodal_transformer.1} parent=1 // pred_region
      %206 = vsyncadd [#allocation24], 0
      %s208 = sshll.u32 %s17, 4
      %s209 = int_to_ptr.hbm [resolvable:$true] %s208
      %s210 = sshll.u32 [#allocation23], 4
      %s211 = int_to_ptr.vmem [resolvable:$true] %s210
      %213 = dma.hbm_to_vmem [thread:$0]  %s209, 16, %s211, [#allocation24]
    $region73: #{multimodal_transformer.1} parent=1 // pred_fallthru
      _
    // Predicated region
    $region74: #{multimodal_transformer.1} parent=1 // pred_check
      _
    $region75: #{multimodal_transformer.1} parent=1 // pred_check_branch
      %215 = sbr.rel (0) target = $region77
    $region76: #{multimodal_transformer.1} parent=1 // pred_region
      %217 = vsyncadd [#allocation24], 0
      %s218 = sshll.u32 %s18, 4
      %s219 = int_to_ptr.hbm [resolvable:$true] %s218
      %s220 = sshll.u32 [#allocation25], 4
      %s221 = int_to_ptr.vmem [resolvable:$true] %s220
      %226 = dma.hbm_to_vmem [thread:$0]  %s219, 2048, %s221, [#allocation24], 128, 128, 8
    $region77: #{multimodal_transformer.1} parent=1 // pred_fallthru
      _
    // Predicated region
    $region78: #{multimodal_transformer.1} parent=1 // pred_check
      _
    $region79: #{multimodal_transformer.1} parent=1 // pred_check_branch
      %228 = sbr.rel (0) target = $region81
    $region80: #{multimodal_transformer.1} parent=1 // pred_region
      %230 = dma.done [#allocation3], 16384
    $region81: #{multimodal_transformer.1} parent=1 // pred_fallthru
      _
    // Predicated region
    $region82: #{multimodal_transformer.1} parent=1 // pred_check
      _
    $region83: #{multimodal_transformer.1} parent=1 // pred_check_branch
      %232 = sbr.rel (0) target = $region85
    $region84: #{multimodal_transformer.1} parent=1 // pred_region
      %234 = dma.done [#allocation6], 32
    $region85: #{multimodal_transformer.1} parent=1 // pred_fallthru
      _
    // Predicated region
    $region86: #{multimodal_transformer.1} parent=1 // pred_check
      _
    $region87: #{multimodal_transformer.1} parent=1 // pred_check_branch
      %236 = sbr.rel (0) target = $region89
    $region88: #{multimodal_transformer.1} parent=1 // pred_region
      %238 = dma.done [#allocation6], 2048
    $region89: #{multimodal_transformer.1} parent=1 // pred_fallthru
      _
    // Predicated region
    $region90: #{multimodal_transformer.1} parent=1 // pred_check
      _
    $region91: #{multimodal_transformer.1} parent=1 // pred_check_branch
      %240 = sbr.rel (0) target = $region93
    $region92: #{multimodal_transformer.1} parent=1 // pred_region
      %242 = dma.done [#allocation9], 32
    $region93: #{multimodal_transformer.1} parent=1 // pred_fallthru
      _
    // Predicated region
    $region94: #{multimodal_transformer.1} parent=1 // pred_check
      _
    $region95: #{multimodal_transformer.1} parent=1 // pred_check_branch
      %244 = sbr.rel (0) target = $region97
    $region96: #{multimodal_transformer.1} parent=1 // pred_region
      %246 = dma.done [#allocation9], 2048
    $region97: #{multimodal_transformer.1} parent=1 // pred_fallthru
      _
    // Predicated region
    $region98: #{multimodal_transformer.1} parent=1 // pred_check
      _
    $region99: #{multimodal_transformer.1} parent=1 // pred_check_branch
      %248 = sbr.rel (0) target = $region101
    $region100: #{multimodal_transformer.1} parent=1 // pred_region
      %250 = dma.done [#allocation12], 32
    $region101: #{multimodal_transformer.1} parent=1 // pred_fallthru
      _
    // Predicated region
    $region102: #{multimodal_transformer.1} parent=1 // pred_check
      _
    $region103: #{multimodal_transformer.1} parent=1 // pred_check_branch
      %252 = sbr.rel (0) target = $region105
    $region104: #{multimodal_transformer.1} parent=1 // pred_region
      %254 = dma.done [#allocation12], 8192
    $region105: #{multimodal_transformer.1} parent=1 // pred_fallthru
      _
    // Predicated region
    $region106: #{multimodal_transformer.1} parent=1 // pred_check
      _
    $region107: #{multimodal_transformer.1} parent=1 // pred_check_branch
      %256 = sbr.rel (0) target = $region109
    $region108: #{multimodal_transformer.1} parent=1 // pred_region
      %258 = dma.done [#allocation15], 128
    $region109: #{multimodal_transformer.1} parent=1 // pred_fallthru
      _
    // Predicated region
    $region110: #{multimodal_transformer.1} parent=1 // pred_check
      _
    $region111: #{multimodal_transformer.1} parent=1 // pred_check_branch
      %260 = sbr.rel (0) target = $region113
    $region112: #{multimodal_transformer.1} parent=1 // pred_region
      %262 = dma.done [#allocation15], 2048
    $region113: #{multimodal_transformer.1} parent=1 // pred_fallthru
      _
    // Predicated region
    $region114: #{multimodal_transformer.1} parent=1 // pred_check
      _
    $region115: #{multimodal_transformer.1} parent=1 // pred_check_branch
      %264 = sbr.rel (0) target = $region117
    $region116: #{multimodal_transformer.1} parent=1 // pred_region
      %266 = dma.done [#allocation18], 32
    $region117: #{multimodal_transformer.1} parent=1 // pred_fallthru
      _
    // Predicated region
    $region118: #{multimodal_transformer.1} parent=1 // pred_check
      _
    $region119: #{multimodal_transformer.1} parent=1 // pred_check_branch
      %268 = sbr.rel (0) target = $region121
    $region120: #{multimodal_transformer.1} parent=1 // pred_region
      %270 = dma.done [#allocation18], 32
    $region121: #{multimodal_transformer.1} parent=1 // pred_fallthru
      _
    // Predicated region
    $region122: #{multimodal_transformer.1} parent=1 // pred_check
      _
    $region123: #{multimodal_transformer.1} parent=1 // pred_check_branch
      %272 = sbr.rel (0) target = $region125
    $region124: #{multimodal_transformer.1} parent=1 // pred_region
      %274 = dma.done [#allocation21], 32
    $region125: #{multimodal_transformer.1} parent=1 // pred_fallthru
      _
    // Predicated region
    $region126: #{multimodal_transformer.1} parent=1 // pred_check
      _
    $region127: #{multimodal_transformer.1} parent=1 // pred_check_branch
      %276 = sbr.rel (0) target = $region129
    $region128: #{multimodal_transformer.1} parent=1 // pred_region
      %278 = dma.done [#allocation21], 2048
    $region129: #{multimodal_transformer.1} parent=1 // pred_fallthru
      _
    // Predicated region
    $region130: #{multimodal_transformer.1} parent=1 // pred_check
      _
    $region131: #{multimodal_transformer.1} parent=1 // pred_check_branch
      %280 = sbr.rel (0) target = $region133
    $region132: #{multimodal_transformer.1} parent=1 // pred_region
      %282 = dma.done [#allocation24], 16
    $region133: #{multimodal_transformer.1} parent=1 // pred_fallthru
      _
    // Predicated region
    $region134: #{multimodal_transformer.1} parent=1 // pred_check
      _
    $region135: #{multimodal_transformer.1} parent=1 // pred_check_branch
      %284 = sbr.rel (0) target = $region137
    $region136: #{multimodal_transformer.1} parent=1 // pred_region
      %286 = dma.done [#allocation24], 2048
    $region137: #{multimodal_transformer.1} parent=1 // pred_fallthru
      _
    %v287 = vld [vmem:[%s0] sm:$0xff]
    %v288 = vld [vmem:[%s0 + $0x8] sm:$0xff]
    %v289 = vld [vmem:[%s0 + $0x10] sm:$0xff]
    %v290 = vld [vmem:[%s0 + $0x18] sm:$0xff]
    %v291 = vld [vmem:[%s0 + $0x20] sm:$0xff]
    %v292 = vld [vmem:[%s0 + $0x28] sm:$0xff]
    %v293 = vld [vmem:[%s0 + $0x30] sm:$0xff]
    %v294 = vld [vmem:[%s0 + $0x38] sm:$0xff]
    %v295 = vld [vmem:[%s0 + $0x40] sm:$0xff]
    %v296 = vld [vmem:[%s0 + $0x48] sm:$0xff]
    %v297 = vld [vmem:[%s0 + $0x50] sm:$0xff]
    %v298 = vld [vmem:[%s0 + $0x58] sm:$0xff]
    %v299 = vld [vmem:[%s0 + $0x60] sm:$0xff]
    %v300 = vld [vmem:[%s0 + $0x68] sm:$0xff]
    %v301 = vld [vmem:[%s0 + $0x70] sm:$0xff]
    %v302 = vld [vmem:[%s0 + $0x78] sm:$0xff]
    %v303 = vld [vmem:[%s1] sm:$0xff]
    %v304 = vld [vmem:[%s1 + $0x8] sm:$0xff]
    %v305 = vld [vmem:[%s1 + $0x10] sm:$0xff]
    %v306 = vld [vmem:[%s1 + $0x18] sm:$0xff]
    %v307 = vld [vmem:[%s1 + $0x20] sm:$0xff]
    %v308 = vld [vmem:[%s1 + $0x28] sm:$0xff]
    %v309 = vld [vmem:[%s1 + $0x30] sm:$0xff]
    %v310 = vld [vmem:[%s1 + $0x38] sm:$0xff]
    %v311 = vld [vmem:[%s1 + $0x40] sm:$0xff]
    %v312 = vld [vmem:[%s1 + $0x48] sm:$0xff]
    %v313 = vld [vmem:[%s1 + $0x50] sm:$0xff]
    %v314 = vld [vmem:[%s1 + $0x58] sm:$0xff]
    %v315 = vld [vmem:[%s1 + $0x60] sm:$0xff]
    %v316 = vld [vmem:[%s1 + $0x68] sm:$0xff]
    %v317 = vld [vmem:[%s1 + $0x70] sm:$0xff]
    %v318 = vld [vmem:[%s1 + $0x78] sm:$0xff]
    %v335 = vunpack.c.l.b16 %v287
    %v336 = vunpack.c.h.b16 %v287
    %v337 = vunpack.c.l.b16 %v288
    %v338 = vunpack.c.h.b16 %v288
    %v339 = vunpack.c.l.b16 %v289
    %v340 = vunpack.c.h.b16 %v289
    %v341 = vunpack.c.l.b16 %v290
    %v342 = vunpack.c.h.b16 %v290
    %v343 = vunpack.c.l.b16 %v291
    %v344 = vunpack.c.h.b16 %v291
    %v345 = vunpack.c.l.b16 %v292
    %v346 = vunpack.c.h.b16 %v292
    %v347 = vunpack.c.l.b16 %v293
    %v348 = vunpack.c.h.b16 %v293
    %v349 = vunpack.c.l.b16 %v294
    %v350 = vunpack.c.h.b16 %v294
    %v351 = vunpack.c.l.b16 %v295
    %v352 = vunpack.c.h.b16 %v295
    %v353 = vunpack.c.l.b16 %v296
    %v354 = vunpack.c.h.b16 %v296
    %v355 = vunpack.c.l.b16 %v297
    %v356 = vunpack.c.h.b16 %v297
    %v357 = vunpack.c.l.b16 %v298
    %v358 = vunpack.c.h.b16 %v298
    %v359 = vunpack.c.l.b16 %v299
    %v360 = vunpack.c.h.b16 %v299
    %v361 = vunpack.c.l.b16 %v300
    %v362 = vunpack.c.h.b16 %v300
    %v363 = vunpack.c.l.b16 %v301
    %v364 = vunpack.c.h.b16 %v301
    %v365 = vunpack.c.l.b16 %v302
    %v366 = vunpack.c.h.b16 %v302
    %v367 = vpack.c.b16 %v343, %v335
    %v368 = vpack.c.b16 %v344, %v336
    %v369 = vpack.c.b16 %v345, %v337
    %v370 = vpack.c.b16 %v346, %v338
    %v371 = vpack.c.b16 %v347, %v339
    %v372 = vpack.c.b16 %v348, %v340
    %v373 = vpack.c.b16 %v349, %v341
    %v374 = vpack.c.b16 %v350, %v342
    %v375 = vpack.c.b16 %v359, %v351
    %v376 = vpack.c.b16 %v360, %v352
    %v377 = vpack.c.b16 %v361, %v353
    %v378 = vpack.c.b16 %v362, %v354
    %v379 = vpack.c.b16 %v363, %v355
    %v380 = vpack.c.b16 %v364, %v356
    %v381 = vpack.c.b16 %v365, %v357
    %v382 = vpack.c.b16 %v366, %v358
    %v415 = vunpack.c.l.b16 %v303
    %v416 = vunpack.c.h.b16 %v303
    %v417 = vunpack.c.l.b16 %v304
    %v418 = vunpack.c.h.b16 %v304
    %v419 = vunpack.c.l.b16 %v305
    %v420 = vunpack.c.h.b16 %v305
    %v421 = vunpack.c.l.b16 %v306
    %v422 = vunpack.c.h.b16 %v306
    %v423 = vunpack.c.l.b16 %v307
    %v424 = vunpack.c.h.b16 %v307
    %v425 = vunpack.c.l.b16 %v308
    %v426 = vunpack.c.h.b16 %v308
    %v427 = vunpack.c.l.b16 %v309
    %v428 = vunpack.c.h.b16 %v309
    %v429 = vunpack.c.l.b16 %v310
    %v430 = vunpack.c.h.b16 %v310
    %v431 = vunpack.c.l.b16 %v311
    %v432 = vunpack.c.h.b16 %v311
    %v433 = vunpack.c.l.b16 %v312
    %v434 = vunpack.c.h.b16 %v312
    %v435 = vunpack.c.l.b16 %v313
    %v436 = vunpack.c.h.b16 %v313
    %v437 = vunpack.c.l.b16 %v314
    %v438 = vunpack.c.h.b16 %v314
    %v439 = vunpack.c.l.b16 %v315
    %v440 = vunpack.c.h.b16 %v315
    %v441 = vunpack.c.l.b16 %v316
    %v442 = vunpack.c.h.b16 %v316
    %v443 = vunpack.c.l.b16 %v317
    %v444 = vunpack.c.h.b16 %v317
    %v445 = vunpack.c.l.b16 %v318
    %v446 = vunpack.c.h.b16 %v318
    %v447 = vpack.c.b16 %v423, %v415
    %v448 = vpack.c.b16 %v424, %v416
    %v449 = vpack.c.b16 %v425, %v417
    %v450 = vpack.c.b16 %v426, %v418
    %v451 = vpack.c.b16 %v427, %v419
    %v452 = vpack.c.b16 %v428, %v420
    %v453 = vpack.c.b16 %v429, %v421
    %v454 = vpack.c.b16 %v430, %v422
    %v455 = vpack.c.b16 %v439, %v431
    %v456 = vpack.c.b16 %v440, %v432
    %v457 = vpack.c.b16 %v441, %v433
    %v458 = vpack.c.b16 %v442, %v434
    %v459 = vpack.c.b16 %v443, %v435
    %v460 = vpack.c.b16 %v444, %v436
    %v461 = vpack.c.b16 %v445, %v437
    %v462 = vpack.c.b16 %v446, %v438
    %v479 = vld [vmem:[#allocation2] sm:$0xff]
    %v480 = vld [vmem:[#allocation2 + $0x8] sm:$0xff]
    %v481 = vld [vmem:[#allocation2 + $0x10] sm:$0xff]
    %v482 = vld [vmem:[#allocation2 + $0x18] sm:$0xff]
    %v483 = vld [vmem:[#allocation2 + $0x20] sm:$0xff]
    %v484 = vld [vmem:[#allocation2 + $0x28] sm:$0xff]
    %v485 = vld [vmem:[#allocation2 + $0x30] sm:$0xff]
    %v486 = vld [vmem:[#allocation2 + $0x38] sm:$0xff]
    %v487 = vld [vmem:[#allocation2 + $0x40] sm:$0xff]
    %v488 = vld [vmem:[#allocation2 + $0x48] sm:$0xff]
    %v489 = vld [vmem:[#allocation2 + $0x50] sm:$0xff]
    %v490 = vld [vmem:[#allocation2 + $0x58] sm:$0xff]
    %v491 = vld [vmem:[#allocation2 + $0x60] sm:$0xff]
    %v492 = vld [vmem:[#allocation2 + $0x68] sm:$0xff]
    %v493 = vld [vmem:[#allocation2 + $0x70] sm:$0xff]
    %v494 = vld [vmem:[#allocation2 + $0x78] sm:$0xff]
    %v495 = vld [vmem:[#allocation2 + $0x80] sm:$0xff]
    %v496 = vld [vmem:[#allocation2 + $0x88] sm:$0xff]
    %v497 = vld [vmem:[#allocation2 + $0x90] sm:$0xff]
    %v498 = vld [vmem:[#allocation2 + $0x98] sm:$0xff]
    %v499 = vld [vmem:[#allocation2 + $0xa0] sm:$0xff]
    %v500 = vld [vmem:[#allocation2 + $0xa8] sm:$0xff]
    %v501 = vld [vmem:[#allocation2 + $0xb0] sm:$0xff]
    %v502 = vld [vmem:[#allocation2 + $0xb8] sm:$0xff]
    %v503 = vld [vmem:[#allocation2 + $0xc0] sm:$0xff]
    %v504 = vld [vmem:[#allocation2 + $0xc8] sm:$0xff]
    %v505 = vld [vmem:[#allocation2 + $0xd0] sm:$0xff]
    %v506 = vld [vmem:[#allocation2 + $0xd8] sm:$0xff]
    %v507 = vld [vmem:[#allocation2 + $0xe0] sm:$0xff]
    %v508 = vld [vmem:[#allocation2 + $0xe8] sm:$0xff]
    %v509 = vld [vmem:[#allocation2 + $0xf0] sm:$0xff]
    %v510 = vld [vmem:[#allocation2 + $0xf8] sm:$0xff]
    %v511 = vld [vmem:[#allocation2 + $0x100] sm:$0xff]
    %v512 = vld [vmem:[#allocation2 + $0x108] sm:$0xff]
    %v513 = vld [vmem:[#allocation2 + $0x110] sm:$0xff]
    %v514 = vld [vmem:[#allocation2 + $0x118] sm:$0xff]
    %v515 = vld [vmem:[#allocation2 + $0x120] sm:$0xff]
    %v516 = vld [vmem:[#allocation2 + $0x128] sm:$0xff]
    %v517 = vld [vmem:[#allocation2 + $0x130] sm:$0xff]
    %v518 = vld [vmem:[#allocation2 + $0x138] sm:$0xff]
    %v519 = vld [vmem:[#allocation2 + $0x140] sm:$0xff]
    %v520 = vld [vmem:[#allocation2 + $0x148] sm:$0xff]
    %v521 = vld [vmem:[#allocation2 + $0x150] sm:$0xff]
    %v522 = vld [vmem:[#allocation2 + $0x158] sm:$0xff]
    %v523 = vld [vmem:[#allocation2 + $0x160] sm:$0xff]
    %v524 = vld [vmem:[#allocation2 + $0x168] sm:$0xff]
    %v525 = vld [vmem:[#allocation2 + $0x170] sm:$0xff]
    %v526 = vld [vmem:[#allocation2 + $0x178] sm:$0xff]
    %v527 = vld [vmem:[#allocation2 + $0x180] sm:$0xff]
    %v528 = vld [vmem:[#allocation2 + $0x188] sm:$0xff]
    %v529 = vld [vmem:[#allocation2 + $0x190] sm:$0xff]
    %v530 = vld [vmem:[#allocation2 + $0x198] sm:$0xff]
    %v531 = vld [vmem:[#allocation2 + $0x1a0] sm:$0xff]
    %v532 = vld [vmem:[#allocation2 + $0x1a8] sm:$0xff]
    %v533 = vld [vmem:[#allocation2 + $0x1b0] sm:$0xff]
    %v534 = vld [vmem:[#allocation2 + $0x1b8] sm:$0xff]
    %v535 = vld [vmem:[#allocation2 + $0x1c0] sm:$0xff]
    %v536 = vld [vmem:[#allocation2 + $0x1c8] sm:$0xff]
    %v537 = vld [vmem:[#allocation2 + $0x1d0] sm:$0xff]
    %v538 = vld [vmem:[#allocation2 + $0x1d8] sm:$0xff]
    %v539 = vld [vmem:[#allocation2 + $0x1e0] sm:$0xff]
    %v540 = vld [vmem:[#allocation2 + $0x1e8] sm:$0xff]
    %v541 = vld [vmem:[#allocation2 + $0x1f0] sm:$0xff]
    %v542 = vld [vmem:[#allocation2 + $0x1f8] sm:$0xff]
    %v543 = vld [vmem:[#allocation2 + $0x200] sm:$0xff]
    %v544 = vld [vmem:[#allocation2 + $0x208] sm:$0xff]
    %v545 = vld [vmem:[#allocation2 + $0x210] sm:$0xff]
    %v546 = vld [vmem:[#allocation2 + $0x218] sm:$0xff]
    %v547 = vld [vmem:[#allocation2 + $0x220] sm:$0xff]
    %v548 = vld [vmem:[#allocation2 + $0x228] sm:$0xff]
    %v549 = vld [vmem:[#allocation2 + $0x230] sm:$0xff]
    %v550 = vld [vmem:[#allocation2 + $0x238] sm:$0xff]
    %v551 = vld [vmem:[#allocation2 + $0x240] sm:$0xff]
    %v552 = vld [vmem:[#allocation2 + $0x248] sm:$0xff]
    %v553 = vld [vmem:[#allocation2 + $0x250] sm:$0xff]
    %v554 = vld [vmem:[#allocation2 + $0x258] sm:$0xff]
    %v555 = vld [vmem:[#allocation2 + $0x260] sm:$0xff]
    %v556 = vld [vmem:[#allocation2 + $0x268] sm:$0xff]
    %v557 = vld [vmem:[#allocation2 + $0x270] sm:$0xff]
    %v558 = vld [vmem:[#allocation2 + $0x278] sm:$0xff]
    %v559 = vld [vmem:[#allocation2 + $0x280] sm:$0xff]
    %v560 = vld [vmem:[#allocation2 + $0x288] sm:$0xff]
    %v561 = vld [vmem:[#allocation2 + $0x290] sm:$0xff]
    %v562 = vld [vmem:[#allocation2 + $0x298] sm:$0xff]
    %v563 = vld [vmem:[#allocation2 + $0x2a0] sm:$0xff]
    %v564 = vld [vmem:[#allocation2 + $0x2a8] sm:$0xff]
    %v565 = vld [vmem:[#allocation2 + $0x2b0] sm:$0xff]
    %v566 = vld [vmem:[#allocation2 + $0x2b8] sm:$0xff]
    %v567 = vld [vmem:[#allocation2 + $0x2c0] sm:$0xff]
    %v568 = vld [vmem:[#allocation2 + $0x2c8] sm:$0xff]
    %v569 = vld [vmem:[#allocation2 + $0x2d0] sm:$0xff]
    %v570 = vld [vmem:[#allocation2 + $0x2d8] sm:$0xff]
    %v571 = vld [vmem:[#allocation2 + $0x2e0] sm:$0xff]
    %v572 = vld [vmem:[#allocation2 + $0x2e8] sm:$0xff]
    %v573 = vld [vmem:[#allocation2 + $0x2f0] sm:$0xff]
    %v574 = vld [vmem:[#allocation2 + $0x2f8] sm:$0xff]
    %v575 = vld [vmem:[#allocation2 + $0x300] sm:$0xff]
    %v576 = vld [vmem:[#allocation2 + $0x308] sm:$0xff]
    %v577 = vld [vmem:[#allocation2 + $0x310] sm:$0xff]
    %v578 = vld [vmem:[#allocation2 + $0x318] sm:$0xff]
    %v579 = vld [vmem:[#allocation2 + $0x320] sm:$0xff]
    %v580 = vld [vmem:[#allocation2 + $0x328] sm:$0xff]
    %v581 = vld [vmem:[#allocation2 + $0x330] sm:$0xff]
    %v582 = vld [vmem:[#allocation2 + $0x338] sm:$0xff]
    %v583 = vld [vmem:[#allocation2 + $0x340] sm:$0xff]
    %v584 = vld [vmem:[#allocation2 + $0x348] sm:$0xff]
    %v585 = vld [vmem:[#allocation2 + $0x350] sm:$0xff]
    %v586 = vld [vmem:[#allocation2 + $0x358] sm:$0xff]
    %v587 = vld [vmem:[#allocation2 + $0x360] sm:$0xff]
    %v588 = vld [vmem:[#allocation2 + $0x368] sm:$0xff]
    %v589 = vld [vmem:[#allocation2 + $0x370] sm:$0xff]
    %v590 = vld [vmem:[#allocation2 + $0x378] sm:$0xff]
    %v591 = vld [vmem:[#allocation2 + $0x380] sm:$0xff]
    %v592 = vld [vmem:[#allocation2 + $0x388] sm:$0xff]
    %v593 = vld [vmem:[#allocation2 + $0x390] sm:$0xff]
    %v594 = vld [vmem:[#allocation2 + $0x398] sm:$0xff]
    %v595 = vld [vmem:[#allocation2 + $0x3a0] sm:$0xff]
    %v596 = vld [vmem:[#allocation2 + $0x3a8] sm:$0xff]
    %v597 = vld [vmem:[#allocation2 + $0x3b0] sm:$0xff]
    %v598 = vld [vmem:[#allocation2 + $0x3b8] sm:$0xff]
    %v599 = vld [vmem:[#allocation2 + $0x3c0] sm:$0xff]
    %v600 = vld [vmem:[#allocation2 + $0x3c8] sm:$0xff]
    %v601 = vld [vmem:[#allocation2 + $0x3d0] sm:$0xff]
    %v602 = vld [vmem:[#allocation2 + $0x3d8] sm:$0xff]
    %v603 = vld [vmem:[#allocation2 + $0x3e0] sm:$0xff]
    %v604 = vld [vmem:[#allocation2 + $0x3e8] sm:$0xff]
    %v605 = vld [vmem:[#allocation2 + $0x3f0] sm:$0xff]
    %v606 = vld [vmem:[#allocation2 + $0x3f8] sm:$0xff]
    %v607 = vld [vmem:[#allocation5] sm:$0x3]
    %v609 = vperm.slane %v607, 0
    %v610 = vperm.slane %v607, 1
    %v741 = vunpack.c.l.b16 %v479
    %v742 = vunpack.c.h.b16 %v479
    %v743 = vunpack.c.l.b16 %v480
    %v744 = vunpack.c.h.b16 %v480
    %v745 = vunpack.c.l.b16 %v481
    %v746 = vunpack.c.h.b16 %v481
    %v747 = vunpack.c.l.b16 %v482
    %v748 = vunpack.c.h.b16 %v482
    %v749 = vunpack.c.l.b16 %v483
    %v750 = vunpack.c.h.b16 %v483
    %v751 = vunpack.c.l.b16 %v484
    %v752 = vunpack.c.h.b16 %v484
    %v753 = vunpack.c.l.b16 %v485
    %v754 = vunpack.c.h.b16 %v485
    %v755 = vunpack.c.l.b16 %v486
    %v756 = vunpack.c.h.b16 %v486
    %v757 = vunpack.c.l.b16 %v487
    %v758 = vunpack.c.h.b16 %v487
    %v759 = vunpack.c.l.b16 %v488
    %v760 = vunpack.c.h.b16 %v488
    %v761 = vunpack.c.l.b16 %v489
    %v762 = vunpack.c.h.b16 %v489
    %v763 = vunpack.c.l.b16 %v490
    %v764 = vunpack.c.h.b16 %v490
    %v765 = vunpack.c.l.b16 %v491
    %v766 = vunpack.c.h.b16 %v491
    %v767 = vunpack.c.l.b16 %v492
    %v768 = vunpack.c.h.b16 %v492
    %v769 = vunpack.c.l.b16 %v493
    %v770 = vunpack.c.h.b16 %v493
    %v771 = vunpack.c.l.b16 %v494
    %v772 = vunpack.c.h.b16 %v494
    %v773 = vunpack.c.l.b16 %v495
    %v774 = vunpack.c.h.b16 %v495
    %v775 = vunpack.c.l.b16 %v496
    %v776 = vunpack.c.h.b16 %v496
    %v777 = vunpack.c.l.b16 %v497
    %v778 = vunpack.c.h.b16 %v497
    %v779 = vunpack.c.l.b16 %v498
    %v780 = vunpack.c.h.b16 %v498
    %v781 = vunpack.c.l.b16 %v499
    %v782 = vunpack.c.h.b16 %v499
    %v783 = vunpack.c.l.b16 %v500
    %v784 = vunpack.c.h.b16 %v500
    %v785 = vunpack.c.l.b16 %v501
    %v786 = vunpack.c.h.b16 %v501
    %v787 = vunpack.c.l.b16 %v502
    %v788 = vunpack.c.h.b16 %v502
    %v789 = vunpack.c.l.b16 %v503
    %v790 = vunpack.c.h.b16 %v503
    %v791 = vunpack.c.l.b16 %v504
    %v792 = vunpack.c.h.b16 %v504
    %v793 = vunpack.c.l.b16 %v505
    %v794 = vunpack.c.h.b16 %v505
    %v795 = vunpack.c.l.b16 %v506
    %v796 = vunpack.c.h.b16 %v506
    %v797 = vunpack.c.l.b16 %v507
    %v798 = vunpack.c.h.b16 %v507
    %v799 = vunpack.c.l.b16 %v508
    %v800 = vunpack.c.h.b16 %v508
    %v801 = vunpack.c.l.b16 %v509
    %v802 = vunpack.c.h.b16 %v509
    %v803 = vunpack.c.l.b16 %v510
    %v804 = vunpack.c.h.b16 %v510
    %v805 = vunpack.c.l.b16 %v511
    %v806 = vunpack.c.h.b16 %v511
    %v807 = vunpack.c.l.b16 %v512
    %v808 = vunpack.c.h.b16 %v512
    %v809 = vunpack.c.l.b16 %v513
    %v810 = vunpack.c.h.b16 %v513
    %v811 = vunpack.c.l.b16 %v514
    %v812 = vunpack.c.h.b16 %v514
    %v813 = vunpack.c.l.b16 %v515
    %v814 = vunpack.c.h.b16 %v515
    %v815 = vunpack.c.l.b16 %v516
    %v816 = vunpack.c.h.b16 %v516
    %v817 = vunpack.c.l.b16 %v517
    %v818 = vunpack.c.h.b16 %v517
    %v819 = vunpack.c.l.b16 %v518
    %v820 = vunpack.c.h.b16 %v518
    %v821 = vunpack.c.l.b16 %v519
    %v822 = vunpack.c.h.b16 %v519
    %v823 = vunpack.c.l.b16 %v520
    %v824 = vunpack.c.h.b16 %v520
    %v825 = vunpack.c.l.b16 %v521
    %v826 = vunpack.c.h.b16 %v521
    %v827 = vunpack.c.l.b16 %v522
    %v828 = vunpack.c.h.b16 %v522
    %v829 = vunpack.c.l.b16 %v523
    %v830 = vunpack.c.h.b16 %v523
    %v831 = vunpack.c.l.b16 %v524
    %v832 = vunpack.c.h.b16 %v524
    %v833 = vunpack.c.l.b16 %v525
    %v834 = vunpack.c.h.b16 %v525
    %v835 = vunpack.c.l.b16 %v526
    %v836 = vunpack.c.h.b16 %v526
    %v837 = vunpack.c.l.b16 %v527
    %v838 = vunpack.c.h.b16 %v527
    %v839 = vunpack.c.l.b16 %v528
    %v840 = vunpack.c.h.b16 %v528
    %v841 = vunpack.c.l.b16 %v529
    %v842 = vunpack.c.h.b16 %v529
    %v843 = vunpack.c.l.b16 %v530
    %v844 = vunpack.c.h.b16 %v530
    %v845 = vunpack.c.l.b16 %v531
    %v846 = vunpack.c.h.b16 %v531
    %v847 = vunpack.c.l.b16 %v532
    %v848 = vunpack.c.h.b16 %v532
    %v849 = vunpack.c.l.b16 %v533
    %v850 = vunpack.c.h.b16 %v533
    %v851 = vunpack.c.l.b16 %v534
    %v852 = vunpack.c.h.b16 %v534
    %v853 = vunpack.c.l.b16 %v535
    %v854 = vunpack.c.h.b16 %v535
    %v855 = vunpack.c.l.b16 %v536
    %v856 = vunpack.c.h.b16 %v536
    %v857 = vunpack.c.l.b16 %v537
    %v858 = vunpack.c.h.b16 %v537
    %v859 = vunpack.c.l.b16 %v538
    %v860 = vunpack.c.h.b16 %v538
    %v861 = vunpack.c.l.b16 %v539
    %v862 = vunpack.c.h.b16 %v539
    %v863 = vunpack.c.l.b16 %v540
    %v864 = vunpack.c.h.b16 %v540
    %v865 = vunpack.c.l.b16 %v541
    %v866 = vunpack.c.h.b16 %v541
    %v867 = vunpack.c.l.b16 %v542
    %v868 = vunpack.c.h.b16 %v542
    %v869 = vunpack.c.l.b16 %v543
    %v870 = vunpack.c.h.b16 %v543
    %v871 = vunpack.c.l.b16 %v544
    %v872 = vunpack.c.h.b16 %v544
    %v873 = vunpack.c.l.b16 %v545
    %v874 = vunpack.c.h.b16 %v545
    %v875 = vunpack.c.l.b16 %v546
    %v876 = vunpack.c.h.b16 %v546
    %v877 = vunpack.c.l.b16 %v547
    %v878 = vunpack.c.h.b16 %v547
    %v879 = vunpack.c.l.b16 %v548
    %v880 = vunpack.c.h.b16 %v548
    %v881 = vunpack.c.l.b16 %v549
    %v882 = vunpack.c.h.b16 %v549
    %v883 = vunpack.c.l.b16 %v550
    %v884 = vunpack.c.h.b16 %v550
    %v885 = vunpack.c.l.b16 %v551
    %v886 = vunpack.c.h.b16 %v551
    %v887 = vunpack.c.l.b16 %v552
    %v888 = vunpack.c.h.b16 %v552
    %v889 = vunpack.c.l.b16 %v553
    %v890 = vunpack.c.h.b16 %v553
    %v891 = vunpack.c.l.b16 %v554
    %v892 = vunpack.c.h.b16 %v554
    %v893 = vunpack.c.l.b16 %v555
    %v894 = vunpack.c.h.b16 %v555
    %v895 = vunpack.c.l.b16 %v556
    %v896 = vunpack.c.h.b16 %v556
    %v897 = vunpack.c.l.b16 %v557
    %v898 = vunpack.c.h.b16 %v557
    %v899 = vunpack.c.l.b16 %v558
    %v900 = vunpack.c.h.b16 %v558
    %v901 = vunpack.c.l.b16 %v559
    %v902 = vunpack.c.h.b16 %v559
    %v903 = vunpack.c.l.b16 %v560
    %v904 = vunpack.c.h.b16 %v560
    %v905 = vunpack.c.l.b16 %v561
    %v906 = vunpack.c.h.b16 %v561
    %v907 = vunpack.c.l.b16 %v562
    %v908 = vunpack.c.h.b16 %v562
    %v909 = vunpack.c.l.b16 %v563
    %v910 = vunpack.c.h.b16 %v563
    %v911 = vunpack.c.l.b16 %v564
    %v912 = vunpack.c.h.b16 %v564
    %v913 = vunpack.c.l.b16 %v565
    %v914 = vunpack.c.h.b16 %v565
    %v915 = vunpack.c.l.b16 %v566
    %v916 = vunpack.c.h.b16 %v566
    %v917 = vunpack.c.l.b16 %v567
    %v918 = vunpack.c.h.b16 %v567
    %v919 = vunpack.c.l.b16 %v568
    %v920 = vunpack.c.h.b16 %v568
    %v921 = vunpack.c.l.b16 %v569
    %v922 = vunpack.c.h.b16 %v569
    %v923 = vunpack.c.l.b16 %v570
    %v924 = vunpack.c.h.b16 %v570
    %v925 = vunpack.c.l.b16 %v571
    %v926 = vunpack.c.h.b16 %v571
    %v927 = vunpack.c.l.b16 %v572
    %v928 = vunpack.c.h.b16 %v572
    %v929 = vunpack.c.l.b16 %v573
    %v930 = vunpack.c.h.b16 %v573
    %v931 = vunpack.c.l.b16 %v574
    %v932 = vunpack.c.h.b16 %v574
    %v933 = vunpack.c.l.b16 %v575
    %v934 = vunpack.c.h.b16 %v575
    %v935 = vunpack.c.l.b16 %v576
    %v936 = vunpack.c.h.b16 %v576
    %v937 = vunpack.c.l.b16 %v577
    %v938 = vunpack.c.h.b16 %v577
    %v939 = vunpack.c.l.b16 %v578
    %v940 = vunpack.c.h.b16 %v578
    %v941 = vunpack.c.l.b16 %v579
    %v942 = vunpack.c.h.b16 %v579
    %v943 = vunpack.c.l.b16 %v580
    %v944 = vunpack.c.h.b16 %v580
    %v945 = vunpack.c.l.b16 %v581
    %v946 = vunpack.c.h.b16 %v581
    %v947 = vunpack.c.l.b16 %v582
    %v948 = vunpack.c.h.b16 %v582
    %v949 = vunpack.c.l.b16 %v583
    %v950 = vunpack.c.h.b16 %v583
    %v951 = vunpack.c.l.b16 %v584
    %v952 = vunpack.c.h.b16 %v584
    %v953 = vunpack.c.l.b16 %v585
    %v954 = vunpack.c.h.b16 %v585
    %v955 = vunpack.c.l.b16 %v586
    %v956 = vunpack.c.h.b16 %v586
    %v957 = vunpack.c.l.b16 %v587
    %v958 = vunpack.c.h.b16 %v587
    %v959 = vunpack.c.l.b16 %v588
    %v960 = vunpack.c.h.b16 %v588
    %v961 = vunpack.c.l.b16 %v589
    %v962 = vunpack.c.h.b16 %v589
    %v963 = vunpack.c.l.b16 %v590
    %v964 = vunpack.c.h.b16 %v590
    %v965 = vunpack.c.l.b16 %v591
    %v966 = vunpack.c.h.b16 %v591
    %v967 = vunpack.c.l.b16 %v592
    %v968 = vunpack.c.h.b16 %v592
    %v969 = vunpack.c.l.b16 %v593
    %v970 = vunpack.c.h.b16 %v593
    %v971 = vunpack.c.l.b16 %v594
    %v972 = vunpack.c.h.b16 %v594
    %v973 = vunpack.c.l.b16 %v595
    %v974 = vunpack.c.h.b16 %v595
    %v975 = vunpack.c.l.b16 %v596
    %v976 = vunpack.c.h.b16 %v596
    %v977 = vunpack.c.l.b16 %v597
    %v978 = vunpack.c.h.b16 %v597
    %v979 = vunpack.c.l.b16 %v598
    %v980 = vunpack.c.h.b16 %v598
    %v981 = vunpack.c.l.b16 %v599
    %v982 = vunpack.c.h.b16 %v599
    %v983 = vunpack.c.l.b16 %v600
    %v984 = vunpack.c.h.b16 %v600
    %v985 = vunpack.c.l.b16 %v601
    %v986 = vunpack.c.h.b16 %v601
    %v987 = vunpack.c.l.b16 %v602
    %v988 = vunpack.c.h.b16 %v602
    %v989 = vunpack.c.l.b16 %v603
    %v990 = vunpack.c.h.b16 %v603
    %v991 = vunpack.c.l.b16 %v604
    %v992 = vunpack.c.h.b16 %v604
    %v993 = vunpack.c.l.b16 %v605
    %v994 = vunpack.c.h.b16 %v605
    %v995 = vunpack.c.l.b16 %v606
    %v996 = vunpack.c.h.b16 %v606
    %v997 = vpack.c.b16 %v743, %v741
    %v998 = vpack.c.b16 %v744, %v742
    %v999 = vpack.c.b16 %v747, %v745
    %v1000 = vpack.c.b16 %v748, %v746
    %v1001 = vpack.c.b16 %v751, %v749
    %v1002 = vpack.c.b16 %v752, %v750
    %v1003 = vpack.c.b16 %v755, %v753
    %v1004 = vpack.c.b16 %v756, %v754
    %v1005 = vpack.c.b16 %v759, %v757
    %v1006 = vpack.c.b16 %v760, %v758
    %v1007 = vpack.c.b16 %v763, %v761
    %v1008 = vpack.c.b16 %v764, %v762
    %v1009 = vpack.c.b16 %v767, %v765
    %v1010 = vpack.c.b16 %v768, %v766
    %v1011 = vpack.c.b16 %v771, %v769
    %v1012 = vpack.c.b16 %v772, %v770
    %v1013 = vpack.c.b16 %v775, %v773
    %v1014 = vpack.c.b16 %v776, %v774
    %v1015 = vpack.c.b16 %v779, %v777
    %v1016 = vpack.c.b16 %v780, %v778
    %v1017 = vpack.c.b16 %v783, %v781
    %v1018 = vpack.c.b16 %v784, %v782
    %v1019 = vpack.c.b16 %v787, %v785
    %v1020 = vpack.c.b16 %v788, %v786
    %v1021 = vpack.c.b16 %v791, %v789
    %v1022 = vpack.c.b16 %v792, %v790
    %v1023 = vpack.c.b16 %v795, %v793
    %v1024 = vpack.c.b16 %v796, %v794
    %v1025 = vpack.c.b16 %v799, %v797
    %v1026 = vpack.c.b16 %v800, %v798
    %v1027 = vpack.c.b16 %v803, %v801
    %v1028 = vpack.c.b16 %v804, %v802
    %v1029 = vpack.c.b16 %v807, %v805
    %v1030 = vpack.c.b16 %v808, %v806
    %v1031 = vpack.c.b16 %v811, %v809
    %v1032 = vpack.c.b16 %v812, %v810
    %v1033 = vpack.c.b16 %v815, %v813
    %v1034 = vpack.c.b16 %v816, %v814
    %v1035 = vpack.c.b16 %v819, %v817
    %v1036 = vpack.c.b16 %v820, %v818
    %v1037 = vpack.c.b16 %v823, %v821
    %v1038 = vpack.c.b16 %v824, %v822
    %v1039 = vpack.c.b16 %v827, %v825
    %v1040 = vpack.c.b16 %v828, %v826
    %v1041 = vpack.c.b16 %v831, %v829
    %v1042 = vpack.c.b16 %v832, %v830
    %v1043 = vpack.c.b16 %v835, %v833
    %v1044 = vpack.c.b16 %v836, %v834
    %v1045 = vpack.c.b16 %v839, %v837
    %v1046 = vpack.c.b16 %v840, %v838
    %v1047 = vpack.c.b16 %v843, %v841
    %v1048 = vpack.c.b16 %v844, %v842
    %v1049 = vpack.c.b16 %v847, %v845
    %v1050 = vpack.c.b16 %v848, %v846
    %v1051 = vpack.c.b16 %v851, %v849
    %v1052 = vpack.c.b16 %v852, %v850
    %v1053 = vpack.c.b16 %v855, %v853
    %v1054 = vpack.c.b16 %v856, %v854
    %v1055 = vpack.c.b16 %v859, %v857
    %v1056 = vpack.c.b16 %v860, %v858
    %v1057 = vpack.c.b16 %v863, %v861
    %v1058 = vpack.c.b16 %v864, %v862
    %v1059 = vpack.c.b16 %v867, %v865
    %v1060 = vpack.c.b16 %v868, %v866
    %v1061 = vpack.c.b16 %v871, %v869
    %v1062 = vpack.c.b16 %v872, %v870
    %v1063 = vpack.c.b16 %v875, %v873
    %v1064 = vpack.c.b16 %v876, %v874
    %v1065 = vpack.c.b16 %v879, %v877
    %v1066 = vpack.c.b16 %v880, %v878
    %v1067 = vpack.c.b16 %v883, %v881
    %v1068 = vpack.c.b16 %v884, %v882
    %v1069 = vpack.c.b16 %v887, %v885
    %v1070 = vpack.c.b16 %v888, %v886
    %v1071 = vpack.c.b16 %v891, %v889
    %v1072 = vpack.c.b16 %v892, %v890
    %v1073 = vpack.c.b16 %v895, %v893
    %v1074 = vpack.c.b16 %v896, %v894
    %v1075 = vpack.c.b16 %v899, %v897
    %v1076 = vpack.c.b16 %v900, %v898
    %v1077 = vpack.c.b16 %v903, %v901
    %v1078 = vpack.c.b16 %v904, %v902
    %v1079 = vpack.c.b16 %v907, %v905
    %v1080 = vpack.c.b16 %v908, %v906
    %v1081 = vpack.c.b16 %v911, %v909
    %v1082 = vpack.c.b16 %v912, %v910
    %v1083 = vpack.c.b16 %v915, %v913
    %v1084 = vpack.c.b16 %v916, %v914
    %v1085 = vpack.c.b16 %v919, %v917
    %v1086 = vpack.c.b16 %v920, %v918
    %v1087 = vpack.c.b16 %v923, %v921
    %v1088 = vpack.c.b16 %v924, %v922
    %v1089 = vpack.c.b16 %v927, %v925
    %v1090 = vpack.c.b16 %v928, %v926
    %v1091 = vpack.c.b16 %v931, %v929
    %v1092 = vpack.c.b16 %v932, %v930
    %v1093 = vpack.c.b16 %v935, %v933
    %v1094 = vpack.c.b16 %v936, %v934
    %v1095 = vpack.c.b16 %v939, %v937
    %v1096 = vpack.c.b16 %v940, %v938
    %v1097 = vpack.c.b16 %v943, %v941
    %v1098 = vpack.c.b16 %v944, %v942
    %v1099 = vpack.c.b16 %v947, %v945
    %v1100 = vpack.c.b16 %v948, %v946
    %v1101 = vpack.c.b16 %v951, %v949
    %v1102 = vpack.c.b16 %v952, %v950
    %v1103 = vpack.c.b16 %v955, %v953
    %v1104 = vpack.c.b16 %v956, %v954
    %v1105 = vpack.c.b16 %v959, %v957
    %v1106 = vpack.c.b16 %v960, %v958
    %v1107 = vpack.c.b16 %v963, %v961
    %v1108 = vpack.c.b16 %v964, %v962
    %v1109 = vpack.c.b16 %v967, %v965
    %v1110 = vpack.c.b16 %v968, %v966
    %v1111 = vpack.c.b16 %v971, %v969
    %v1112 = vpack.c.b16 %v972, %v970
    %v1113 = vpack.c.b16 %v975, %v973
    %v1114 = vpack.c.b16 %v976, %v974
    %v1115 = vpack.c.b16 %v979, %v977
    %v1116 = vpack.c.b16 %v980, %v978
    %v1117 = vpack.c.b16 %v983, %v981
    %v1118 = vpack.c.b16 %v984, %v982
    %v1119 = vpack.c.b16 %v987, %v985
    %v1120 = vpack.c.b16 %v988, %v986
    %v1121 = vpack.c.b16 %v991, %v989
    %v1122 = vpack.c.b16 %v992, %v990
    %v1123 = vpack.c.b16 %v995, %v993
    %v1124 = vpack.c.b16 %v996, %v994
    %1253 = vmatpush.bf16.msra.mxu0 %v1011
    %1254 = vmatpush.bf16.msra.mxu0 %v1009
    %1255 = vmatpush.bf16.msra.mxu0 %v1007
    %1256 = vmatpush.bf16.msra.mxu0 %v1005
    %1257 = vmatpush.bf16.msra.mxu0 %v1003
    %1258 = vmatpush.bf16.msra.mxu0 %v1001
    %1259 = vmatpush.bf16.msra.mxu0 %v999
    %1260 = vmatpush.bf16.msra.mxu0 %v997
    %1261 = vmatmul.bf16.gmra.mxu0 %v367
    %v1262 = vpop.f32.mrf.mxu0
    %v1263 = vadd.f32 %v609, %v1262
    %v1264 = vpop.f32.mrf.mxu0
    %v1265 = vadd.f32 %v609, %v1264
    %1266 = vmatmul.bf16.gmra.mxu0 %v375
    %v1267 = vpop.f32.mrf.mxu0
    %v1268 = vadd.f32 %v609, %v1267
    %v1269 = vpop.f32.mrf.mxu0
    %v1270 = vadd.f32 %v609, %v1269
    %1271 = vmatmul.bf16.gmra.mxu0 %v447
    %v1272 = vpop.f32.mrf.mxu0
    %v1273 = vpop.f32.mrf.mxu0
    %1274 = vmatmul.bf16.gmra.mxu0 %v455
    %v1275 = vpop.f32.mrf.mxu0
    %v1276 = vpop.f32.mrf.mxu0
    %1277 = vdwg.mxu0
    %1278 = vmatpush.bf16.msra.mxu0 %v1027
    %1279 = vmatpush.bf16.msra.mxu0 %v1025
    %1280 = vmatpush.bf16.msra.mxu0 %v1023
    %1281 = vmatpush.bf16.msra.mxu0 %v1021
    %1282 = vmatpush.bf16.msra.mxu0 %v1019
    %1283 = vmatpush.bf16.msra.mxu0 %v1017
    %1284 = vmatpush.bf16.msra.mxu0 %v1015
    %1285 = vmatpush.bf16.msra.mxu0 %v1013
    %1286 = vmatmul.bf16.gmra.mxu0 %v368
    %v1287 = vpop.f32.mrf.mxu0
    %v1288 = vadd.f32 %v1263, %v1287
    %v1289 = vpop.f32.mrf.mxu0
    %v1290 = vadd.f32 %v1265, %v1289
    %1291 = vmatmul.bf16.gmra.mxu0 %v376
    %v1292 = vpop.f32.mrf.mxu0
    %v1293 = vadd.f32 %v1268, %v1292
    %v1294 = vpop.f32.mrf.mxu0
    %v1295 = vadd.f32 %v1270, %v1294
    %1296 = vmatmul.bf16.gmra.mxu0 %v448
    %v1297 = vpop.f32.mrf.mxu0
    %v1298 = vpop.f32.mrf.mxu0
    %1299 = vmatmul.bf16.gmra.mxu0 %v456
    %v1300 = vpop.f32.mrf.mxu0
    %v1301 = vpop.f32.mrf.mxu0
    %1302 = vdwg.mxu0
    %1303 = vmatpush.bf16.msra.mxu0 %v1043
    %1304 = vmatpush.bf16.msra.mxu0 %v1041
    %1305 = vmatpush.bf16.msra.mxu0 %v1039
    %1306 = vmatpush.bf16.msra.mxu0 %v1037
    %1307 = vmatpush.bf16.msra.mxu0 %v1035
    %1308 = vmatpush.bf16.msra.mxu0 %v1033
    %1309 = vmatpush.bf16.msra.mxu0 %v1031
    %1310 = vmatpush.bf16.msra.mxu0 %v1029
    %1311 = vmatmul.bf16.gmra.mxu0 %v369
    %v1312 = vpop.f32.mrf.mxu0
    %v1313 = vadd.f32 %v1288, %v1312
    %v1314 = vpop.f32.mrf.mxu0
    %v1315 = vadd.f32 %v1290, %v1314
    %1316 = vmatmul.bf16.gmra.mxu0 %v377
    %v1317 = vpop.f32.mrf.mxu0
    %v1318 = vadd.f32 %v1293, %v1317
    %v1319 = vpop.f32.mrf.mxu0
    %v1320 = vadd.f32 %v1295, %v1319
    %1321 = vmatmul.bf16.gmra.mxu0 %v449
    %v1322 = vpop.f32.mrf.mxu0
    %v1323 = vpop.f32.mrf.mxu0
    %1324 = vmatmul.bf16.gmra.mxu0 %v457
    %v1325 = vpop.f32.mrf.mxu0
    %v1326 = vpop.f32.mrf.mxu0
    %1327 = vdwg.mxu0
    %1328 = vmatpush.bf16.msra.mxu0 %v1059
    %1329 = vmatpush.bf16.msra.mxu0 %v1057
    %1330 = vmatpush.bf16.msra.mxu0 %v1055
    %1331 = vmatpush.bf16.msra.mxu0 %v1053
    %1332 = vmatpush.bf16.msra.mxu0 %v1051
    %1333 = vmatpush.bf16.msra.mxu0 %v1049
    %1334 = vmatpush.bf16.msra.mxu0 %v1047
    %1335 = vmatpush.bf16.msra.mxu0 %v1045
    %1336 = vmatmul.bf16.gmra.mxu0 %v370
    %v1337 = vpop.f32.mrf.mxu0
    %v1338 = vadd.f32 %v1313, %v1337
    %v1339 = vpop.f32.mrf.mxu0
    %v1340 = vadd.f32 %v1315, %v1339
    %1341 = vmatmul.bf16.gmra.mxu0 %v378
    %v1342 = vpop.f32.mrf.mxu0
    %v1343 = vadd.f32 %v1318, %v1342
    %v1344 = vpop.f32.mrf.mxu0
    %v1345 = vadd.f32 %v1320, %v1344
    %1346 = vmatmul.bf16.gmra.mxu0 %v450
    %v1347 = vpop.f32.mrf.mxu0
    %v1348 = vpop.f32.mrf.mxu0
    %1349 = vmatmul.bf16.gmra.mxu0 %v458
    %v1350 = vpop.f32.mrf.mxu0
    %v1351 = vpop.f32.mrf.mxu0
    %1352 = vdwg.mxu0
    %1353 = vmatpush.bf16.msra.mxu0 %v1075
    %1354 = vmatpush.bf16.msra.mxu0 %v1073
    %1355 = vmatpush.bf16.msra.mxu0 %v1071
    %1356 = vmatpush.bf16.msra.mxu0 %v1069
    %1357 = vmatpush.bf16.msra.mxu0 %v1067
    %1358 = vmatpush.bf16.msra.mxu0 %v1065
    %1359 = vmatpush.bf16.msra.mxu0 %v1063
    %1360 = vmatpush.bf16.msra.mxu0 %v1061
    %1361 = vmatmul.bf16.gmra.mxu0 %v371
    %v1362 = vpop.f32.mrf.mxu0
    %v1363 = vadd.f32 %v1338, %v1362
    %v1364 = vpop.f32.mrf.mxu0
    %v1365 = vadd.f32 %v1340, %v1364
    %1366 = vmatmul.bf16.gmra.mxu0 %v379
    %v1367 = vpop.f32.mrf.mxu0
    %v1368 = vadd.f32 %v1343, %v1367
    %v1369 = vpop.f32.mrf.mxu0
    %v1370 = vadd.f32 %v1345, %v1369
    %1371 = vmatmul.bf16.gmra.mxu0 %v451
    %v1372 = vpop.f32.mrf.mxu0
    %v1373 = vpop.f32.mrf.mxu0
    %1374 = vmatmul.bf16.gmra.mxu0 %v459
    %v1375 = vpop.f32.mrf.mxu0
    %v1376 = vpop.f32.mrf.mxu0
    %1377 = vdwg.mxu0
    %1378 = vmatpush.bf16.msra.mxu0 %v1091
    %1379 = vmatpush.bf16.msra.mxu0 %v1089
    %1380 = vmatpush.bf16.msra.mxu0 %v1087
    %1381 = vmatpush.bf16.msra.mxu0 %v1085
    %1382 = vmatpush.bf16.msra.mxu0 %v1083
    %1383 = vmatpush.bf16.msra.mxu0 %v1081
    %1384 = vmatpush.bf16.msra.mxu0 %v1079
    %1385 = vmatpush.bf16.msra.mxu0 %v1077
    %1386 = vmatmul.bf16.gmra.mxu0 %v372
    %v1387 = vpop.f32.mrf.mxu0
    %v1388 = vadd.f32 %v1363, %v1387
    %v1389 = vpop.f32.mrf.mxu0
    %v1390 = vadd.f32 %v1365, %v1389
    %1391 = vmatmul.bf16.gmra.mxu0 %v380
    %v1392 = vpop.f32.mrf.mxu0
    %v1393 = vadd.f32 %v1368, %v1392
    %v1394 = vpop.f32.mrf.mxu0
    %v1395 = vadd.f32 %v1370, %v1394
    %1396 = vmatmul.bf16.gmra.mxu0 %v452
    %v1397 = vpop.f32.mrf.mxu0
    %v1398 = vpop.f32.mrf.mxu0
    %1399 = vmatmul.bf16.gmra.mxu0 %v460
    %v1400 = vpop.f32.mrf.mxu0
    %v1401 = vpop.f32.mrf.mxu0
    %1402 = vdwg.mxu0
    %1403 = vmatpush.bf16.msra.mxu0 %v1107
    %1404 = vmatpush.bf16.msra.mxu0 %v1105
    %1405 = vmatpush.bf16.msra.mxu0 %v1103
    %1406 = vmatpush.bf16.msra.mxu0 %v1101
    %1407 = vmatpush.bf16.msra.mxu0 %v1099
    %1408 = vmatpush.bf16.msra.mxu0 %v1097
    %1409 = vmatpush.bf16.msra.mxu0 %v1095
    %1410 = vmatpush.bf16.msra.mxu0 %v1093
    %1411 = vmatmul.bf16.gmra.mxu0 %v373
    %v1412 = vpop.f32.mrf.mxu0
    %v1413 = vadd.f32 %v1388, %v1412
    %v1414 = vpop.f32.mrf.mxu0
    %v1415 = vadd.f32 %v1390, %v1414
    %1416 = vmatmul.bf16.gmra.mxu0 %v381
    %v1417 = vpop.f32.mrf.mxu0
    %v1418 = vadd.f32 %v1393, %v1417
    %v1419 = vpop.f32.mrf.mxu0
    %v1420 = vadd.f32 %v1395, %v1419
    %1421 = vmatmul.bf16.gmra.mxu0 %v453
    %v1422 = vpop.f32.mrf.mxu0
    %v1423 = vpop.f32.mrf.mxu0
    %1424 = vmatmul.bf16.gmra.mxu0 %v461
    %v1425 = vpop.f32.mrf.mxu0
    %v1426 = vpop.f32.mrf.mxu0
    %1427 = vdwg.mxu0
    %1428 = vmatpush.bf16.msra.mxu0 %v1123
    %1429 = vmatpush.bf16.msra.mxu0 %v1121
    %1430 = vmatpush.bf16.msra.mxu0 %v1119
    %1431 = vmatpush.bf16.msra.mxu0 %v1117
    %1432 = vmatpush.bf16.msra.mxu0 %v1115
    %1433 = vmatpush.bf16.msra.mxu0 %v1113
    %1434 = vmatpush.bf16.msra.mxu0 %v1111
    %1435 = vmatpush.bf16.msra.mxu0 %v1109
    %1436 = vmatmul.bf16.gmra.mxu0 %v374
    %v1437 = vpop.f32.mrf.mxu0
    %v1438 = vadd.f32 %v1413, %v1437
    %v1439 = vpop.f32.mrf.mxu0
    %v1440 = vadd.f32 %v1415, %v1439
    %1441 = vmatmul.bf16.gmra.mxu0 %v382
    %v1442 = vpop.f32.mrf.mxu0
    %v1443 = vadd.f32 %v1418, %v1442
    %v1444 = vpop.f32.mrf.mxu0
    %v1445 = vadd.f32 %v1420, %v1444
    %1446 = vmatmul.bf16.gmra.mxu0 %v454
    %v1447 = vpop.f32.mrf.mxu0
    %v1448 = vpop.f32.mrf.mxu0
    %1449 = vmatmul.bf16.gmra.mxu0 %v462
    %v1450 = vpop.f32.mrf.mxu0
    %v1451 = vpop.f32.mrf.mxu0
    %1452 = vdwg.mxu0
    %1453 = vmatpush.bf16.msra.mxu0 %v1012
    %1454 = vmatpush.bf16.msra.mxu0 %v1010
    %1455 = vmatpush.bf16.msra.mxu0 %v1008
    %1456 = vmatpush.bf16.msra.mxu0 %v1006
    %1457 = vmatpush.bf16.msra.mxu0 %v1004
    %1458 = vmatpush.bf16.msra.mxu0 %v1002
    %1459 = vmatpush.bf16.msra.mxu0 %v1000
    %1460 = vmatpush.bf16.msra.mxu0 %v998
    %1461 = vmatmul.bf16.gmra.mxu0 %v367
    %v1462 = vpop.f32.mrf.mxu0
    %v1463 = vpop.f32.mrf.mxu0
    %1464 = vmatmul.bf16.gmra.mxu0 %v375
    %v1465 = vpop.f32.mrf.mxu0
    %v1466 = vpop.f32.mrf.mxu0
    %1467 = vmatmul.bf16.gmra.mxu0 %v447
    %v1468 = vpop.f32.mrf.mxu0
    %v1469 = vadd.f32 %v610, %v1468
    %v1470 = vpop.f32.mrf.mxu0
    %v1471 = vadd.f32 %v610, %v1470
    %1472 = vmatmul.bf16.gmra.mxu0 %v455
    %v1473 = vpop.f32.mrf.mxu0
    %v1474 = vadd.f32 %v610, %v1473
    %v1475 = vpop.f32.mrf.mxu0
    %v1476 = vadd.f32 %v610, %v1475
    %1477 = vdwg.mxu0
    %1478 = vmatpush.bf16.msra.mxu0 %v1028
    %1479 = vmatpush.bf16.msra.mxu0 %v1026
    %1480 = vmatpush.bf16.msra.mxu0 %v1024
    %1481 = vmatpush.bf16.msra.mxu0 %v1022
    %1482 = vmatpush.bf16.msra.mxu0 %v1020
    %1483 = vmatpush.bf16.msra.mxu0 %v1018
    %1484 = vmatpush.bf16.msra.mxu0 %v1016
    %1485 = vmatpush.bf16.msra.mxu0 %v1014
    %1486 = vmatmul.bf16.gmra.mxu0 %v368
    %v1487 = vpop.f32.mrf.mxu0
    %v1488 = vpop.f32.mrf.mxu0
    %1489 = vmatmul.bf16.gmra.mxu0 %v376
    %v1490 = vpop.f32.mrf.mxu0
    %v1491 = vpop.f32.mrf.mxu0
    %1492 = vmatmul.bf16.gmra.mxu0 %v448
    %v1493 = vpop.f32.mrf.mxu0
    %v1494 = vadd.f32 %v1469, %v1493
    %v1495 = vpop.f32.mrf.mxu0
    %v1496 = vadd.f32 %v1471, %v1495
    %1497 = vmatmul.bf16.gmra.mxu0 %v456
    %v1498 = vpop.f32.mrf.mxu0
    %v1499 = vadd.f32 %v1474, %v1498
    %v1500 = vpop.f32.mrf.mxu0
    %v1501 = vadd.f32 %v1476, %v1500
    %1502 = vdwg.mxu0
    %1503 = vmatpush.bf16.msra.mxu0 %v1044
    %1504 = vmatpush.bf16.msra.mxu0 %v1042
    %1505 = vmatpush.bf16.msra.mxu0 %v1040
    %1506 = vmatpush.bf16.msra.mxu0 %v1038
    %1507 = vmatpush.bf16.msra.mxu0 %v1036
    %1508 = vmatpush.bf16.msra.mxu0 %v1034
    %1509 = vmatpush.bf16.msra.mxu0 %v1032
    %1510 = vmatpush.bf16.msra.mxu0 %v1030
    %1511 = vmatmul.bf16.gmra.mxu0 %v369
    %v1512 = vpop.f32.mrf.mxu0
    %v1513 = vpop.f32.mrf.mxu0
    %1514 = vmatmul.bf16.gmra.mxu0 %v377
    %v1515 = vpop.f32.mrf.mxu0
    %v1516 = vpop.f32.mrf.mxu0
    %1517 = vmatmul.bf16.gmra.mxu0 %v449
    %v1518 = vpop.f32.mrf.mxu0
    %v1519 = vadd.f32 %v1494, %v1518
    %v1520 = vpop.f32.mrf.mxu0
    %v1521 = vadd.f32 %v1496, %v1520
    %1522 = vmatmul.bf16.gmra.mxu0 %v457
    %v1523 = vpop.f32.mrf.mxu0
    %v1524 = vadd.f32 %v1499, %v1523
    %v1525 = vpop.f32.mrf.mxu0
    %v1526 = vadd.f32 %v1501, %v1525
    %1527 = vdwg.mxu0
    %1528 = vmatpush.bf16.msra.mxu0 %v1060
    %1529 = vmatpush.bf16.msra.mxu0 %v1058
    %1530 = vmatpush.bf16.msra.mxu0 %v1056
    %1531 = vmatpush.bf16.msra.mxu0 %v1054
    %1532 = vmatpush.bf16.msra.mxu0 %v1052
    %1533 = vmatpush.bf16.msra.mxu0 %v1050
    %1534 = vmatpush.bf16.msra.mxu0 %v1048
    %1535 = vmatpush.bf16.msra.mxu0 %v1046
    %1536 = vmatmul.bf16.gmra.mxu0 %v370
    %v1537 = vpop.f32.mrf.mxu0
    %v1538 = vpop.f32.mrf.mxu0
    %1539 = vmatmul.bf16.gmra.mxu0 %v378
    %v1540 = vpop.f32.mrf.mxu0
    %v1541 = vpop.f32.mrf.mxu0
    %1542 = vmatmul.bf16.gmra.mxu0 %v450
    %v1543 = vpop.f32.mrf.mxu0
    %v1544 = vadd.f32 %v1519, %v1543
    %v1545 = vpop.f32.mrf.mxu0
    %v1546 = vadd.f32 %v1521, %v1545
    %1547 = vmatmul.bf16.gmra.mxu0 %v458
    %v1548 = vpop.f32.mrf.mxu0
    %v1549 = vadd.f32 %v1524, %v1548
    %v1550 = vpop.f32.mrf.mxu0
    %v1551 = vadd.f32 %v1526, %v1550
    %1552 = vdwg.mxu0
    %1553 = vmatpush.bf16.msra.mxu0 %v1076
    %1554 = vmatpush.bf16.msra.mxu0 %v1074
    %1555 = vmatpush.bf16.msra.mxu0 %v1072
    %1556 = vmatpush.bf16.msra.mxu0 %v1070
    %1557 = vmatpush.bf16.msra.mxu0 %v1068
    %1558 = vmatpush.bf16.msra.mxu0 %v1066
    %1559 = vmatpush.bf16.msra.mxu0 %v1064
    %1560 = vmatpush.bf16.msra.mxu0 %v1062
    %1561 = vmatmul.bf16.gmra.mxu0 %v371
    %v1562 = vpop.f32.mrf.mxu0
    %v1563 = vpop.f32.mrf.mxu0
    %1564 = vmatmul.bf16.gmra.mxu0 %v379
    %v1565 = vpop.f32.mrf.mxu0
    %v1566 = vpop.f32.mrf.mxu0
    %1567 = vmatmul.bf16.gmra.mxu0 %v451
    %v1568 = vpop.f32.mrf.mxu0
    %v1569 = vadd.f32 %v1544, %v1568
    %v1570 = vpop.f32.mrf.mxu0
    %v1571 = vadd.f32 %v1546, %v1570
    %1572 = vmatmul.bf16.gmra.mxu0 %v459
    %v1573 = vpop.f32.mrf.mxu0
    %v1574 = vadd.f32 %v1549, %v1573
    %v1575 = vpop.f32.mrf.mxu0
    %v1576 = vadd.f32 %v1551, %v1575
    %1577 = vdwg.mxu0
    %1578 = vmatpush.bf16.msra.mxu0 %v1092
    %1579 = vmatpush.bf16.msra.mxu0 %v1090
    %1580 = vmatpush.bf16.msra.mxu0 %v1088
    %1581 = vmatpush.bf16.msra.mxu0 %v1086
    %1582 = vmatpush.bf16.msra.mxu0 %v1084
    %1583 = vmatpush.bf16.msra.mxu0 %v1082
    %1584 = vmatpush.bf16.msra.mxu0 %v1080
    %1585 = vmatpush.bf16.msra.mxu0 %v1078
    %1586 = vmatmul.bf16.gmra.mxu0 %v372
    %v1587 = vpop.f32.mrf.mxu0
    %v1588 = vpop.f32.mrf.mxu0
    %1589 = vmatmul.bf16.gmra.mxu0 %v380
    %v1590 = vpop.f32.mrf.mxu0
    %v1591 = vpop.f32.mrf.mxu0
    %1592 = vmatmul.bf16.gmra.mxu0 %v452
    %v1593 = vpop.f32.mrf.mxu0
    %v1594 = vadd.f32 %v1569, %v1593
    %v1595 = vpop.f32.mrf.mxu0
    %v1596 = vadd.f32 %v1571, %v1595
    %1597 = vmatmul.bf16.gmra.mxu0 %v460
    %v1598 = vpop.f32.mrf.mxu0
    %v1599 = vadd.f32 %v1574, %v1598
    %v1600 = vpop.f32.mrf.mxu0
    %v1601 = vadd.f32 %v1576, %v1600
    %1602 = vdwg.mxu0
    %1603 = vmatpush.bf16.msra.mxu0 %v1108
    %1604 = vmatpush.bf16.msra.mxu0 %v1106
    %1605 = vmatpush.bf16.msra.mxu0 %v1104
    %1606 = vmatpush.bf16.msra.mxu0 %v1102
    %1607 = vmatpush.bf16.msra.mxu0 %v1100
    %1608 = vmatpush.bf16.msra.mxu0 %v1098
    %1609 = vmatpush.bf16.msra.mxu0 %v1096
    %1610 = vmatpush.bf16.msra.mxu0 %v1094
    %1611 = vmatmul.bf16.gmra.mxu0 %v373
    %v1612 = vpop.f32.mrf.mxu0
    %v1613 = vpop.f32.mrf.mxu0
    %1614 = vmatmul.bf16.gmra.mxu0 %v381
    %v1615 = vpop.f32.mrf.mxu0
    %v1616 = vpop.f32.mrf.mxu0
    %1617 = vmatmul.bf16.gmra.mxu0 %v453
    %v1618 = vpop.f32.mrf.mxu0
    %v1619 = vadd.f32 %v1594, %v1618
    %v1620 = vpop.f32.mrf.mxu0
    %v1621 = vadd.f32 %v1596, %v1620
    %1622 = vmatmul.bf16.gmra.mxu0 %v461
    %v1623 = vpop.f32.mrf.mxu0
    %v1624 = vadd.f32 %v1599, %v1623
    %v1625 = vpop.f32.mrf.mxu0
    %v1626 = vadd.f32 %v1601, %v1625
    %1627 = vdwg.mxu0
    %1628 = vmatpush.bf16.msra.mxu0 %v1124
    %1629 = vmatpush.bf16.msra.mxu0 %v1122
    %1630 = vmatpush.bf16.msra.mxu0 %v1120
    %1631 = vmatpush.bf16.msra.mxu0 %v1118
    %1632 = vmatpush.bf16.msra.mxu0 %v1116
    %1633 = vmatpush.bf16.msra.mxu0 %v1114
    %1634 = vmatpush.bf16.msra.mxu0 %v1112
    %1635 = vmatpush.bf16.msra.mxu0 %v1110
    %1636 = vmatmul.bf16.gmra.mxu0 %v374
    %v1637 = vpop.f32.mrf.mxu0
    %v1638 = vpop.f32.mrf.mxu0
    %1639 = vmatmul.bf16.gmra.mxu0 %v382
    %v1640 = vpop.f32.mrf.mxu0
    %v1641 = vpop.f32.mrf.mxu0
    %1642 = vmatmul.bf16.gmra.mxu0 %v454
    %v1643 = vpop.f32.mrf.mxu0
    %v1644 = vadd.f32 %v1619, %v1643
    %v1645 = vpop.f32.mrf.mxu0
    %v1646 = vadd.f32 %v1621, %v1645
    %1647 = vmatmul.bf16.gmra.mxu0 %v462
    %v1648 = vpop.f32.mrf.mxu0
    %v1649 = vadd.f32 %v1624, %v1648
    %v1650 = vpop.f32.mrf.mxu0
    %v1651 = vadd.f32 %v1626, %v1650
    %1652 = vdwg.mxu0
    %v1653 = vld [vmem:[#allocation7] sm:$0xff]
    %v1654 = vld [vmem:[#allocation7 + $0x8] sm:$0xff]
    %v1655 = vld [vmem:[#allocation7 + $0x10] sm:$0xff]
    %v1656 = vld [vmem:[#allocation7 + $0x18] sm:$0xff]
    %v1657 = vld [vmem:[#allocation7 + $0x20] sm:$0xff]
    %v1658 = vld [vmem:[#allocation7 + $0x28] sm:$0xff]
    %v1659 = vld [vmem:[#allocation7 + $0x30] sm:$0xff]
    %v1660 = vld [vmem:[#allocation7 + $0x38] sm:$0xff]
    %v1661 = vld [vmem:[#allocation7 + $0x40] sm:$0xff]
    %v1662 = vld [vmem:[#allocation7 + $0x48] sm:$0xff]
    %v1663 = vld [vmem:[#allocation7 + $0x50] sm:$0xff]
    %v1664 = vld [vmem:[#allocation7 + $0x58] sm:$0xff]
    %v1665 = vld [vmem:[#allocation7 + $0x60] sm:$0xff]
    %v1666 = vld [vmem:[#allocation7 + $0x68] sm:$0xff]
    %v1667 = vld [vmem:[#allocation7 + $0x70] sm:$0xff]
    %v1668 = vld [vmem:[#allocation7 + $0x78] sm:$0xff]
    %v1669 = vld [vmem:[#allocation8] sm:$0x3]
    %v1670 = vpack.c.bf16 %v1440, %v1438
    %v1671 = vpack.c.bf16 %v1445, %v1443
    %v1672 = vpack.c.bf16 %v1646, %v1644
    %v1673 = vpack.c.bf16 %v1651, %v1649
    %v1675 = vperm.slane %v1669, 0
    %v1676 = vperm.slane %v1669, 1
    %v1695 = vunpack.c.l.b16 %v1653
    %v1696 = vunpack.c.h.b16 %v1653
    %v1697 = vunpack.c.l.b16 %v1654
    %v1698 = vunpack.c.h.b16 %v1654
    %v1699 = vunpack.c.l.b16 %v1655
    %v1700 = vunpack.c.h.b16 %v1655
    %v1701 = vunpack.c.l.b16 %v1656
    %v1702 = vunpack.c.h.b16 %v1656
    %v1703 = vunpack.c.l.b16 %v1657
    %v1704 = vunpack.c.h.b16 %v1657
    %v1705 = vunpack.c.l.b16 %v1658
    %v1706 = vunpack.c.h.b16 %v1658
    %v1707 = vunpack.c.l.b16 %v1659
    %v1708 = vunpack.c.h.b16 %v1659
    %v1709 = vunpack.c.l.b16 %v1660
    %v1710 = vunpack.c.h.b16 %v1660
    %v1711 = vunpack.c.l.b16 %v1661
    %v1712 = vunpack.c.h.b16 %v1661
    %v1713 = vunpack.c.l.b16 %v1662
    %v1714 = vunpack.c.h.b16 %v1662
    %v1715 = vunpack.c.l.b16 %v1663
    %v1716 = vunpack.c.h.b16 %v1663
    %v1717 = vunpack.c.l.b16 %v1664
    %v1718 = vunpack.c.h.b16 %v1664
    %v1719 = vunpack.c.l.b16 %v1665
    %v1720 = vunpack.c.h.b16 %v1665
    %v1721 = vunpack.c.l.b16 %v1666
    %v1722 = vunpack.c.h.b16 %v1666
    %v1723 = vunpack.c.l.b16 %v1667
    %v1724 = vunpack.c.h.b16 %v1667
    %v1725 = vunpack.c.l.b16 %v1668
    %v1726 = vunpack.c.h.b16 %v1668
    %v1727 = vpack.c.b16 %v1697, %v1695
    %v1728 = vpack.c.b16 %v1698, %v1696
    %v1729 = vpack.c.b16 %v1701, %v1699
    %v1730 = vpack.c.b16 %v1702, %v1700
    %v1731 = vpack.c.b16 %v1705, %v1703
    %v1732 = vpack.c.b16 %v1706, %v1704
    %v1733 = vpack.c.b16 %v1709, %v1707
    %v1734 = vpack.c.b16 %v1710, %v1708
    %v1735 = vpack.c.b16 %v1713, %v1711
    %v1736 = vpack.c.b16 %v1714, %v1712
    %v1737 = vpack.c.b16 %v1717, %v1715
    %v1738 = vpack.c.b16 %v1718, %v1716
    %v1739 = vpack.c.b16 %v1721, %v1719
    %v1740 = vpack.c.b16 %v1722, %v1720
    %v1741 = vpack.c.b16 %v1725, %v1723
    %v1742 = vpack.c.b16 %v1726, %v1724
    %1759 = vmatpush.bf16.msra.mxu0 %v1741
    %1760 = vmatpush.bf16.msra.mxu0 %v1739
    %1761 = vmatpush.bf16.msra.mxu0 %v1737
    %1762 = vmatpush.bf16.msra.mxu0 %v1735
    %1763 = vmatpush.bf16.msra.mxu0 %v1733
    %1764 = vmatpush.bf16.msra.mxu0 %v1731
    %1765 = vmatpush.bf16.msra.mxu0 %v1729
    %1766 = vmatpush.bf16.msra.mxu0 %v1727
    %1767 = vmatmul.bf16.gmra.mxu0 %v1670
    %v1768 = vpop.f32.mrf.mxu0
    %v1769 = vadd.f32 %v1675, %v1768
    %v1770 = vpop.f32.mrf.mxu0
    %v1771 = vadd.f32 %v1675, %v1770
    %1772 = vmatmul.bf16.gmra.mxu0 %v1671
    %v1773 = vpop.f32.mrf.mxu0
    %v1774 = vadd.f32 %v1675, %v1773
    %v1775 = vpop.f32.mrf.mxu0
    %v1776 = vadd.f32 %v1675, %v1775
    %1777 = vmatmul.bf16.gmra.mxu0 %v1672
    %v1778 = vpop.f32.mrf.mxu0
    %v1779 = vpop.f32.mrf.mxu0
    %1780 = vmatmul.bf16.gmra.mxu0 %v1673
    %v1781 = vpop.f32.mrf.mxu0
    %v1782 = vpop.f32.mrf.mxu0
    %1783 = vdwg.mxu0
    %1784 = vmatpush.bf16.msra.mxu0 %v1742
    %1785 = vmatpush.bf16.msra.mxu0 %v1740
    %1786 = vmatpush.bf16.msra.mxu0 %v1738
    %1787 = vmatpush.bf16.msra.mxu0 %v1736
    %1788 = vmatpush.bf16.msra.mxu0 %v1734
    %1789 = vmatpush.bf16.msra.mxu0 %v1732
    %1790 = vmatpush.bf16.msra.mxu0 %v1730
    %1791 = vmatpush.bf16.msra.mxu0 %v1728
    %1792 = vmatmul.bf16.gmra.mxu0 %v1670
    %v1793 = vpop.f32.mrf.mxu0
    %v1794 = vpop.f32.mrf.mxu0
    %1795 = vmatmul.bf16.gmra.mxu0 %v1671
    %v1796 = vpop.f32.mrf.mxu0
    %v1797 = vpop.f32.mrf.mxu0
    %1798 = vmatmul.bf16.gmra.mxu0 %v1672
    %v1799 = vpop.f32.mrf.mxu0
    %v1800 = vadd.f32 %v1676, %v1799
    %v1801 = vpop.f32.mrf.mxu0
    %v1802 = vadd.f32 %v1676, %v1801
    %1803 = vmatmul.bf16.gmra.mxu0 %v1673
    %v1804 = vpop.f32.mrf.mxu0
    %v1805 = vadd.f32 %v1676, %v1804
    %v1806 = vpop.f32.mrf.mxu0
    %v1807 = vadd.f32 %v1676, %v1806
    %1808 = vdwg.mxu0
    %v1809 = vxor.u32 %v1769, 2147483648
    %v1810 = vxor.u32 %v1771, 2147483648
    %v1811 = vxor.u32 %v1774, 2147483648
    %v1812 = vxor.u32 %v1776, 2147483648
    %v1813 = vmul.f32 %v1809, 1.442695
    %v1814 = vpow.pop %v1813
    %v1815 = vmul.f32 %v1810, 1.442695
    %v1816 = vpow.pop %v1815
    %v1817 = vmul.f32 %v1811, 1.442695
    %v1818 = vpow.pop %v1817
    %v1819 = vmul.f32 %v1812, 1.442695
    %v1820 = vpow.pop %v1819
    %v1821 = vadd.f32 %v1814, 1.0
    %v1822 = vadd.f32 %v1816, 1.0
    %v1823 = vadd.f32 %v1818, 1.0
    %v1824 = vadd.f32 %v1820, 1.0
    %v1825 = vrcp.pop %v1821
    %v1826 = vmul.f32 %v1821, %v1825
    %v1827 = vsub.f32 1.0, %v1826
    %v1828 = vmul.f32 %v1825, %v1827
    %v1829 = vadd.f32 %v1825, %v1828
    %vm1830 = vweird.f32 %v1821
    %vm1831 = vweird.f32 %v1825
    %vm1832 = vmor %vm1830, %vm1831
    %v1833 = vsel %vm1832, %v1825, %v1829
    %v1834 = vand.u32 2147483647, %v1821
    %vm1835 = vcmp.eq.f32.partialorder %v1834, 8.507059e+37
    %v1836 = vand.u32 %v1821, 2147483648
    %v1837 = vor.u32 1.1754944e-38, %v1836
    %v1838 = vsel %vm1835, %v1837, %v1833
    %v1839 = vmul.f32 1.0, %v1838
    %v1840 = vrcp.pop %v1822
    %v1841 = vmul.f32 %v1822, %v1840
    %v1842 = vsub.f32 1.0, %v1841
    %v1843 = vmul.f32 %v1840, %v1842
    %v1844 = vadd.f32 %v1840, %v1843
    %vm1845 = vweird.f32 %v1822
    %vm1846 = vweird.f32 %v1840
    %vm1847 = vmor %vm1845, %vm1846
    %v1848 = vsel %vm1847, %v1840, %v1844
    %v1849 = vand.u32 2147483647, %v1822
    %vm1850 = vcmp.eq.f32.partialorder %v1849, 8.507059e+37
    %v1851 = vand.u32 %v1822, 2147483648
    %v1852 = vor.u32 1.1754944e-38, %v1851
    %v1853 = vsel %vm1850, %v1852, %v1848
    %v1854 = vmul.f32 1.0, %v1853
    %v1855 = vrcp.pop %v1823
    %v1856 = vmul.f32 %v1823, %v1855
    %v1857 = vsub.f32 1.0, %v1856
    %v1858 = vmul.f32 %v1855, %v1857
    %v1859 = vadd.f32 %v1855, %v1858
    %vm1860 = vweird.f32 %v1823
    %vm1861 = vweird.f32 %v1855
    %vm1862 = vmor %vm1860, %vm1861
    %v1863 = vsel %vm1862, %v1855, %v1859
    %v1864 = vand.u32 2147483647, %v1823
    %vm1865 = vcmp.eq.f32.partialorder %v1864, 8.507059e+37
    %v1866 = vand.u32 %v1823, 2147483648
    %v1867 = vor.u32 1.1754944e-38, %v1866
    %v1868 = vsel %vm1865, %v1867, %v1863
    %v1869 = vmul.f32 1.0, %v1868
    %v1870 = vrcp.pop %v1824
    %v1871 = vmul.f32 %v1824, %v1870
    %v1872 = vsub.f32 1.0, %v1871
    %v1873 = vmul.f32 %v1870, %v1872
    %v1874 = vadd.f32 %v1870, %v1873
    %vm1875 = vweird.f32 %v1824
    %vm1876 = vweird.f32 %v1870
    %vm1877 = vmor %vm1875, %vm1876
    %v1878 = vsel %vm1877, %v1870, %v1874
    %v1879 = vand.u32 2147483647, %v1824
    %vm1880 = vcmp.eq.f32.partialorder %v1879, 8.507059e+37
    %v1881 = vand.u32 %v1824, 2147483648
    %v1882 = vor.u32 1.1754944e-38, %v1881
    %v1883 = vsel %vm1880, %v1882, %v1878
    %v1884 = vmul.f32 1.0, %v1883
    %v1885 = vmul.f32 %v1438, %v1839
    %v1886 = vmul.f32 %v1440, %v1854
    %v1887 = vmul.f32 %v1443, %v1869
    %v1888 = vmul.f32 %v1445, %v1884
    %v1889 = vxor.u32 %v1800, 2147483648
    %v1890 = vxor.u32 %v1802, 2147483648
    %v1891 = vxor.u32 %v1805, 2147483648
    %v1892 = vxor.u32 %v1807, 2147483648
    %v1893 = vmul.f32 %v1889, 1.442695
    %v1894 = vpow.pop %v1893
    %v1895 = vmul.f32 %v1890, 1.442695
    %v1896 = vpow.pop %v1895
    %v1897 = vmul.f32 %v1891, 1.442695
    %v1898 = vpow.pop %v1897
    %v1899 = vmul.f32 %v1892, 1.442695
    %v1900 = vpow.pop %v1899
    %v1901 = vadd.f32 %v1894, 1.0
    %v1902 = vadd.f32 %v1896, 1.0
    %v1903 = vadd.f32 %v1898, 1.0
    %v1904 = vadd.f32 %v1900, 1.0
    %v1905 = vrcp.pop %v1901
    %v1906 = vmul.f32 %v1901, %v1905
    %v1907 = vsub.f32 1.0, %v1906
    %v1908 = vmul.f32 %v1905, %v1907
    %v1909 = vadd.f32 %v1905, %v1908
    %vm1910 = vweird.f32 %v1901
    %vm1911 = vweird.f32 %v1905
    %vm1912 = vmor %vm1910, %vm1911
    %v1913 = vsel %vm1912, %v1905, %v1909
    %v1914 = vand.u32 2147483647, %v1901
    %vm1915 = vcmp.eq.f32.partialorder %v1914, 8.507059e+37
    %v1916 = vand.u32 %v1901, 2147483648
    %v1917 = vor.u32 1.1754944e-38, %v1916
    %v1918 = vsel %vm1915, %v1917, %v1913
    %v1919 = vmul.f32 1.0, %v1918
    %v1920 = vrcp.pop %v1902
    %v1921 = vmul.f32 %v1902, %v1920
    %v1922 = vsub.f32 1.0, %v1921
    %v1923 = vmul.f32 %v1920, %v1922
    %v1924 = vadd.f32 %v1920, %v1923
    %vm1925 = vweird.f32 %v1902
    %vm1926 = vweird.f32 %v1920
    %vm1927 = vmor %vm1925, %vm1926
    %v1928 = vsel %vm1927, %v1920, %v1924
    %v1929 = vand.u32 2147483647, %v1902
    %vm1930 = vcmp.eq.f32.partialorder %v1929, 8.507059e+37
    %v1931 = vand.u32 %v1902, 2147483648
    %v1932 = vor.u32 1.1754944e-38, %v1931
    %v1933 = vsel %vm1930, %v1932, %v1928
    %v1934 = vmul.f32 1.0, %v1933
    %v1935 = vrcp.pop %v1903
    %v1936 = vmul.f32 %v1903, %v1935
    %v1937 = vsub.f32 1.0, %v1936
    %v1938 = vmul.f32 %v1935, %v1937
    %v1939 = vadd.f32 %v1935, %v1938
    %vm1940 = vweird.f32 %v1903
    %vm1941 = vweird.f32 %v1935
    %vm1942 = vmor %vm1940, %vm1941
    %v1943 = vsel %vm1942, %v1935, %v1939
    %v1944 = vand.u32 2147483647, %v1903
    %vm1945 = vcmp.eq.f32.partialorder %v1944, 8.507059e+37
    %v1946 = vand.u32 %v1903, 2147483648
    %v1947 = vor.u32 1.1754944e-38, %v1946
    %v1948 = vsel %vm1945, %v1947, %v1943
    %v1949 = vmul.f32 1.0, %v1948
    %v1950 = vrcp.pop %v1904
    %v1951 = vmul.f32 %v1904, %v1950
    %v1952 = vsub.f32 1.0, %v1951
    %v1953 = vmul.f32 %v1950, %v1952
    %v1954 = vadd.f32 %v1950, %v1953
    %vm1955 = vweird.f32 %v1904
    %vm1956 = vweird.f32 %v1950
    %vm1957 = vmor %vm1955, %vm1956
    %v1958 = vsel %vm1957, %v1950, %v1954
    %v1959 = vand.u32 2147483647, %v1904
    %vm1960 = vcmp.eq.f32.partialorder %v1959, 8.507059e+37
    %v1961 = vand.u32 %v1904, 2147483648
    %v1962 = vor.u32 1.1754944e-38, %v1961
    %v1963 = vsel %vm1960, %v1962, %v1958
    %v1964 = vmul.f32 1.0, %v1963
    %v1965 = vmul.f32 %v1644, %v1919
    %v1966 = vmul.f32 %v1646, %v1934
    %v1967 = vmul.f32 %v1649, %v1949
    %v1968 = vmul.f32 %v1651, %v1964
    %v1969 = vld [vmem:[#allocation10] sm:$0xff]
    %v1970 = vld [vmem:[#allocation10 + $0x8] sm:$0xff]
    %v1971 = vld [vmem:[#allocation10 + $0x10] sm:$0xff]
    %v1972 = vld [vmem:[#allocation10 + $0x18] sm:$0xff]
    %v1973 = vld [vmem:[#allocation10 + $0x20] sm:$0xff]
    %v1974 = vld [vmem:[#allocation10 + $0x28] sm:$0xff]
    %v1975 = vld [vmem:[#allocation10 + $0x30] sm:$0xff]
    %v1976 = vld [vmem:[#allocation10 + $0x38] sm:$0xff]
    %v1977 = vld [vmem:[#allocation10 + $0x40] sm:$0xff]
    %v1978 = vld [vmem:[#allocation10 + $0x48] sm:$0xff]
    %v1979 = vld [vmem:[#allocation10 + $0x50] sm:$0xff]
    %v1980 = vld [vmem:[#allocation10 + $0x58] sm:$0xff]
    %v1981 = vld [vmem:[#allocation10 + $0x60] sm:$0xff]
    %v1982 = vld [vmem:[#allocation10 + $0x68] sm:$0xff]
    %v1983 = vld [vmem:[#allocation10 + $0x70] sm:$0xff]
    %v1984 = vld [vmem:[#allocation10 + $0x78] sm:$0xff]
    %v1985 = vld [vmem:[#allocation11] sm:$0x3]
    %v1986 = vpack.c.bf16 %v1886, %v1885
    %v1987 = vpack.c.bf16 %v1888, %v1887
    %v1988 = vpack.c.bf16 %v1966, %v1965
    %v1989 = vpack.c.bf16 %v1968, %v1967
    %v1991 = vperm.slane %v1985, 0
    %v1992 = vperm.slane %v1985, 1
    %v2011 = vunpack.c.l.b16 %v1969
    %v2012 = vunpack.c.h.b16 %v1969
    %v2013 = vunpack.c.l.b16 %v1970
    %v2014 = vunpack.c.h.b16 %v1970
    %v2015 = vunpack.c.l.b16 %v1971
    %v2016 = vunpack.c.h.b16 %v1971
    %v2017 = vunpack.c.l.b16 %v1972
    %v2018 = vunpack.c.h.b16 %v1972
    %v2019 = vunpack.c.l.b16 %v1973
    %v2020 = vunpack.c.h.b16 %v1973
    %v2021 = vunpack.c.l.b16 %v1974
    %v2022 = vunpack.c.h.b16 %v1974
    %v2023 = vunpack.c.l.b16 %v1975
    %v2024 = vunpack.c.h.b16 %v1975
    %v2025 = vunpack.c.l.b16 %v1976
    %v2026 = vunpack.c.h.b16 %v1976
    %v2027 = vunpack.c.l.b16 %v1977
    %v2028 = vunpack.c.h.b16 %v1977
    %v2029 = vunpack.c.l.b16 %v1978
    %v2030 = vunpack.c.h.b16 %v1978
    %v2031 = vunpack.c.l.b16 %v1979
    %v2032 = vunpack.c.h.b16 %v1979
    %v2033 = vunpack.c.l.b16 %v1980
    %v2034 = vunpack.c.h.b16 %v1980
    %v2035 = vunpack.c.l.b16 %v1981
    %v2036 = vunpack.c.h.b16 %v1981
    %v2037 = vunpack.c.l.b16 %v1982
    %v2038 = vunpack.c.h.b16 %v1982
    %v2039 = vunpack.c.l.b16 %v1983
    %v2040 = vunpack.c.h.b16 %v1983
    %v2041 = vunpack.c.l.b16 %v1984
    %v2042 = vunpack.c.h.b16 %v1984
    %v2043 = vpack.c.b16 %v2013, %v2011
    %v2044 = vpack.c.b16 %v2014, %v2012
    %v2045 = vpack.c.b16 %v2017, %v2015
    %v2046 = vpack.c.b16 %v2018, %v2016
    %v2047 = vpack.c.b16 %v2021, %v2019
    %v2048 = vpack.c.b16 %v2022, %v2020
    %v2049 = vpack.c.b16 %v2025, %v2023
    %v2050 = vpack.c.b16 %v2026, %v2024
    %v2051 = vpack.c.b16 %v2029, %v2027
    %v2052 = vpack.c.b16 %v2030, %v2028
    %v2053 = vpack.c.b16 %v2033, %v2031
    %v2054 = vpack.c.b16 %v2034, %v2032
    %v2055 = vpack.c.b16 %v2037, %v2035
    %v2056 = vpack.c.b16 %v2038, %v2036
    %v2057 = vpack.c.b16 %v2041, %v2039
    %v2058 = vpack.c.b16 %v2042, %v2040
    %2075 = vmatpush.bf16.msra.mxu0 %v2057
    %2076 = vmatpush.bf16.msra.mxu0 %v2055
    %2077 = vmatpush.bf16.msra.mxu0 %v2053
    %2078 = vmatpush.bf16.msra.mxu0 %v2051
    %2079 = vmatpush.bf16.msra.mxu0 %v2049
    %2080 = vmatpush.bf16.msra.mxu0 %v2047
    %2081 = vmatpush.bf16.msra.mxu0 %v2045
    %2082 = vmatpush.bf16.msra.mxu0 %v2043
    %2083 = vmatmul.bf16.gmra.mxu0 %v1986
    %v2084 = vpop.f32.mrf.mxu0
    %v2085 = vadd.f32 %v1991, %v2084
    %v2086 = vpop.f32.mrf.mxu0
    %v2087 = vadd.f32 %v1991, %v2086
    %2088 = vmatmul.bf16.gmra.mxu0 %v1987
    %v2089 = vpop.f32.mrf.mxu0
    %v2090 = vadd.f32 %v1991, %v2089
    %v2091 = vpop.f32.mrf.mxu0
    %v2092 = vadd.f32 %v1991, %v2091
    %2093 = vmatmul.bf16.gmra.mxu0 %v1988
    %v2094 = vpop.f32.mrf.mxu0
    %v2095 = vpop.f32.mrf.mxu0
    %2096 = vmatmul.bf16.gmra.mxu0 %v1989
    %v2097 = vpop.f32.mrf.mxu0
    %v2098 = vpop.f32.mrf.mxu0
    %2099 = vdwg.mxu0
    %2100 = vmatpush.bf16.msra.mxu0 %v2058
    %2101 = vmatpush.bf16.msra.mxu0 %v2056
    %2102 = vmatpush.bf16.msra.mxu0 %v2054
    %2103 = vmatpush.bf16.msra.mxu0 %v2052
    %2104 = vmatpush.bf16.msra.mxu0 %v2050
    %2105 = vmatpush.bf16.msra.mxu0 %v2048
    %2106 = vmatpush.bf16.msra.mxu0 %v2046
    %2107 = vmatpush.bf16.msra.mxu0 %v2044
    %2108 = vmatmul.bf16.gmra.mxu0 %v1986
    %v2109 = vpop.f32.mrf.mxu0
    %v2110 = vpop.f32.mrf.mxu0
    %2111 = vmatmul.bf16.gmra.mxu0 %v1987
    %v2112 = vpop.f32.mrf.mxu0
    %v2113 = vpop.f32.mrf.mxu0
    %2114 = vmatmul.bf16.gmra.mxu0 %v1988
    %v2115 = vpop.f32.mrf.mxu0
    %v2116 = vadd.f32 %v1992, %v2115
    %v2117 = vpop.f32.mrf.mxu0
    %v2118 = vadd.f32 %v1992, %v2117
    %2119 = vmatmul.bf16.gmra.mxu0 %v1989
    %v2120 = vpop.f32.mrf.mxu0
    %v2121 = vadd.f32 %v1992, %v2120
    %v2122 = vpop.f32.mrf.mxu0
    %v2123 = vadd.f32 %v1992, %v2122
    %2124 = vdwg.mxu0
    %v2125 = vmax.f32 %v2085, 0.0
    %v2126 = vmax.f32 %v2087, 0.0
    %v2127 = vmax.f32 %v2090, 0.0
    %v2128 = vmax.f32 %v2092, 0.0
    %v2129 = vmax.f32 %v2116, 0.0
    %v2130 = vmax.f32 %v2118, 0.0
    %v2131 = vmax.f32 %v2121, 0.0
    %v2132 = vmax.f32 %v2123, 0.0
    %v2133 = vld [vmem:[%s8] sm:$0xff]
    %v2134 = vld [vmem:[%s8 + $0x8] sm:$0xff]
    %v2135 = vld [vmem:[%s8 + $0x10] sm:$0xff]
    %v2136 = vld [vmem:[%s8 + $0x18] sm:$0xff]
    %v2137 = vld [vmem:[%s8 + $0x20] sm:$0xff]
    %v2138 = vld [vmem:[%s8 + $0x28] sm:$0xff]
    %v2139 = vld [vmem:[%s8 + $0x30] sm:$0xff]
    %v2140 = vld [vmem:[%s8 + $0x38] sm:$0xff]
    %v2141 = vld [vmem:[%s8 + $0x40] sm:$0xff]
    %v2142 = vld [vmem:[%s8 + $0x48] sm:$0xff]
    %v2143 = vld [vmem:[%s8 + $0x50] sm:$0xff]
    %v2144 = vld [vmem:[%s8 + $0x58] sm:$0xff]
    %v2145 = vld [vmem:[%s8 + $0x60] sm:$0xff]
    %v2146 = vld [vmem:[%s8 + $0x68] sm:$0xff]
    %v2147 = vld [vmem:[%s8 + $0x70] sm:$0xff]
    %v2148 = vld [vmem:[%s8 + $0x78] sm:$0xff]
    %v2149 = vld [vmem:[%s8 + $0x80] sm:$0xff]
    %v2150 = vld [vmem:[%s8 + $0x88] sm:$0xff]
    %v2151 = vld [vmem:[%s8 + $0x90] sm:$0xff]
    %v2152 = vld [vmem:[%s8 + $0x98] sm:$0xff]
    %v2153 = vld [vmem:[%s8 + $0xa0] sm:$0xff]
    %v2154 = vld [vmem:[%s8 + $0xa8] sm:$0xff]
    %v2155 = vld [vmem:[%s8 + $0xb0] sm:$0xff]
    %v2156 = vld [vmem:[%s8 + $0xb8] sm:$0xff]
    %v2157 = vld [vmem:[%s8 + $0xc0] sm:$0xff]
    %v2158 = vld [vmem:[%s8 + $0xc8] sm:$0xff]
    %v2159 = vld [vmem:[%s8 + $0xd0] sm:$0xff]
    %v2160 = vld [vmem:[%s8 + $0xd8] sm:$0xff]
    %v2161 = vld [vmem:[%s8 + $0xe0] sm:$0xff]
    %v2162 = vld [vmem:[%s8 + $0xe8] sm:$0xff]
    %v2163 = vld [vmem:[%s8 + $0xf0] sm:$0xff]
    %v2164 = vld [vmem:[%s8 + $0xf8] sm:$0xff]
    %v2165 = vld [vmem:[%s8 + $0x100] sm:$0xff]
    %v2166 = vld [vmem:[%s8 + $0x108] sm:$0xff]
    %v2167 = vld [vmem:[%s8 + $0x110] sm:$0xff]
    %v2168 = vld [vmem:[%s8 + $0x118] sm:$0xff]
    %v2169 = vld [vmem:[%s8 + $0x120] sm:$0xff]
    %v2170 = vld [vmem:[%s8 + $0x128] sm:$0xff]
    %v2171 = vld [vmem:[%s8 + $0x130] sm:$0xff]
    %v2172 = vld [vmem:[%s8 + $0x138] sm:$0xff]
    %v2173 = vld [vmem:[%s8 + $0x140] sm:$0xff]
    %v2174 = vld [vmem:[%s8 + $0x148] sm:$0xff]
    %v2175 = vld [vmem:[%s8 + $0x150] sm:$0xff]
    %v2176 = vld [vmem:[%s8 + $0x158] sm:$0xff]
    %v2177 = vld [vmem:[%s8 + $0x160] sm:$0xff]
    %v2178 = vld [vmem:[%s8 + $0x168] sm:$0xff]
    %v2179 = vld [vmem:[%s8 + $0x170] sm:$0xff]
    %v2180 = vld [vmem:[%s8 + $0x178] sm:$0xff]
    %v2181 = vld [vmem:[%s8 + $0x180] sm:$0xff]
    %v2182 = vld [vmem:[%s8 + $0x188] sm:$0xff]
    %v2183 = vld [vmem:[%s8 + $0x190] sm:$0xff]
    %v2184 = vld [vmem:[%s8 + $0x198] sm:$0xff]
    %v2185 = vld [vmem:[%s8 + $0x1a0] sm:$0xff]
    %v2186 = vld [vmem:[%s8 + $0x1a8] sm:$0xff]
    %v2187 = vld [vmem:[%s8 + $0x1b0] sm:$0xff]
    %v2188 = vld [vmem:[%s8 + $0x1b8] sm:$0xff]
    %v2189 = vld [vmem:[%s8 + $0x1c0] sm:$0xff]
    %v2190 = vld [vmem:[%s8 + $0x1c8] sm:$0xff]
    %v2191 = vld [vmem:[%s8 + $0x1d0] sm:$0xff]
    %v2192 = vld [vmem:[%s8 + $0x1d8] sm:$0xff]
    %v2193 = vld [vmem:[%s8 + $0x1e0] sm:$0xff]
    %v2194 = vld [vmem:[%s8 + $0x1e8] sm:$0xff]
    %v2195 = vld [vmem:[%s8 + $0x1f0] sm:$0xff]
    %v2196 = vld [vmem:[%s8 + $0x1f8] sm:$0xff]
    %v2197 = vld [vmem:[%s9] sm:$0xff]
    %v2198 = vpack.c.bf16 %v2126, %v2125
    %v2199 = vpack.c.bf16 %v2128, %v2127
    %v2201 = vperm.slane %v2197, 0
    %v2202 = vperm.slane %v2197, 1
    %v2203 = vperm.slane %v2197, 2
    %v2204 = vperm.slane %v2197, 3
    %v2205 = vperm.slane %v2197, 4
    %v2206 = vperm.slane %v2197, 5
    %v2207 = vperm.slane %v2197, 6
    %v2208 = vperm.slane %v2197, 7
    %v2281 = vunpack.c.l.b16 %v2133
    %v2282 = vunpack.c.h.b16 %v2133
    %v2283 = vunpack.c.l.b16 %v2134
    %v2284 = vunpack.c.h.b16 %v2134
    %v2285 = vunpack.c.l.b16 %v2135
    %v2286 = vunpack.c.h.b16 %v2135
    %v2287 = vunpack.c.l.b16 %v2136
    %v2288 = vunpack.c.h.b16 %v2136
    %v2289 = vunpack.c.l.b16 %v2137
    %v2290 = vunpack.c.h.b16 %v2137
    %v2291 = vunpack.c.l.b16 %v2138
    %v2292 = vunpack.c.h.b16 %v2138
    %v2293 = vunpack.c.l.b16 %v2139
    %v2294 = vunpack.c.h.b16 %v2139
    %v2295 = vunpack.c.l.b16 %v2140
    %v2296 = vunpack.c.h.b16 %v2140
    %v2297 = vunpack.c.l.b16 %v2141
    %v2298 = vunpack.c.h.b16 %v2141
    %v2299 = vunpack.c.l.b16 %v2142
    %v2300 = vunpack.c.h.b16 %v2142
    %v2301 = vunpack.c.l.b16 %v2143
    %v2302 = vunpack.c.h.b16 %v2143
    %v2303 = vunpack.c.l.b16 %v2144
    %v2304 = vunpack.c.h.b16 %v2144
    %v2305 = vunpack.c.l.b16 %v2145
    %v2306 = vunpack.c.h.b16 %v2145
    %v2307 = vunpack.c.l.b16 %v2146
    %v2308 = vunpack.c.h.b16 %v2146
    %v2309 = vunpack.c.l.b16 %v2147
    %v2310 = vunpack.c.h.b16 %v2147
    %v2311 = vunpack.c.l.b16 %v2148
    %v2312 = vunpack.c.h.b16 %v2148
    %v2313 = vunpack.c.l.b16 %v2149
    %v2314 = vunpack.c.h.b16 %v2149
    %v2315 = vunpack.c.l.b16 %v2150
    %v2316 = vunpack.c.h.b16 %v2150
    %v2317 = vunpack.c.l.b16 %v2151
    %v2318 = vunpack.c.h.b16 %v2151
    %v2319 = vunpack.c.l.b16 %v2152
    %v2320 = vunpack.c.h.b16 %v2152
    %v2321 = vunpack.c.l.b16 %v2153
    %v2322 = vunpack.c.h.b16 %v2153
    %v2323 = vunpack.c.l.b16 %v2154
    %v2324 = vunpack.c.h.b16 %v2154
    %v2325 = vunpack.c.l.b16 %v2155
    %v2326 = vunpack.c.h.b16 %v2155
    %v2327 = vunpack.c.l.b16 %v2156
    %v2328 = vunpack.c.h.b16 %v2156
    %v2329 = vunpack.c.l.b16 %v2157
    %v2330 = vunpack.c.h.b16 %v2157
    %v2331 = vunpack.c.l.b16 %v2158
    %v2332 = vunpack.c.h.b16 %v2158
    %v2333 = vunpack.c.l.b16 %v2159
    %v2334 = vunpack.c.h.b16 %v2159
    %v2335 = vunpack.c.l.b16 %v2160
    %v2336 = vunpack.c.h.b16 %v2160
    %v2337 = vunpack.c.l.b16 %v2161
    %v2338 = vunpack.c.h.b16 %v2161
    %v2339 = vunpack.c.l.b16 %v2162
    %v2340 = vunpack.c.h.b16 %v2162
    %v2341 = vunpack.c.l.b16 %v2163
    %v2342 = vunpack.c.h.b16 %v2163
    %v2343 = vunpack.c.l.b16 %v2164
    %v2344 = vunpack.c.h.b16 %v2164
    %v2345 = vunpack.c.l.b16 %v2165
    %v2346 = vunpack.c.h.b16 %v2165
    %v2347 = vunpack.c.l.b16 %v2166
    %v2348 = vunpack.c.h.b16 %v2166
    %v2349 = vunpack.c.l.b16 %v2167
    %v2350 = vunpack.c.h.b16 %v2167
    %v2351 = vunpack.c.l.b16 %v2168
    %v2352 = vunpack.c.h.b16 %v2168
    %v2353 = vunpack.c.l.b16 %v2169
    %v2354 = vunpack.c.h.b16 %v2169
    %v2355 = vunpack.c.l.b16 %v2170
    %v2356 = vunpack.c.h.b16 %v2170
    %v2357 = vunpack.c.l.b16 %v2171
    %v2358 = vunpack.c.h.b16 %v2171
    %v2359 = vunpack.c.l.b16 %v2172
    %v2360 = vunpack.c.h.b16 %v2172
    %v2361 = vunpack.c.l.b16 %v2173
    %v2362 = vunpack.c.h.b16 %v2173
    %v2363 = vunpack.c.l.b16 %v2174
    %v2364 = vunpack.c.h.b16 %v2174
    %v2365 = vunpack.c.l.b16 %v2175
    %v2366 = vunpack.c.h.b16 %v2175
    %v2367 = vunpack.c.l.b16 %v2176
    %v2368 = vunpack.c.h.b16 %v2176
    %v2369 = vunpack.c.l.b16 %v2177
    %v2370 = vunpack.c.h.b16 %v2177
    %v2371 = vunpack.c.l.b16 %v2178
    %v2372 = vunpack.c.h.b16 %v2178
    %v2373 = vunpack.c.l.b16 %v2179
    %v2374 = vunpack.c.h.b16 %v2179
    %v2375 = vunpack.c.l.b16 %v2180
    %v2376 = vunpack.c.h.b16 %v2180
    %v2377 = vunpack.c.l.b16 %v2181
    %v2378 = vunpack.c.h.b16 %v2181
    %v2379 = vunpack.c.l.b16 %v2182
    %v2380 = vunpack.c.h.b16 %v2182
    %v2381 = vunpack.c.l.b16 %v2183
    %v2382 = vunpack.c.h.b16 %v2183
    %v2383 = vunpack.c.l.b16 %v2184
    %v2384 = vunpack.c.h.b16 %v2184
    %v2385 = vunpack.c.l.b16 %v2185
    %v2386 = vunpack.c.h.b16 %v2185
    %v2387 = vunpack.c.l.b16 %v2186
    %v2388 = vunpack.c.h.b16 %v2186
    %v2389 = vunpack.c.l.b16 %v2187
    %v2390 = vunpack.c.h.b16 %v2187
    %v2391 = vunpack.c.l.b16 %v2188
    %v2392 = vunpack.c.h.b16 %v2188
    %v2393 = vunpack.c.l.b16 %v2189
    %v2394 = vunpack.c.h.b16 %v2189
    %v2395 = vunpack.c.l.b16 %v2190
    %v2396 = vunpack.c.h.b16 %v2190
    %v2397 = vunpack.c.l.b16 %v2191
    %v2398 = vunpack.c.h.b16 %v2191
    %v2399 = vunpack.c.l.b16 %v2192
    %v2400 = vunpack.c.h.b16 %v2192
    %v2401 = vunpack.c.l.b16 %v2193
    %v2402 = vunpack.c.h.b16 %v2193
    %v2403 = vunpack.c.l.b16 %v2194
    %v2404 = vunpack.c.h.b16 %v2194
    %v2405 = vunpack.c.l.b16 %v2195
    %v2406 = vunpack.c.h.b16 %v2195
    %v2407 = vunpack.c.l.b16 %v2196
    %v2408 = vunpack.c.h.b16 %v2196
    %v2409 = vpack.c.b16 %v2289, %v2281
    %v2410 = vpack.c.b16 %v2290, %v2282
    %v2411 = vpack.c.b16 %v2291, %v2283
    %v2412 = vpack.c.b16 %v2292, %v2284
    %v2413 = vpack.c.b16 %v2293, %v2285
    %v2414 = vpack.c.b16 %v2294, %v2286
    %v2415 = vpack.c.b16 %v2295, %v2287
    %v2416 = vpack.c.b16 %v2296, %v2288
    %v2417 = vpack.c.b16 %v2305, %v2297
    %v2418 = vpack.c.b16 %v2306, %v2298
    %v2419 = vpack.c.b16 %v2307, %v2299
    %v2420 = vpack.c.b16 %v2308, %v2300
    %v2421 = vpack.c.b16 %v2309, %v2301
    %v2422 = vpack.c.b16 %v2310, %v2302
    %v2423 = vpack.c.b16 %v2311, %v2303
    %v2424 = vpack.c.b16 %v2312, %v2304
    %v2425 = vpack.c.b16 %v2321, %v2313
    %v2426 = vpack.c.b16 %v2322, %v2314
    %v2427 = vpack.c.b16 %v2323, %v2315
    %v2428 = vpack.c.b16 %v2324, %v2316
    %v2429 = vpack.c.b16 %v2325, %v2317
    %v2430 = vpack.c.b16 %v2326, %v2318
    %v2431 = vpack.c.b16 %v2327, %v2319
    %v2432 = vpack.c.b16 %v2328, %v2320
    %v2433 = vpack.c.b16 %v2337, %v2329
    %v2434 = vpack.c.b16 %v2338, %v2330
    %v2435 = vpack.c.b16 %v2339, %v2331
    %v2436 = vpack.c.b16 %v2340, %v2332
    %v2437 = vpack.c.b16 %v2341, %v2333
    %v2438 = vpack.c.b16 %v2342, %v2334
    %v2439 = vpack.c.b16 %v2343, %v2335
    %v2440 = vpack.c.b16 %v2344, %v2336
    %v2441 = vpack.c.b16 %v2353, %v2345
    %v2442 = vpack.c.b16 %v2354, %v2346
    %v2443 = vpack.c.b16 %v2355, %v2347
    %v2444 = vpack.c.b16 %v2356, %v2348
    %v2445 = vpack.c.b16 %v2357, %v2349
    %v2446 = vpack.c.b16 %v2358, %v2350
    %v2447 = vpack.c.b16 %v2359, %v2351
    %v2448 = vpack.c.b16 %v2360, %v2352
    %v2449 = vpack.c.b16 %v2369, %v2361
    %v2450 = vpack.c.b16 %v2370, %v2362
    %v2451 = vpack.c.b16 %v2371, %v2363
    %v2452 = vpack.c.b16 %v2372, %v2364
    %v2453 = vpack.c.b16 %v2373, %v2365
    %v2454 = vpack.c.b16 %v2374, %v2366
    %v2455 = vpack.c.b16 %v2375, %v2367
    %v2456 = vpack.c.b16 %v2376, %v2368
    %v2457 = vpack.c.b16 %v2385, %v2377
    %v2458 = vpack.c.b16 %v2386, %v2378
    %v2459 = vpack.c.b16 %v2387, %v2379
    %v2460 = vpack.c.b16 %v2388, %v2380
    %v2461 = vpack.c.b16 %v2389, %v2381
    %v2462 = vpack.c.b16 %v2390, %v2382
    %v2463 = vpack.c.b16 %v2391, %v2383
    %v2464 = vpack.c.b16 %v2392, %v2384
    %v2465 = vpack.c.b16 %v2401, %v2393
    %v2466 = vpack.c.b16 %v2402, %v2394
    %v2467 = vpack.c.b16 %v2403, %v2395
    %v2468 = vpack.c.b16 %v2404, %v2396
    %v2469 = vpack.c.b16 %v2405, %v2397
    %v2470 = vpack.c.b16 %v2406, %v2398
    %v2471 = vpack.c.b16 %v2407, %v2399
    %v2472 = vpack.c.b16 %v2408, %v2400
    %2537 = vmatpush.bf16.msra.mxu0 %v2465
    %2538 = vmatpush.bf16.msra.mxu0 %v2457
    %2539 = vmatpush.bf16.msra.mxu0 %v2449
    %2540 = vmatpush.bf16.msra.mxu0 %v2441
    %2541 = vmatpush.bf16.msra.mxu0 %v2433
    %2542 = vmatpush.bf16.msra.mxu0 %v2425
    %2543 = vmatpush.bf16.msra.mxu0 %v2417
    %2544 = vmatpush.bf16.msra.mxu0 %v2409
    %2545 = vmatmul.bf16.gmra.mxu0 %v2198
    %v2546 = vpop.f32.mrf.mxu0
    %v2547 = vadd.f32 %v2201, %v2546
    %v2548 = vpop.f32.mrf.mxu0
    %v2549 = vadd.f32 %v2201, %v2548
    %2550 = vmatmul.bf16.gmra.mxu0 %v2199
    %v2551 = vpop.f32.mrf.mxu0
    %v2552 = vadd.f32 %v2201, %v2551
    %v2553 = vpop.f32.mrf.mxu0
    %v2554 = vadd.f32 %v2201, %v2553
    %2555 = vdwg.mxu0
    %2556 = vmatpush.bf16.msra.mxu0 %v2466
    %2557 = vmatpush.bf16.msra.mxu0 %v2458
    %2558 = vmatpush.bf16.msra.mxu0 %v2450
    %2559 = vmatpush.bf16.msra.mxu0 %v2442
    %2560 = vmatpush.bf16.msra.mxu0 %v2434
    %2561 = vmatpush.bf16.msra.mxu0 %v2426
    %2562 = vmatpush.bf16.msra.mxu0 %v2418
    %2563 = vmatpush.bf16.msra.mxu0 %v2410
    %2564 = vmatmul.bf16.gmra.mxu0 %v2198
    %v2565 = vpop.f32.mrf.mxu0
    %v2566 = vadd.f32 %v2202, %v2565
    %v2567 = vpop.f32.mrf.mxu0
    %v2568 = vadd.f32 %v2202, %v2567
    %2569 = vmatmul.bf16.gmra.mxu0 %v2199
    %v2570 = vpop.f32.mrf.mxu0
    %v2571 = vadd.f32 %v2202, %v2570
    %v2572 = vpop.f32.mrf.mxu0
    %v2573 = vadd.f32 %v2202, %v2572
    %2574 = vdwg.mxu0
    %2575 = vmatpush.bf16.msra.mxu0 %v2467
    %2576 = vmatpush.bf16.msra.mxu0 %v2459
    %2577 = vmatpush.bf16.msra.mxu0 %v2451
    %2578 = vmatpush.bf16.msra.mxu0 %v2443
    %2579 = vmatpush.bf16.msra.mxu0 %v2435
    %2580 = vmatpush.bf16.msra.mxu0 %v2427
    %2581 = vmatpush.bf16.msra.mxu0 %v2419
    %2582 = vmatpush.bf16.msra.mxu0 %v2411
    %2583 = vmatmul.bf16.gmra.mxu0 %v2198
    %v2584 = vpop.f32.mrf.mxu0
    %v2585 = vadd.f32 %v2203, %v2584
    %v2586 = vpop.f32.mrf.mxu0
    %v2587 = vadd.f32 %v2203, %v2586
    %2588 = vmatmul.bf16.gmra.mxu0 %v2199
    %v2589 = vpop.f32.mrf.mxu0
    %v2590 = vadd.f32 %v2203, %v2589
    %v2591 = vpop.f32.mrf.mxu0
    %v2592 = vadd.f32 %v2203, %v2591
    %2593 = vdwg.mxu0
    %2594 = vmatpush.bf16.msra.mxu0 %v2468
    %2595 = vmatpush.bf16.msra.mxu0 %v2460
    %2596 = vmatpush.bf16.msra.mxu0 %v2452
    %2597 = vmatpush.bf16.msra.mxu0 %v2444
    %2598 = vmatpush.bf16.msra.mxu0 %v2436
    %2599 = vmatpush.bf16.msra.mxu0 %v2428
    %2600 = vmatpush.bf16.msra.mxu0 %v2420
    %2601 = vmatpush.bf16.msra.mxu0 %v2412
    %2602 = vmatmul.bf16.gmra.mxu0 %v2198
    %v2603 = vpop.f32.mrf.mxu0
    %v2604 = vadd.f32 %v2204, %v2603
    %v2605 = vpop.f32.mrf.mxu0
    %v2606 = vadd.f32 %v2204, %v2605
    %2607 = vmatmul.bf16.gmra.mxu0 %v2199
    %v2608 = vpop.f32.mrf.mxu0
    %v2609 = vadd.f32 %v2204, %v2608
    %v2610 = vpop.f32.mrf.mxu0
    %v2611 = vadd.f32 %v2204, %v2610
    %2612 = vdwg.mxu0
    %2613 = vmatpush.bf16.msra.mxu0 %v2469
    %2614 = vmatpush.bf16.msra.mxu0 %v2461
    %2615 = vmatpush.bf16.msra.mxu0 %v2453
    %2616 = vmatpush.bf16.msra.mxu0 %v2445
    %2617 = vmatpush.bf16.msra.mxu0 %v2437
    %2618 = vmatpush.bf16.msra.mxu0 %v2429
    %2619 = vmatpush.bf16.msra.mxu0 %v2421
    %2620 = vmatpush.bf16.msra.mxu0 %v2413
    %2621 = vmatmul.bf16.gmra.mxu0 %v2198
    %v2622 = vpop.f32.mrf.mxu0
    %v2623 = vadd.f32 %v2205, %v2622
    %v2624 = vpop.f32.mrf.mxu0
    %v2625 = vadd.f32 %v2205, %v2624
    %2626 = vmatmul.bf16.gmra.mxu0 %v2199
    %v2627 = vpop.f32.mrf.mxu0
    %v2628 = vadd.f32 %v2205, %v2627
    %v2629 = vpop.f32.mrf.mxu0
    %v2630 = vadd.f32 %v2205, %v2629
    %2631 = vdwg.mxu0
    %2632 = vmatpush.bf16.msra.mxu0 %v2470
    %2633 = vmatpush.bf16.msra.mxu0 %v2462
    %2634 = vmatpush.bf16.msra.mxu0 %v2454
    %2635 = vmatpush.bf16.msra.mxu0 %v2446
    %2636 = vmatpush.bf16.msra.mxu0 %v2438
    %2637 = vmatpush.bf16.msra.mxu0 %v2430
    %2638 = vmatpush.bf16.msra.mxu0 %v2422
    %2639 = vmatpush.bf16.msra.mxu0 %v2414
    %2640 = vmatmul.bf16.gmra.mxu0 %v2198
    %v2641 = vpop.f32.mrf.mxu0
    %v2642 = vadd.f32 %v2206, %v2641
    %v2643 = vpop.f32.mrf.mxu0
    %v2644 = vadd.f32 %v2206, %v2643
    %2645 = vmatmul.bf16.gmra.mxu0 %v2199
    %v2646 = vpop.f32.mrf.mxu0
    %v2647 = vadd.f32 %v2206, %v2646
    %v2648 = vpop.f32.mrf.mxu0
    %v2649 = vadd.f32 %v2206, %v2648
    %2650 = vdwg.mxu0
    %2651 = vmatpush.bf16.msra.mxu0 %v2471
    %2652 = vmatpush.bf16.msra.mxu0 %v2463
    %2653 = vmatpush.bf16.msra.mxu0 %v2455
    %2654 = vmatpush.bf16.msra.mxu0 %v2447
    %2655 = vmatpush.bf16.msra.mxu0 %v2439
    %2656 = vmatpush.bf16.msra.mxu0 %v2431
    %2657 = vmatpush.bf16.msra.mxu0 %v2423
    %2658 = vmatpush.bf16.msra.mxu0 %v2415
    %2659 = vmatmul.bf16.gmra.mxu0 %v2198
    %v2660 = vpop.f32.mrf.mxu0
    %v2661 = vadd.f32 %v2207, %v2660
    %v2662 = vpop.f32.mrf.mxu0
    %v2663 = vadd.f32 %v2207, %v2662
    %2664 = vmatmul.bf16.gmra.mxu0 %v2199
    %v2665 = vpop.f32.mrf.mxu0
    %v2666 = vadd.f32 %v2207, %v2665
    %v2667 = vpop.f32.mrf.mxu0
    %v2668 = vadd.f32 %v2207, %v2667
    %2669 = vdwg.mxu0
    %2670 = vmatpush.bf16.msra.mxu0 %v2472
    %2671 = vmatpush.bf16.msra.mxu0 %v2464
    %2672 = vmatpush.bf16.msra.mxu0 %v2456
    %2673 = vmatpush.bf16.msra.mxu0 %v2448
    %2674 = vmatpush.bf16.msra.mxu0 %v2440
    %2675 = vmatpush.bf16.msra.mxu0 %v2432
    %2676 = vmatpush.bf16.msra.mxu0 %v2424
    %2677 = vmatpush.bf16.msra.mxu0 %v2416
    %2678 = vmatmul.bf16.gmra.mxu0 %v2198
    %v2679 = vpop.f32.mrf.mxu0
    %v2680 = vadd.f32 %v2208, %v2679
    %v2681 = vpop.f32.mrf.mxu0
    %v2682 = vadd.f32 %v2208, %v2681
    %2683 = vmatmul.bf16.gmra.mxu0 %v2199
    %v2684 = vpop.f32.mrf.mxu0
    %v2685 = vadd.f32 %v2208, %v2684
    %v2686 = vpop.f32.mrf.mxu0
    %v2687 = vadd.f32 %v2208, %v2686
    %2688 = vdwg.mxu0
    %v2689 = vmax.f32 %v2547, 0.0
    %v2690 = vmax.f32 %v2566, 0.0
    %v2691 = vmax.f32 %v2585, 0.0
    %v2692 = vmax.f32 %v2604, 0.0
    %v2693 = vmax.f32 %v2623, 0.0
    %v2694 = vmax.f32 %v2642, 0.0
    %v2695 = vmax.f32 %v2661, 0.0
    %v2696 = vmax.f32 %v2680, 0.0
    %v2697 = vmax.f32 %v2549, 0.0
    %v2698 = vmax.f32 %v2568, 0.0
    %v2699 = vmax.f32 %v2587, 0.0
    %v2700 = vmax.f32 %v2606, 0.0
    %v2701 = vmax.f32 %v2625, 0.0
    %v2702 = vmax.f32 %v2644, 0.0
    %v2703 = vmax.f32 %v2663, 0.0
    %v2704 = vmax.f32 %v2682, 0.0
    %v2705 = vmax.f32 %v2552, 0.0
    %v2706 = vmax.f32 %v2571, 0.0
    %v2707 = vmax.f32 %v2590, 0.0
    %v2708 = vmax.f32 %v2609, 0.0
    %v2709 = vmax.f32 %v2628, 0.0
    %v2710 = vmax.f32 %v2647, 0.0
    %v2711 = vmax.f32 %v2666, 0.0
    %v2712 = vmax.f32 %v2685, 0.0
    %v2713 = vmax.f32 %v2554, 0.0
    %v2714 = vmax.f32 %v2573, 0.0
    %v2715 = vmax.f32 %v2592, 0.0
    %v2716 = vmax.f32 %v2611, 0.0
    %v2717 = vmax.f32 %v2630, 0.0
    %v2718 = vmax.f32 %v2649, 0.0
    %v2719 = vmax.f32 %v2668, 0.0
    %v2720 = vmax.f32 %v2687, 0.0
    %v2721 = vld [vmem:[#allocation13] sm:$0xff]
    %v2722 = vld [vmem:[#allocation13 + $0x8] sm:$0xff]
    %v2723 = vld [vmem:[#allocation13 + $0x10] sm:$0xff]
    %v2724 = vld [vmem:[#allocation13 + $0x18] sm:$0xff]
    %v2725 = vld [vmem:[#allocation13 + $0x20] sm:$0xff]
    %v2726 = vld [vmem:[#allocation13 + $0x28] sm:$0xff]
    %v2727 = vld [vmem:[#allocation13 + $0x30] sm:$0xff]
    %v2728 = vld [vmem:[#allocation13 + $0x38] sm:$0xff]
    %v2729 = vld [vmem:[#allocation13 + $0x40] sm:$0xff]
    %v2730 = vld [vmem:[#allocation13 + $0x48] sm:$0xff]
    %v2731 = vld [vmem:[#allocation13 + $0x50] sm:$0xff]
    %v2732 = vld [vmem:[#allocation13 + $0x58] sm:$0xff]
    %v2733 = vld [vmem:[#allocation13 + $0x60] sm:$0xff]
    %v2734 = vld [vmem:[#allocation13 + $0x68] sm:$0xff]
    %v2735 = vld [vmem:[#allocation13 + $0x70] sm:$0xff]
    %v2736 = vld [vmem:[#allocation13 + $0x78] sm:$0xff]
    %v2737 = vld [vmem:[#allocation13 + $0x80] sm:$0xff]
    %v2738 = vld [vmem:[#allocation13 + $0x88] sm:$0xff]
    %v2739 = vld [vmem:[#allocation13 + $0x90] sm:$0xff]
    %v2740 = vld [vmem:[#allocation13 + $0x98] sm:$0xff]
    %v2741 = vld [vmem:[#allocation13 + $0xa0] sm:$0xff]
    %v2742 = vld [vmem:[#allocation13 + $0xa8] sm:$0xff]
    %v2743 = vld [vmem:[#allocation13 + $0xb0] sm:$0xff]
    %v2744 = vld [vmem:[#allocation13 + $0xb8] sm:$0xff]
    %v2745 = vld [vmem:[#allocation13 + $0xc0] sm:$0xff]
    %v2746 = vld [vmem:[#allocation13 + $0xc8] sm:$0xff]
    %v2747 = vld [vmem:[#allocation13 + $0xd0] sm:$0xff]
    %v2748 = vld [vmem:[#allocation13 + $0xd8] sm:$0xff]
    %v2749 = vld [vmem:[#allocation13 + $0xe0] sm:$0xff]
    %v2750 = vld [vmem:[#allocation13 + $0xe8] sm:$0xff]
    %v2751 = vld [vmem:[#allocation13 + $0xf0] sm:$0xff]
    %v2752 = vld [vmem:[#allocation13 + $0xf8] sm:$0xff]
    %v2753 = vld [vmem:[#allocation13 + $0x100] sm:$0xff]
    %v2754 = vld [vmem:[#allocation13 + $0x108] sm:$0xff]
    %v2755 = vld [vmem:[#allocation13 + $0x110] sm:$0xff]
    %v2756 = vld [vmem:[#allocation13 + $0x118] sm:$0xff]
    %v2757 = vld [vmem:[#allocation13 + $0x120] sm:$0xff]
    %v2758 = vld [vmem:[#allocation13 + $0x128] sm:$0xff]
    %v2759 = vld [vmem:[#allocation13 + $0x130] sm:$0xff]
    %v2760 = vld [vmem:[#allocation13 + $0x138] sm:$0xff]
    %v2761 = vld [vmem:[#allocation13 + $0x140] sm:$0xff]
    %v2762 = vld [vmem:[#allocation13 + $0x148] sm:$0xff]
    %v2763 = vld [vmem:[#allocation13 + $0x150] sm:$0xff]
    %v2764 = vld [vmem:[#allocation13 + $0x158] sm:$0xff]
    %v2765 = vld [vmem:[#allocation13 + $0x160] sm:$0xff]
    %v2766 = vld [vmem:[#allocation13 + $0x168] sm:$0xff]
    %v2767 = vld [vmem:[#allocation13 + $0x170] sm:$0xff]
    %v2768 = vld [vmem:[#allocation13 + $0x178] sm:$0xff]
    %v2769 = vld [vmem:[#allocation13 + $0x180] sm:$0xff]
    %v2770 = vld [vmem:[#allocation13 + $0x188] sm:$0xff]
    %v2771 = vld [vmem:[#allocation13 + $0x190] sm:$0xff]
    %v2772 = vld [vmem:[#allocation13 + $0x198] sm:$0xff]
    %v2773 = vld [vmem:[#allocation13 + $0x1a0] sm:$0xff]
    %v2774 = vld [vmem:[#allocation13 + $0x1a8] sm:$0xff]
    %v2775 = vld [vmem:[#allocation13 + $0x1b0] sm:$0xff]
    %v2776 = vld [vmem:[#allocation13 + $0x1b8] sm:$0xff]
    %v2777 = vld [vmem:[#allocation13 + $0x1c0] sm:$0xff]
    %v2778 = vld [vmem:[#allocation13 + $0x1c8] sm:$0xff]
    %v2779 = vld [vmem:[#allocation13 + $0x1d0] sm:$0xff]
    %v2780 = vld [vmem:[#allocation13 + $0x1d8] sm:$0xff]
    %v2781 = vld [vmem:[#allocation13 + $0x1e0] sm:$0xff]
    %v2782 = vld [vmem:[#allocation13 + $0x1e8] sm:$0xff]
    %v2783 = vld [vmem:[#allocation13 + $0x1f0] sm:$0xff]
    %v2784 = vld [vmem:[#allocation13 + $0x1f8] sm:$0xff]
    %v2785 = vld [vmem:[#allocation14] sm:$0xff]
    %v2786 = vpack.c.bf16 %v2130, %v2129
    %v2787 = vpack.c.bf16 %v2132, %v2131
    %v2789 = vperm.slane %v2785, 0
    %v2790 = vperm.slane %v2785, 1
    %v2791 = vperm.slane %v2785, 2
    %v2792 = vperm.slane %v2785, 3
    %v2793 = vperm.slane %v2785, 4
    %v2794 = vperm.slane %v2785, 5
    %v2795 = vperm.slane %v2785, 6
    %v2796 = vperm.slane %v2785, 7
    %v2869 = vunpack.c.l.b16 %v2721
    %v2870 = vunpack.c.h.b16 %v2721
    %v2871 = vunpack.c.l.b16 %v2722
    %v2872 = vunpack.c.h.b16 %v2722
    %v2873 = vunpack.c.l.b16 %v2723
    %v2874 = vunpack.c.h.b16 %v2723
    %v2875 = vunpack.c.l.b16 %v2724
    %v2876 = vunpack.c.h.b16 %v2724
    %v2877 = vunpack.c.l.b16 %v2725
    %v2878 = vunpack.c.h.b16 %v2725
    %v2879 = vunpack.c.l.b16 %v2726
    %v2880 = vunpack.c.h.b16 %v2726
    %v2881 = vunpack.c.l.b16 %v2727
    %v2882 = vunpack.c.h.b16 %v2727
    %v2883 = vunpack.c.l.b16 %v2728
    %v2884 = vunpack.c.h.b16 %v2728
    %v2885 = vunpack.c.l.b16 %v2729
    %v2886 = vunpack.c.h.b16 %v2729
    %v2887 = vunpack.c.l.b16 %v2730
    %v2888 = vunpack.c.h.b16 %v2730
    %v2889 = vunpack.c.l.b16 %v2731
    %v2890 = vunpack.c.h.b16 %v2731
    %v2891 = vunpack.c.l.b16 %v2732
    %v2892 = vunpack.c.h.b16 %v2732
    %v2893 = vunpack.c.l.b16 %v2733
    %v2894 = vunpack.c.h.b16 %v2733
    %v2895 = vunpack.c.l.b16 %v2734
    %v2896 = vunpack.c.h.b16 %v2734
    %v2897 = vunpack.c.l.b16 %v2735
    %v2898 = vunpack.c.h.b16 %v2735
    %v2899 = vunpack.c.l.b16 %v2736
    %v2900 = vunpack.c.h.b16 %v2736
    %v2901 = vunpack.c.l.b16 %v2737
    %v2902 = vunpack.c.h.b16 %v2737
    %v2903 = vunpack.c.l.b16 %v2738
    %v2904 = vunpack.c.h.b16 %v2738
    %v2905 = vunpack.c.l.b16 %v2739
    %v2906 = vunpack.c.h.b16 %v2739
    %v2907 = vunpack.c.l.b16 %v2740
    %v2908 = vunpack.c.h.b16 %v2740
    %v2909 = vunpack.c.l.b16 %v2741
    %v2910 = vunpack.c.h.b16 %v2741
    %v2911 = vunpack.c.l.b16 %v2742
    %v2912 = vunpack.c.h.b16 %v2742
    %v2913 = vunpack.c.l.b16 %v2743
    %v2914 = vunpack.c.h.b16 %v2743
    %v2915 = vunpack.c.l.b16 %v2744
    %v2916 = vunpack.c.h.b16 %v2744
    %v2917 = vunpack.c.l.b16 %v2745
    %v2918 = vunpack.c.h.b16 %v2745
    %v2919 = vunpack.c.l.b16 %v2746
    %v2920 = vunpack.c.h.b16 %v2746
    %v2921 = vunpack.c.l.b16 %v2747
    %v2922 = vunpack.c.h.b16 %v2747
    %v2923 = vunpack.c.l.b16 %v2748
    %v2924 = vunpack.c.h.b16 %v2748
    %v2925 = vunpack.c.l.b16 %v2749
    %v2926 = vunpack.c.h.b16 %v2749
    %v2927 = vunpack.c.l.b16 %v2750
    %v2928 = vunpack.c.h.b16 %v2750
    %v2929 = vunpack.c.l.b16 %v2751
    %v2930 = vunpack.c.h.b16 %v2751
    %v2931 = vunpack.c.l.b16 %v2752
    %v2932 = vunpack.c.h.b16 %v2752
    %v2933 = vunpack.c.l.b16 %v2753
    %v2934 = vunpack.c.h.b16 %v2753
    %v2935 = vunpack.c.l.b16 %v2754
    %v2936 = vunpack.c.h.b16 %v2754
    %v2937 = vunpack.c.l.b16 %v2755
    %v2938 = vunpack.c.h.b16 %v2755
    %v2939 = vunpack.c.l.b16 %v2756
    %v2940 = vunpack.c.h.b16 %v2756
    %v2941 = vunpack.c.l.b16 %v2757
    %v2942 = vunpack.c.h.b16 %v2757
    %v2943 = vunpack.c.l.b16 %v2758
    %v2944 = vunpack.c.h.b16 %v2758
    %v2945 = vunpack.c.l.b16 %v2759
    %v2946 = vunpack.c.h.b16 %v2759
    %v2947 = vunpack.c.l.b16 %v2760
    %v2948 = vunpack.c.h.b16 %v2760
    %v2949 = vunpack.c.l.b16 %v2761
    %v2950 = vunpack.c.h.b16 %v2761
    %v2951 = vunpack.c.l.b16 %v2762
    %v2952 = vunpack.c.h.b16 %v2762
    %v2953 = vunpack.c.l.b16 %v2763
    %v2954 = vunpack.c.h.b16 %v2763
    %v2955 = vunpack.c.l.b16 %v2764
    %v2956 = vunpack.c.h.b16 %v2764
    %v2957 = vunpack.c.l.b16 %v2765
    %v2958 = vunpack.c.h.b16 %v2765
    %v2959 = vunpack.c.l.b16 %v2766
    %v2960 = vunpack.c.h.b16 %v2766
    %v2961 = vunpack.c.l.b16 %v2767
    %v2962 = vunpack.c.h.b16 %v2767
    %v2963 = vunpack.c.l.b16 %v2768
    %v2964 = vunpack.c.h.b16 %v2768
    %v2965 = vunpack.c.l.b16 %v2769
    %v2966 = vunpack.c.h.b16 %v2769
    %v2967 = vunpack.c.l.b16 %v2770
    %v2968 = vunpack.c.h.b16 %v2770
    %v2969 = vunpack.c.l.b16 %v2771
    %v2970 = vunpack.c.h.b16 %v2771
    %v2971 = vunpack.c.l.b16 %v2772
    %v2972 = vunpack.c.h.b16 %v2772
    %v2973 = vunpack.c.l.b16 %v2773
    %v2974 = vunpack.c.h.b16 %v2773
    %v2975 = vunpack.c.l.b16 %v2774
    %v2976 = vunpack.c.h.b16 %v2774
    %v2977 = vunpack.c.l.b16 %v2775
    %v2978 = vunpack.c.h.b16 %v2775
    %v2979 = vunpack.c.l.b16 %v2776
    %v2980 = vunpack.c.h.b16 %v2776
    %v2981 = vunpack.c.l.b16 %v2777
    %v2982 = vunpack.c.h.b16 %v2777
    %v2983 = vunpack.c.l.b16 %v2778
    %v2984 = vunpack.c.h.b16 %v2778
    %v2985 = vunpack.c.l.b16 %v2779
    %v2986 = vunpack.c.h.b16 %v2779
    %v2987 = vunpack.c.l.b16 %v2780
    %v2988 = vunpack.c.h.b16 %v2780
    %v2989 = vunpack.c.l.b16 %v2781
    %v2990 = vunpack.c.h.b16 %v2781
    %v2991 = vunpack.c.l.b16 %v2782
    %v2992 = vunpack.c.h.b16 %v2782
    %v2993 = vunpack.c.l.b16 %v2783
    %v2994 = vunpack.c.h.b16 %v2783
    %v2995 = vunpack.c.l.b16 %v2784
    %v2996 = vunpack.c.h.b16 %v2784
    %v2997 = vpack.c.b16 %v2877, %v2869
    %v2998 = vpack.c.b16 %v2878, %v2870
    %v2999 = vpack.c.b16 %v2879, %v2871
    %v3000 = vpack.c.b16 %v2880, %v2872
    %v3001 = vpack.c.b16 %v2881, %v2873
    %v3002 = vpack.c.b16 %v2882, %v2874
    %v3003 = vpack.c.b16 %v2883, %v2875
    %v3004 = vpack.c.b16 %v2884, %v2876
    %v3005 = vpack.c.b16 %v2893, %v2885
    %v3006 = vpack.c.b16 %v2894, %v2886
    %v3007 = vpack.c.b16 %v2895, %v2887
    %v3008 = vpack.c.b16 %v2896, %v2888
    %v3009 = vpack.c.b16 %v2897, %v2889
    %v3010 = vpack.c.b16 %v2898, %v2890
    %v3011 = vpack.c.b16 %v2899, %v2891
    %v3012 = vpack.c.b16 %v2900, %v2892
    %v3013 = vpack.c.b16 %v2909, %v2901
    %v3014 = vpack.c.b16 %v2910, %v2902
    %v3015 = vpack.c.b16 %v2911, %v2903
    %v3016 = vpack.c.b16 %v2912, %v2904
    %v3017 = vpack.c.b16 %v2913, %v2905
    %v3018 = vpack.c.b16 %v2914, %v2906
    %v3019 = vpack.c.b16 %v2915, %v2907
    %v3020 = vpack.c.b16 %v2916, %v2908
    %v3021 = vpack.c.b16 %v2925, %v2917
    %v3022 = vpack.c.b16 %v2926, %v2918
    %v3023 = vpack.c.b16 %v2927, %v2919
    %v3024 = vpack.c.b16 %v2928, %v2920
    %v3025 = vpack.c.b16 %v2929, %v2921
    %v3026 = vpack.c.b16 %v2930, %v2922
    %v3027 = vpack.c.b16 %v2931, %v2923
    %v3028 = vpack.c.b16 %v2932, %v2924
    %v3029 = vpack.c.b16 %v2941, %v2933
    %v3030 = vpack.c.b16 %v2942, %v2934
    %v3031 = vpack.c.b16 %v2943, %v2935
    %v3032 = vpack.c.b16 %v2944, %v2936
    %v3033 = vpack.c.b16 %v2945, %v2937
    %v3034 = vpack.c.b16 %v2946, %v2938
    %v3035 = vpack.c.b16 %v2947, %v2939
    %v3036 = vpack.c.b16 %v2948, %v2940
    %v3037 = vpack.c.b16 %v2957, %v2949
    %v3038 = vpack.c.b16 %v2958, %v2950
    %v3039 = vpack.c.b16 %v2959, %v2951
    %v3040 = vpack.c.b16 %v2960, %v2952
    %v3041 = vpack.c.b16 %v2961, %v2953
    %v3042 = vpack.c.b16 %v2962, %v2954
    %v3043 = vpack.c.b16 %v2963, %v2955
    %v3044 = vpack.c.b16 %v2964, %v2956
    %v3045 = vpack.c.b16 %v2973, %v2965
    %v3046 = vpack.c.b16 %v2974, %v2966
    %v3047 = vpack.c.b16 %v2975, %v2967
    %v3048 = vpack.c.b16 %v2976, %v2968
    %v3049 = vpack.c.b16 %v2977, %v2969
    %v3050 = vpack.c.b16 %v2978, %v2970
    %v3051 = vpack.c.b16 %v2979, %v2971
    %v3052 = vpack.c.b16 %v2980, %v2972
    %v3053 = vpack.c.b16 %v2989, %v2981
    %v3054 = vpack.c.b16 %v2990, %v2982
    %v3055 = vpack.c.b16 %v2991, %v2983
    %v3056 = vpack.c.b16 %v2992, %v2984
    %v3057 = vpack.c.b16 %v2993, %v2985
    %v3058 = vpack.c.b16 %v2994, %v2986
    %v3059 = vpack.c.b16 %v2995, %v2987
    %v3060 = vpack.c.b16 %v2996, %v2988
    %3125 = vmatpush.bf16.msra.mxu0 %v3053
    %3126 = vmatpush.bf16.msra.mxu0 %v3045
    %3127 = vmatpush.bf16.msra.mxu0 %v3037
    %3128 = vmatpush.bf16.msra.mxu0 %v3029
    %3129 = vmatpush.bf16.msra.mxu0 %v3021
    %3130 = vmatpush.bf16.msra.mxu0 %v3013
    %3131 = vmatpush.bf16.msra.mxu0 %v3005
    %3132 = vmatpush.bf16.msra.mxu0 %v2997
    %3133 = vmatmul.bf16.gmra.mxu0 %v2786
    %v3134 = vpop.f32.mrf.mxu0
    %v3135 = vadd.f32 %v2789, %v3134
    %v3136 = vpop.f32.mrf.mxu0
    %v3137 = vadd.f32 %v2789, %v3136
    %3138 = vmatmul.bf16.gmra.mxu0 %v2787
    %v3139 = vpop.f32.mrf.mxu0
    %v3140 = vadd.f32 %v2789, %v3139
    %v3141 = vpop.f32.mrf.mxu0
    %v3142 = vadd.f32 %v2789, %v3141
    %3143 = vdwg.mxu0
    %3144 = vmatpush.bf16.msra.mxu0 %v3054
    %3145 = vmatpush.bf16.msra.mxu0 %v3046
    %3146 = vmatpush.bf16.msra.mxu0 %v3038
    %3147 = vmatpush.bf16.msra.mxu0 %v3030
    %3148 = vmatpush.bf16.msra.mxu0 %v3022
    %3149 = vmatpush.bf16.msra.mxu0 %v3014
    %3150 = vmatpush.bf16.msra.mxu0 %v3006
    %3151 = vmatpush.bf16.msra.mxu0 %v2998
    %3152 = vmatmul.bf16.gmra.mxu0 %v2786
    %v3153 = vpop.f32.mrf.mxu0
    %v3154 = vadd.f32 %v2790, %v3153
    %v3155 = vpop.f32.mrf.mxu0
    %v3156 = vadd.f32 %v2790, %v3155
    %3157 = vmatmul.bf16.gmra.mxu0 %v2787
    %v3158 = vpop.f32.mrf.mxu0
    %v3159 = vadd.f32 %v2790, %v3158
    %v3160 = vpop.f32.mrf.mxu0
    %v3161 = vadd.f32 %v2790, %v3160
    %3162 = vdwg.mxu0
    %3163 = vmatpush.bf16.msra.mxu0 %v3055
    %3164 = vmatpush.bf16.msra.mxu0 %v3047
    %3165 = vmatpush.bf16.msra.mxu0 %v3039
    %3166 = vmatpush.bf16.msra.mxu0 %v3031
    %3167 = vmatpush.bf16.msra.mxu0 %v3023
    %3168 = vmatpush.bf16.msra.mxu0 %v3015
    %3169 = vmatpush.bf16.msra.mxu0 %v3007
    %3170 = vmatpush.bf16.msra.mxu0 %v2999
    %3171 = vmatmul.bf16.gmra.mxu0 %v2786
    %v3172 = vpop.f32.mrf.mxu0
    %v3173 = vadd.f32 %v2791, %v3172
    %v3174 = vpop.f32.mrf.mxu0
    %v3175 = vadd.f32 %v2791, %v3174
    %3176 = vmatmul.bf16.gmra.mxu0 %v2787
    %v3177 = vpop.f32.mrf.mxu0
    %v3178 = vadd.f32 %v2791, %v3177
    %v3179 = vpop.f32.mrf.mxu0
    %v3180 = vadd.f32 %v2791, %v3179
    %3181 = vdwg.mxu0
    %3182 = vmatpush.bf16.msra.mxu0 %v3056
    %3183 = vmatpush.bf16.msra.mxu0 %v3048
    %3184 = vmatpush.bf16.msra.mxu0 %v3040
    %3185 = vmatpush.bf16.msra.mxu0 %v3032
    %3186 = vmatpush.bf16.msra.mxu0 %v3024
    %3187 = vmatpush.bf16.msra.mxu0 %v3016
    %3188 = vmatpush.bf16.msra.mxu0 %v3008
    %3189 = vmatpush.bf16.msra.mxu0 %v3000
    %3190 = vmatmul.bf16.gmra.mxu0 %v2786
    %v3191 = vpop.f32.mrf.mxu0
    %v3192 = vadd.f32 %v2792, %v3191
    %v3193 = vpop.f32.mrf.mxu0
    %v3194 = vadd.f32 %v2792, %v3193
    %3195 = vmatmul.bf16.gmra.mxu0 %v2787
    %v3196 = vpop.f32.mrf.mxu0
    %v3197 = vadd.f32 %v2792, %v3196
    %v3198 = vpop.f32.mrf.mxu0
    %v3199 = vadd.f32 %v2792, %v3198
    %3200 = vdwg.mxu0
    %3201 = vmatpush.bf16.msra.mxu0 %v3057
    %3202 = vmatpush.bf16.msra.mxu0 %v3049
    %3203 = vmatpush.bf16.msra.mxu0 %v3041
    %3204 = vmatpush.bf16.msra.mxu0 %v3033
    %3205 = vmatpush.bf16.msra.mxu0 %v3025
    %3206 = vmatpush.bf16.msra.mxu0 %v3017
    %3207 = vmatpush.bf16.msra.mxu0 %v3009
    %3208 = vmatpush.bf16.msra.mxu0 %v3001
    %3209 = vmatmul.bf16.gmra.mxu0 %v2786
    %v3210 = vpop.f32.mrf.mxu0
    %v3211 = vadd.f32 %v2793, %v3210
    %v3212 = vpop.f32.mrf.mxu0
    %v3213 = vadd.f32 %v2793, %v3212
    %3214 = vmatmul.bf16.gmra.mxu0 %v2787
    %v3215 = vpop.f32.mrf.mxu0
    %v3216 = vadd.f32 %v2793, %v3215
    %v3217 = vpop.f32.mrf.mxu0
    %v3218 = vadd.f32 %v2793, %v3217
    %3219 = vdwg.mxu0
    %3220 = vmatpush.bf16.msra.mxu0 %v3058
    %3221 = vmatpush.bf16.msra.mxu0 %v3050
    %3222 = vmatpush.bf16.msra.mxu0 %v3042
    %3223 = vmatpush.bf16.msra.mxu0 %v3034
    %3224 = vmatpush.bf16.msra.mxu0 %v3026
    %3225 = vmatpush.bf16.msra.mxu0 %v3018
    %3226 = vmatpush.bf16.msra.mxu0 %v3010
    %3227 = vmatpush.bf16.msra.mxu0 %v3002
    %3228 = vmatmul.bf16.gmra.mxu0 %v2786
    %v3229 = vpop.f32.mrf.mxu0
    %v3230 = vadd.f32 %v2794, %v3229
    %v3231 = vpop.f32.mrf.mxu0
    %v3232 = vadd.f32 %v2794, %v3231
    %3233 = vmatmul.bf16.gmra.mxu0 %v2787
    %v3234 = vpop.f32.mrf.mxu0
    %v3235 = vadd.f32 %v2794, %v3234
    %v3236 = vpop.f32.mrf.mxu0
    %v3237 = vadd.f32 %v2794, %v3236
    %3238 = vdwg.mxu0
    %3239 = vmatpush.bf16.msra.mxu0 %v3059
    %3240 = vmatpush.bf16.msra.mxu0 %v3051
    %3241 = vmatpush.bf16.msra.mxu0 %v3043
    %3242 = vmatpush.bf16.msra.mxu0 %v3035
    %3243 = vmatpush.bf16.msra.mxu0 %v3027
    %3244 = vmatpush.bf16.msra.mxu0 %v3019
    %3245 = vmatpush.bf16.msra.mxu0 %v3011
    %3246 = vmatpush.bf16.msra.mxu0 %v3003
    %3247 = vmatmul.bf16.gmra.mxu0 %v2786
    %v3248 = vpop.f32.mrf.mxu0
    %v3249 = vadd.f32 %v2795, %v3248
    %v3250 = vpop.f32.mrf.mxu0
    %v3251 = vadd.f32 %v2795, %v3250
    %3252 = vmatmul.bf16.gmra.mxu0 %v2787
    %v3253 = vpop.f32.mrf.mxu0
    %v3254 = vadd.f32 %v2795, %v3253
    %v3255 = vpop.f32.mrf.mxu0
    %v3256 = vadd.f32 %v2795, %v3255
    %3257 = vdwg.mxu0
    %3258 = vmatpush.bf16.msra.mxu0 %v3060
    %3259 = vmatpush.bf16.msra.mxu0 %v3052
    %3260 = vmatpush.bf16.msra.mxu0 %v3044
    %3261 = vmatpush.bf16.msra.mxu0 %v3036
    %3262 = vmatpush.bf16.msra.mxu0 %v3028
    %3263 = vmatpush.bf16.msra.mxu0 %v3020
    %3264 = vmatpush.bf16.msra.mxu0 %v3012
    %3265 = vmatpush.bf16.msra.mxu0 %v3004
    %3266 = vmatmul.bf16.gmra.mxu0 %v2786
    %v3267 = vpop.f32.mrf.mxu0
    %v3268 = vadd.f32 %v2796, %v3267
    %v3269 = vpop.f32.mrf.mxu0
    %v3270 = vadd.f32 %v2796, %v3269
    %3271 = vmatmul.bf16.gmra.mxu0 %v2787
    %v3272 = vpop.f32.mrf.mxu0
    %v3273 = vadd.f32 %v2796, %v3272
    %v3274 = vpop.f32.mrf.mxu0
    %v3275 = vadd.f32 %v2796, %v3274
    %3276 = vdwg.mxu0
    %v3277 = vmax.f32 %v3135, 0.0
    %v3278 = vmax.f32 %v3154, 0.0
    %v3279 = vmax.f32 %v3173, 0.0
    %v3280 = vmax.f32 %v3192, 0.0
    %v3281 = vmax.f32 %v3211, 0.0
    %v3282 = vmax.f32 %v3230, 0.0
    %v3283 = vmax.f32 %v3249, 0.0
    %v3284 = vmax.f32 %v3268, 0.0
    %v3285 = vmax.f32 %v3137, 0.0
    %v3286 = vmax.f32 %v3156, 0.0
    %v3287 = vmax.f32 %v3175, 0.0
    %v3288 = vmax.f32 %v3194, 0.0
    %v3289 = vmax.f32 %v3213, 0.0
    %v3290 = vmax.f32 %v3232, 0.0
    %v3291 = vmax.f32 %v3251, 0.0
    %v3292 = vmax.f32 %v3270, 0.0
    %v3293 = vmax.f32 %v3140, 0.0
    %v3294 = vmax.f32 %v3159, 0.0
    %v3295 = vmax.f32 %v3178, 0.0
    %v3296 = vmax.f32 %v3197, 0.0
    %v3297 = vmax.f32 %v3216, 0.0
    %v3298 = vmax.f32 %v3235, 0.0
    %v3299 = vmax.f32 %v3254, 0.0
    %v3300 = vmax.f32 %v3273, 0.0
    %v3301 = vmax.f32 %v3142, 0.0
    %v3302 = vmax.f32 %v3161, 0.0
    %v3303 = vmax.f32 %v3180, 0.0
    %v3304 = vmax.f32 %v3199, 0.0
    %v3305 = vmax.f32 %v3218, 0.0
    %v3306 = vmax.f32 %v3237, 0.0
    %v3307 = vmax.f32 %v3256, 0.0
    %v3308 = vmax.f32 %v3275, 0.0
    %v3309 = vld [vmem:[#allocation16] sm:$0xff]
    %v3310 = vld [vmem:[#allocation16 + $0x8] sm:$0xff]
    %v3311 = vld [vmem:[#allocation16 + $0x10] sm:$0xff]
    %v3312 = vld [vmem:[#allocation16 + $0x18] sm:$0xff]
    %v3313 = vld [vmem:[#allocation16 + $0x20] sm:$0xff]
    %v3314 = vld [vmem:[#allocation16 + $0x28] sm:$0xff]
    %v3315 = vld [vmem:[#allocation16 + $0x30] sm:$0xff]
    %v3316 = vld [vmem:[#allocation16 + $0x38] sm:$0xff]
    %v3317 = vld [vmem:[#allocation16 + $0x40] sm:$0xff]
    %v3318 = vld [vmem:[#allocation16 + $0x48] sm:$0xff]
    %v3319 = vld [vmem:[#allocation16 + $0x50] sm:$0xff]
    %v3320 = vld [vmem:[#allocation16 + $0x58] sm:$0xff]
    %v3321 = vld [vmem:[#allocation16 + $0x60] sm:$0xff]
    %v3322 = vld [vmem:[#allocation16 + $0x68] sm:$0xff]
    %v3323 = vld [vmem:[#allocation16 + $0x70] sm:$0xff]
    %v3324 = vld [vmem:[#allocation16 + $0x78] sm:$0xff]
    %v3325 = vld [vmem:[#allocation17] sm:$0x3]
    %v3327 = vperm.slane %v3325, 0
    %v3328 = vperm.slane %v3325, 1
    %v3347 = vunpack.c.l.b16 %v3309
    %v3348 = vunpack.c.h.b16 %v3309
    %v3349 = vunpack.c.l.b16 %v3310
    %v3350 = vunpack.c.h.b16 %v3310
    %v3351 = vunpack.c.l.b16 %v3311
    %v3352 = vunpack.c.h.b16 %v3311
    %v3353 = vunpack.c.l.b16 %v3312
    %v3354 = vunpack.c.h.b16 %v3312
    %v3355 = vunpack.c.l.b16 %v3313
    %v3356 = vunpack.c.h.b16 %v3313
    %v3357 = vunpack.c.l.b16 %v3314
    %v3358 = vunpack.c.h.b16 %v3314
    %v3359 = vunpack.c.l.b16 %v3315
    %v3360 = vunpack.c.h.b16 %v3315
    %v3361 = vunpack.c.l.b16 %v3316
    %v3362 = vunpack.c.h.b16 %v3316
    %v3363 = vunpack.c.l.b16 %v3317
    %v3364 = vunpack.c.h.b16 %v3317
    %v3365 = vunpack.c.l.b16 %v3318
    %v3366 = vunpack.c.h.b16 %v3318
    %v3367 = vunpack.c.l.b16 %v3319
    %v3368 = vunpack.c.h.b16 %v3319
    %v3369 = vunpack.c.l.b16 %v3320
    %v3370 = vunpack.c.h.b16 %v3320
    %v3371 = vunpack.c.l.b16 %v3321
    %v3372 = vunpack.c.h.b16 %v3321
    %v3373 = vunpack.c.l.b16 %v3322
    %v3374 = vunpack.c.h.b16 %v3322
    %v3375 = vunpack.c.l.b16 %v3323
    %v3376 = vunpack.c.h.b16 %v3323
    %v3377 = vunpack.c.l.b16 %v3324
    %v3378 = vunpack.c.h.b16 %v3324
    %v3379 = vpack.c.b16 %v3349, %v3347
    %v3380 = vpack.c.b16 %v3350, %v3348
    %v3381 = vpack.c.b16 %v3353, %v3351
    %v3382 = vpack.c.b16 %v3354, %v3352
    %v3383 = vpack.c.b16 %v3357, %v3355
    %v3384 = vpack.c.b16 %v3358, %v3356
    %v3385 = vpack.c.b16 %v3361, %v3359
    %v3386 = vpack.c.b16 %v3362, %v3360
    %v3387 = vpack.c.b16 %v3365, %v3363
    %v3388 = vpack.c.b16 %v3366, %v3364
    %v3389 = vpack.c.b16 %v3369, %v3367
    %v3390 = vpack.c.b16 %v3370, %v3368
    %v3391 = vpack.c.b16 %v3373, %v3371
    %v3392 = vpack.c.b16 %v3374, %v3372
    %v3393 = vpack.c.b16 %v3377, %v3375
    %v3394 = vpack.c.b16 %v3378, %v3376
    %3411 = vmatpush.bf16.msra.mxu0 %v3393
    %3412 = vmatpush.bf16.msra.mxu0 %v3391
    %3413 = vmatpush.bf16.msra.mxu0 %v3389
    %3414 = vmatpush.bf16.msra.mxu0 %v3387
    %3415 = vmatpush.bf16.msra.mxu0 %v3385
    %3416 = vmatpush.bf16.msra.mxu0 %v3383
    %3417 = vmatpush.bf16.msra.mxu0 %v3381
    %3418 = vmatpush.bf16.msra.mxu0 %v3379
    %3419 = vmatmul.bf16.gmra.mxu0 %v1986
    %v3420 = vpop.f32.mrf.mxu0
    %v3421 = vadd.f32 %v3327, %v3420
    %v3422 = vpop.f32.mrf.mxu0
    %v3423 = vadd.f32 %v3327, %v3422
    %3424 = vmatmul.bf16.gmra.mxu0 %v1987
    %v3425 = vpop.f32.mrf.mxu0
    %v3426 = vadd.f32 %v3327, %v3425
    %v3427 = vpop.f32.mrf.mxu0
    %v3428 = vadd.f32 %v3327, %v3427
    %3429 = vmatmul.bf16.gmra.mxu0 %v1988
    %v3430 = vpop.f32.mrf.mxu0
    %v3431 = vadd.f32 %v3327, %v3430
    %v3432 = vpop.f32.mrf.mxu0
    %v3433 = vadd.f32 %v3327, %v3432
    %3434 = vmatmul.bf16.gmra.mxu0 %v1989
    %v3435 = vpop.f32.mrf.mxu0
    %v3436 = vadd.f32 %v3327, %v3435
    %v3437 = vpop.f32.mrf.mxu0
    %v3438 = vadd.f32 %v3327, %v3437
    %3439 = vdwg.mxu0
    %3440 = vmatpush.bf16.msra.mxu0 %v3394
    %3441 = vmatpush.bf16.msra.mxu0 %v3392
    %3442 = vmatpush.bf16.msra.mxu0 %v3390
    %3443 = vmatpush.bf16.msra.mxu0 %v3388
    %3444 = vmatpush.bf16.msra.mxu0 %v3386
    %3445 = vmatpush.bf16.msra.mxu0 %v3384
    %3446 = vmatpush.bf16.msra.mxu0 %v3382
    %3447 = vmatpush.bf16.msra.mxu0 %v3380
    %3448 = vmatmul.bf16.gmra.mxu0 %v1986
    %v3449 = vpop.f32.mrf.mxu0
    %v3450 = vadd.f32 %v3328, %v3449
    %v3451 = vpop.f32.mrf.mxu0
    %v3452 = vadd.f32 %v3328, %v3451
    %3453 = vmatmul.bf16.gmra.mxu0 %v1987
    %v3454 = vpop.f32.mrf.mxu0
    %v3455 = vadd.f32 %v3328, %v3454
    %v3456 = vpop.f32.mrf.mxu0
    %v3457 = vadd.f32 %v3328, %v3456
    %3458 = vmatmul.bf16.gmra.mxu0 %v1988
    %v3459 = vpop.f32.mrf.mxu0
    %v3460 = vadd.f32 %v3328, %v3459
    %v3461 = vpop.f32.mrf.mxu0
    %v3462 = vadd.f32 %v3328, %v3461
    %3463 = vmatmul.bf16.gmra.mxu0 %v1989
    %v3464 = vpop.f32.mrf.mxu0
    %v3465 = vadd.f32 %v3328, %v3464
    %v3466 = vpop.f32.mrf.mxu0
    %v3467 = vadd.f32 %v3328, %v3466
    %3468 = vdwg.mxu0
    %v3469 = vld [vmem:[#allocation19] sm:$0x3]
    %v3470 = vld [vmem:[#allocation20] sm:$0x3]
    %v3471 = vrot.slane %v3421, 4
    %v3472 = vadd.f32 %v3421, %v3471
    %v3473 = vrot.slane %v3472, 2
    %v3474 = vadd.f32 %v3472, %v3473
    %v3475 = vrot.slane %v3474, 1
    %v3476 = vadd.f32 %v3474, %v3475
    %v3477 = vrot.slane %v3450, 4
    %v3478 = vadd.f32 %v3450, %v3477
    %v3479 = vrot.slane %v3478, 2
    %v3480 = vadd.f32 %v3478, %v3479
    %v3481 = vrot.slane %v3480, 1
    %v3482 = vadd.f32 %v3480, %v3481
    %v3483 = vrcp.pop 8.0
    %v3484 = vmul.f32 8.0, %v3483
    %v3485 = vsub.f32 1.0, %v3484
    %v3486 = vmul.f32 %v3483, %v3485
    %v3487 = vadd.f32 %v3483, %v3486
    %vm3488 = vweird.f32 %v3483
    %v3489 = vsel %vm3488, %v3483, %v3487
    %v3490 = vmul.f32 %v3476, %v3489
    %v3491 = vmul.f32 %v3482, %v3489
    %v3492 = vsub.f32 %v3421, %v3490
    %v3493 = vsub.f32 %v3450, %v3491
    %v3494 = vmul.f32 %v3492, %v3492
    %v3495 = vmul.f32 %v3493, %v3493
    %v3496 = vrot.slane %v3494, 4
    %v3497 = vadd.f32 %v3494, %v3496
    %v3498 = vrot.slane %v3497, 2
    %v3499 = vadd.f32 %v3497, %v3498
    %v3500 = vrot.slane %v3499, 1
    %v3501 = vadd.f32 %v3499, %v3500
    %v3502 = vrot.slane %v3495, 4
    %v3503 = vadd.f32 %v3495, %v3502
    %v3504 = vrot.slane %v3503, 2
    %v3505 = vadd.f32 %v3503, %v3504
    %v3506 = vrot.slane %v3505, 1
    %v3507 = vadd.f32 %v3505, %v3506
    %v3508 = vmul.f32 %v3501, %v3489
    %v3509 = vmul.f32 %v3507, %v3489
    %v3510 = vadd.f32 %v3508, 1e-05
    %v3511 = vadd.f32 %v3509, 1e-05
    %v3512 = vrsqrt.pop %v3510
    %v3513 = vmul.f32 %v3512, %v3510
    %v3514 = vmul.f32 %v3513, %v3512
    %v3515 = vmul.f32 0.5, %v3514
    %v3516 = vsub.f32 1.5, %v3515
    %v3517 = vmul.f32 %v3512, %v3516
    %vm3518 = vweird.f32 %v3510
    %vm3519 = vweird.f32 %v3512
    %vm3520 = vmor %vm3518, %vm3519
    %v3521 = vsel %vm3520, %v3512, %v3517
    %v3522 = vrsqrt.pop %v3511
    %v3523 = vmul.f32 %v3522, %v3511
    %v3524 = vmul.f32 %v3523, %v3522
    %v3525 = vmul.f32 0.5, %v3524
    %v3526 = vsub.f32 1.5, %v3525
    %v3527 = vmul.f32 %v3522, %v3526
    %vm3528 = vweird.f32 %v3511
    %vm3529 = vweird.f32 %v3522
    %vm3530 = vmor %vm3528, %vm3529
    %v3531 = vsel %vm3530, %v3522, %v3527
    %v3532 = vmul.f32 %v3492, %v3521
    %v3533 = vmul.f32 %v3493, %v3531
    %v3535 = vperm.slane %v3469, 0
    %v3536 = vperm.slane %v3469, 1
    %v3539 = vmul.f32 %v3532, %v3535
    %v3540 = vmul.f32 %v3533, %v3536
    %v3542 = vperm.slane %v3470, 0
    %v3543 = vperm.slane %v3470, 1
    %v3546 = vadd.f32 %v3539, %v3542
    %v3547 = vadd.f32 %v3540, %v3543
    %v3548 = vmax.f32 %v3546, 0.0
    %v3549 = vmax.f32 %v3547, 0.0
    %v3550 = vrot.slane %v3423, 4
    %v3551 = vadd.f32 %v3423, %v3550
    %v3552 = vrot.slane %v3551, 2
    %v3553 = vadd.f32 %v3551, %v3552
    %v3554 = vrot.slane %v3553, 1
    %v3555 = vadd.f32 %v3553, %v3554
    %v3556 = vrot.slane %v3452, 4
    %v3557 = vadd.f32 %v3452, %v3556
    %v3558 = vrot.slane %v3557, 2
    %v3559 = vadd.f32 %v3557, %v3558
    %v3560 = vrot.slane %v3559, 1
    %v3561 = vadd.f32 %v3559, %v3560
    %v3562 = vmul.f32 %v3555, %v3489
    %v3563 = vmul.f32 %v3561, %v3489
    %v3564 = vsub.f32 %v3423, %v3562
    %v3565 = vsub.f32 %v3452, %v3563
    %v3566 = vmul.f32 %v3564, %v3564
    %v3567 = vmul.f32 %v3565, %v3565
    %v3568 = vrot.slane %v3566, 4
    %v3569 = vadd.f32 %v3566, %v3568
    %v3570 = vrot.slane %v3569, 2
    %v3571 = vadd.f32 %v3569, %v3570
    %v3572 = vrot.slane %v3571, 1
    %v3573 = vadd.f32 %v3571, %v3572
    %v3574 = vrot.slane %v3567, 4
    %v3575 = vadd.f32 %v3567, %v3574
    %v3576 = vrot.slane %v3575, 2
    %v3577 = vadd.f32 %v3575, %v3576
    %v3578 = vrot.slane %v3577, 1
    %v3579 = vadd.f32 %v3577, %v3578
    %v3580 = vmul.f32 %v3573, %v3489
    %v3581 = vmul.f32 %v3579, %v3489
    %v3582 = vadd.f32 %v3580, 1e-05
    %v3583 = vadd.f32 %v3581, 1e-05
    %v3584 = vrsqrt.pop %v3582
    %v3585 = vmul.f32 %v3584, %v3582
    %v3586 = vmul.f32 %v3585, %v3584
    %v3587 = vmul.f32 0.5, %v3586
    %v3588 = vsub.f32 1.5, %v3587
    %v3589 = vmul.f32 %v3584, %v3588
    %vm3590 = vweird.f32 %v3582
    %vm3591 = vweird.f32 %v3584
    %vm3592 = vmor %vm3590, %vm3591
    %v3593 = vsel %vm3592, %v3584, %v3589
    %v3594 = vrsqrt.pop %v3583
    %v3595 = vmul.f32 %v3594, %v3583
    %v3596 = vmul.f32 %v3595, %v3594
    %v3597 = vmul.f32 0.5, %v3596
    %v3598 = vsub.f32 1.5, %v3597
    %v3599 = vmul.f32 %v3594, %v3598
    %vm3600 = vweird.f32 %v3583
    %vm3601 = vweird.f32 %v3594
    %vm3602 = vmor %vm3600, %vm3601
    %v3603 = vsel %vm3602, %v3594, %v3599
    %v3604 = vmul.f32 %v3564, %v3593
    %v3605 = vmul.f32 %v3565, %v3603
    %v3606 = vmul.f32 %v3604, %v3535
    %v3607 = vmul.f32 %v3605, %v3536
    %v3608 = vadd.f32 %v3606, %v3542
    %v3609 = vadd.f32 %v3607, %v3543
    %v3610 = vmax.f32 %v3608, 0.0
    %v3611 = vmax.f32 %v3609, 0.0
    %v3612 = vrot.slane %v3426, 4
    %v3613 = vadd.f32 %v3426, %v3612
    %v3614 = vrot.slane %v3613, 2
    %v3615 = vadd.f32 %v3613, %v3614
    %v3616 = vrot.slane %v3615, 1
    %v3617 = vadd.f32 %v3615, %v3616
    %v3618 = vrot.slane %v3455, 4
    %v3619 = vadd.f32 %v3455, %v3618
    %v3620 = vrot.slane %v3619, 2
    %v3621 = vadd.f32 %v3619, %v3620
    %v3622 = vrot.slane %v3621, 1
    %v3623 = vadd.f32 %v3621, %v3622
    %v3624 = vmul.f32 %v3617, %v3489
    %v3625 = vmul.f32 %v3623, %v3489
    %v3626 = vsub.f32 %v3426, %v3624
    %v3627 = vsub.f32 %v3455, %v3625
    %v3628 = vmul.f32 %v3626, %v3626
    %v3629 = vmul.f32 %v3627, %v3627
    %v3630 = vrot.slane %v3628, 4
    %v3631 = vadd.f32 %v3628, %v3630
    %v3632 = vrot.slane %v3631, 2
    %v3633 = vadd.f32 %v3631, %v3632
    %v3634 = vrot.slane %v3633, 1
    %v3635 = vadd.f32 %v3633, %v3634
    %v3636 = vrot.slane %v3629, 4
    %v3637 = vadd.f32 %v3629, %v3636
    %v3638 = vrot.slane %v3637, 2
    %v3639 = vadd.f32 %v3637, %v3638
    %v3640 = vrot.slane %v3639, 1
    %v3641 = vadd.f32 %v3639, %v3640
    %v3642 = vmul.f32 %v3635, %v3489
    %v3643 = vmul.f32 %v3641, %v3489
    %v3644 = vadd.f32 %v3642, 1e-05
    %v3645 = vadd.f32 %v3643, 1e-05
    %v3646 = vrsqrt.pop %v3644
    %v3647 = vmul.f32 %v3646, %v3644
    %v3648 = vmul.f32 %v3647, %v3646
    %v3649 = vmul.f32 0.5, %v3648
    %v3650 = vsub.f32 1.5, %v3649
    %v3651 = vmul.f32 %v3646, %v3650
    %vm3652 = vweird.f32 %v3644
    %vm3653 = vweird.f32 %v3646
    %vm3654 = vmor %vm3652, %vm3653
    %v3655 = vsel %vm3654, %v3646, %v3651
    %v3656 = vrsqrt.pop %v3645
    %v3657 = vmul.f32 %v3656, %v3645
    %v3658 = vmul.f32 %v3657, %v3656
    %v3659 = vmul.f32 0.5, %v3658
    %v3660 = vsub.f32 1.5, %v3659
    %v3661 = vmul.f32 %v3656, %v3660
    %vm3662 = vweird.f32 %v3645
    %vm3663 = vweird.f32 %v3656
    %vm3664 = vmor %vm3662, %vm3663
    %v3665 = vsel %vm3664, %v3656, %v3661
    %v3666 = vmul.f32 %v3626, %v3655
    %v3667 = vmul.f32 %v3627, %v3665
    %v3668 = vmul.f32 %v3666, %v3535
    %v3669 = vmul.f32 %v3667, %v3536
    %v3670 = vadd.f32 %v3668, %v3542
    %v3671 = vadd.f32 %v3669, %v3543
    %v3672 = vmax.f32 %v3670, 0.0
    %v3673 = vmax.f32 %v3671, 0.0
    %v3674 = vrot.slane %v3428, 4
    %v3675 = vadd.f32 %v3428, %v3674
    %v3676 = vrot.slane %v3675, 2
    %v3677 = vadd.f32 %v3675, %v3676
    %v3678 = vrot.slane %v3677, 1
    %v3679 = vadd.f32 %v3677, %v3678
    %v3680 = vrot.slane %v3457, 4
    %v3681 = vadd.f32 %v3457, %v3680
    %v3682 = vrot.slane %v3681, 2
    %v3683 = vadd.f32 %v3681, %v3682
    %v3684 = vrot.slane %v3683, 1
    %v3685 = vadd.f32 %v3683, %v3684
    %v3686 = vmul.f32 %v3679, %v3489
    %v3687 = vmul.f32 %v3685, %v3489
    %v3688 = vsub.f32 %v3428, %v3686
    %v3689 = vsub.f32 %v3457, %v3687
    %v3690 = vmul.f32 %v3688, %v3688
    %v3691 = vmul.f32 %v3689, %v3689
    %v3692 = vrot.slane %v3690, 4
    %v3693 = vadd.f32 %v3690, %v3692
    %v3694 = vrot.slane %v3693, 2
    %v3695 = vadd.f32 %v3693, %v3694
    %v3696 = vrot.slane %v3695, 1
    %v3697 = vadd.f32 %v3695, %v3696
    %v3698 = vrot.slane %v3691, 4
    %v3699 = vadd.f32 %v3691, %v3698
    %v3700 = vrot.slane %v3699, 2
    %v3701 = vadd.f32 %v3699, %v3700
    %v3702 = vrot.slane %v3701, 1
    %v3703 = vadd.f32 %v3701, %v3702
    %v3704 = vmul.f32 %v3697, %v3489
    %v3705 = vmul.f32 %v3703, %v3489
    %v3706 = vadd.f32 %v3704, 1e-05
    %v3707 = vadd.f32 %v3705, 1e-05
    %v3708 = vrsqrt.pop %v3706
    %v3709 = vmul.f32 %v3708, %v3706
    %v3710 = vmul.f32 %v3709, %v3708
    %v3711 = vmul.f32 0.5, %v3710
    %v3712 = vsub.f32 1.5, %v3711
    %v3713 = vmul.f32 %v3708, %v3712
    %vm3714 = vweird.f32 %v3706
    %vm3715 = vweird.f32 %v3708
    %vm3716 = vmor %vm3714, %vm3715
    %v3717 = vsel %vm3716, %v3708, %v3713
    %v3718 = vrsqrt.pop %v3707
    %v3719 = vmul.f32 %v3718, %v3707
    %v3720 = vmul.f32 %v3719, %v3718
    %v3721 = vmul.f32 0.5, %v3720
    %v3722 = vsub.f32 1.5, %v3721
    %v3723 = vmul.f32 %v3718, %v3722
    %vm3724 = vweird.f32 %v3707
    %vm3725 = vweird.f32 %v3718
    %vm3726 = vmor %vm3724, %vm3725
    %v3727 = vsel %vm3726, %v3718, %v3723
    %v3728 = vmul.f32 %v3688, %v3717
    %v3729 = vmul.f32 %v3689, %v3727
    %v3730 = vmul.f32 %v3728, %v3535
    %v3731 = vmul.f32 %v3729, %v3536
    %v3732 = vadd.f32 %v3730, %v3542
    %v3733 = vadd.f32 %v3731, %v3543
    %v3734 = vmax.f32 %v3732, 0.0
    %v3735 = vmax.f32 %v3733, 0.0
    %v3736 = vrot.slane %v3431, 4
    %v3737 = vadd.f32 %v3431, %v3736
    %v3738 = vrot.slane %v3737, 2
    %v3739 = vadd.f32 %v3737, %v3738
    %v3740 = vrot.slane %v3739, 1
    %v3741 = vadd.f32 %v3739, %v3740
    %v3742 = vrot.slane %v3460, 4
    %v3743 = vadd.f32 %v3460, %v3742
    %v3744 = vrot.slane %v3743, 2
    %v3745 = vadd.f32 %v3743, %v3744
    %v3746 = vrot.slane %v3745, 1
    %v3747 = vadd.f32 %v3745, %v3746
    %v3748 = vmul.f32 %v3741, %v3489
    %v3749 = vmul.f32 %v3747, %v3489
    %v3750 = vsub.f32 %v3431, %v3748
    %v3751 = vsub.f32 %v3460, %v3749
    %v3752 = vmul.f32 %v3750, %v3750
    %v3753 = vmul.f32 %v3751, %v3751
    %v3754 = vrot.slane %v3752, 4
    %v3755 = vadd.f32 %v3752, %v3754
    %v3756 = vrot.slane %v3755, 2
    %v3757 = vadd.f32 %v3755, %v3756
    %v3758 = vrot.slane %v3757, 1
    %v3759 = vadd.f32 %v3757, %v3758
    %v3760 = vrot.slane %v3753, 4
    %v3761 = vadd.f32 %v3753, %v3760
    %v3762 = vrot.slane %v3761, 2
    %v3763 = vadd.f32 %v3761, %v3762
    %v3764 = vrot.slane %v3763, 1
    %v3765 = vadd.f32 %v3763, %v3764
    %v3766 = vmul.f32 %v3759, %v3489
    %v3767 = vmul.f32 %v3765, %v3489
    %v3768 = vadd.f32 %v3766, 1e-05
    %v3769 = vadd.f32 %v3767, 1e-05
    %v3770 = vrsqrt.pop %v3768
    %v3771 = vmul.f32 %v3770, %v3768
    %v3772 = vmul.f32 %v3771, %v3770
    %v3773 = vmul.f32 0.5, %v3772
    %v3774 = vsub.f32 1.5, %v3773
    %v3775 = vmul.f32 %v3770, %v3774
    %vm3776 = vweird.f32 %v3768
    %vm3777 = vweird.f32 %v3770
    %vm3778 = vmor %vm3776, %vm3777
    %v3779 = vsel %vm3778, %v3770, %v3775
    %v3780 = vrsqrt.pop %v3769
    %v3781 = vmul.f32 %v3780, %v3769
    %v3782 = vmul.f32 %v3781, %v3780
    %v3783 = vmul.f32 0.5, %v3782
    %v3784 = vsub.f32 1.5, %v3783
    %v3785 = vmul.f32 %v3780, %v3784
    %vm3786 = vweird.f32 %v3769
    %vm3787 = vweird.f32 %v3780
    %vm3788 = vmor %vm3786, %vm3787
    %v3789 = vsel %vm3788, %v3780, %v3785
    %v3790 = vmul.f32 %v3750, %v3779
    %v3791 = vmul.f32 %v3751, %v3789
    %v3792 = vmul.f32 %v3790, %v3535
    %v3793 = vmul.f32 %v3791, %v3536
    %v3794 = vadd.f32 %v3792, %v3542
    %v3795 = vadd.f32 %v3793, %v3543
    %v3796 = vmax.f32 %v3794, 0.0
    %v3797 = vmax.f32 %v3795, 0.0
    %v3798 = vrot.slane %v3433, 4
    %v3799 = vadd.f32 %v3433, %v3798
    %v3800 = vrot.slane %v3799, 2
    %v3801 = vadd.f32 %v3799, %v3800
    %v3802 = vrot.slane %v3801, 1
    %v3803 = vadd.f32 %v3801, %v3802
    %v3804 = vrot.slane %v3462, 4
    %v3805 = vadd.f32 %v3462, %v3804
    %v3806 = vrot.slane %v3805, 2
    %v3807 = vadd.f32 %v3805, %v3806
    %v3808 = vrot.slane %v3807, 1
    %v3809 = vadd.f32 %v3807, %v3808
    %v3810 = vmul.f32 %v3803, %v3489
    %v3811 = vmul.f32 %v3809, %v3489
    %v3812 = vsub.f32 %v3433, %v3810
    %v3813 = vsub.f32 %v3462, %v3811
    %v3814 = vmul.f32 %v3812, %v3812
    %v3815 = vmul.f32 %v3813, %v3813
    %v3816 = vrot.slane %v3814, 4
    %v3817 = vadd.f32 %v3814, %v3816
    %v3818 = vrot.slane %v3817, 2
    %v3819 = vadd.f32 %v3817, %v3818
    %v3820 = vrot.slane %v3819, 1
    %v3821 = vadd.f32 %v3819, %v3820
    %v3822 = vrot.slane %v3815, 4
    %v3823 = vadd.f32 %v3815, %v3822
    %v3824 = vrot.slane %v3823, 2
    %v3825 = vadd.f32 %v3823, %v3824
    %v3826 = vrot.slane %v3825, 1
    %v3827 = vadd.f32 %v3825, %v3826
    %v3828 = vmul.f32 %v3821, %v3489
    %v3829 = vmul.f32 %v3827, %v3489
    %v3830 = vadd.f32 %v3828, 1e-05
    %v3831 = vadd.f32 %v3829, 1e-05
    %v3832 = vrsqrt.pop %v3830
    %v3833 = vmul.f32 %v3832, %v3830
    %v3834 = vmul.f32 %v3833, %v3832
    %v3835 = vmul.f32 0.5, %v3834
    %v3836 = vsub.f32 1.5, %v3835
    %v3837 = vmul.f32 %v3832, %v3836
    %vm3838 = vweird.f32 %v3830
    %vm3839 = vweird.f32 %v3832
    %vm3840 = vmor %vm3838, %vm3839
    %v3841 = vsel %vm3840, %v3832, %v3837
    %v3842 = vrsqrt.pop %v3831
    %v3843 = vmul.f32 %v3842, %v3831
    %v3844 = vmul.f32 %v3843, %v3842
    %v3845 = vmul.f32 0.5, %v3844
    %v3846 = vsub.f32 1.5, %v3845
    %v3847 = vmul.f32 %v3842, %v3846
    %vm3848 = vweird.f32 %v3831
    %vm3849 = vweird.f32 %v3842
    %vm3850 = vmor %vm3848, %vm3849
    %v3851 = vsel %vm3850, %v3842, %v3847
    %v3852 = vmul.f32 %v3812, %v3841
    %v3853 = vmul.f32 %v3813, %v3851
    %v3854 = vmul.f32 %v3852, %v3535
    %v3855 = vmul.f32 %v3853, %v3536
    %v3856 = vadd.f32 %v3854, %v3542
    %v3857 = vadd.f32 %v3855, %v3543
    %v3858 = vmax.f32 %v3856, 0.0
    %v3859 = vmax.f32 %v3857, 0.0
    %v3860 = vrot.slane %v3436, 4
    %v3861 = vadd.f32 %v3436, %v3860
    %v3862 = vrot.slane %v3861, 2
    %v3863 = vadd.f32 %v3861, %v3862
    %v3864 = vrot.slane %v3863, 1
    %v3865 = vadd.f32 %v3863, %v3864
    %v3866 = vrot.slane %v3465, 4
    %v3867 = vadd.f32 %v3465, %v3866
    %v3868 = vrot.slane %v3867, 2
    %v3869 = vadd.f32 %v3867, %v3868
    %v3870 = vrot.slane %v3869, 1
    %v3871 = vadd.f32 %v3869, %v3870
    %v3872 = vmul.f32 %v3865, %v3489
    %v3873 = vmul.f32 %v3871, %v3489
    %v3874 = vsub.f32 %v3436, %v3872
    %v3875 = vsub.f32 %v3465, %v3873
    %v3876 = vmul.f32 %v3874, %v3874
    %v3877 = vmul.f32 %v3875, %v3875
    %v3878 = vrot.slane %v3876, 4
    %v3879 = vadd.f32 %v3876, %v3878
    %v3880 = vrot.slane %v3879, 2
    %v3881 = vadd.f32 %v3879, %v3880
    %v3882 = vrot.slane %v3881, 1
    %v3883 = vadd.f32 %v3881, %v3882
    %v3884 = vrot.slane %v3877, 4
    %v3885 = vadd.f32 %v3877, %v3884
    %v3886 = vrot.slane %v3885, 2
    %v3887 = vadd.f32 %v3885, %v3886
    %v3888 = vrot.slane %v3887, 1
    %v3889 = vadd.f32 %v3887, %v3888
    %v3890 = vmul.f32 %v3883, %v3489
    %v3891 = vmul.f32 %v3889, %v3489
    %v3892 = vadd.f32 %v3890, 1e-05
    %v3893 = vadd.f32 %v3891, 1e-05
    %v3894 = vrsqrt.pop %v3892
    %v3895 = vmul.f32 %v3894, %v3892
    %v3896 = vmul.f32 %v3895, %v3894
    %v3897 = vmul.f32 0.5, %v3896
    %v3898 = vsub.f32 1.5, %v3897
    %v3899 = vmul.f32 %v3894, %v3898
    %vm3900 = vweird.f32 %v3892
    %vm3901 = vweird.f32 %v3894
    %vm3902 = vmor %vm3900, %vm3901
    %v3903 = vsel %vm3902, %v3894, %v3899
    %v3904 = vrsqrt.pop %v3893
    %v3905 = vmul.f32 %v3904, %v3893
    %v3906 = vmul.f32 %v3905, %v3904
    %v3907 = vmul.f32 0.5, %v3906
    %v3908 = vsub.f32 1.5, %v3907
    %v3909 = vmul.f32 %v3904, %v3908
    %vm3910 = vweird.f32 %v3893
    %vm3911 = vweird.f32 %v3904
    %vm3912 = vmor %vm3910, %vm3911
    %v3913 = vsel %vm3912, %v3904, %v3909
    %v3914 = vmul.f32 %v3874, %v3903
    %v3915 = vmul.f32 %v3875, %v3913
    %v3916 = vmul.f32 %v3914, %v3535
    %v3917 = vmul.f32 %v3915, %v3536
    %v3918 = vadd.f32 %v3916, %v3542
    %v3919 = vadd.f32 %v3917, %v3543
    %v3920 = vmax.f32 %v3918, 0.0
    %v3921 = vmax.f32 %v3919, 0.0
    %v3922 = vrot.slane %v3438, 4
    %v3923 = vadd.f32 %v3438, %v3922
    %v3924 = vrot.slane %v3923, 2
    %v3925 = vadd.f32 %v3923, %v3924
    %v3926 = vrot.slane %v3925, 1
    %v3927 = vadd.f32 %v3925, %v3926
    %v3928 = vrot.slane %v3467, 4
    %v3929 = vadd.f32 %v3467, %v3928
    %v3930 = vrot.slane %v3929, 2
    %v3931 = vadd.f32 %v3929, %v3930
    %v3932 = vrot.slane %v3931, 1
    %v3933 = vadd.f32 %v3931, %v3932
    %v3934 = vmul.f32 %v3927, %v3489
    %v3935 = vmul.f32 %v3933, %v3489
    %v3936 = vsub.f32 %v3438, %v3934
    %v3937 = vsub.f32 %v3467, %v3935
    %v3938 = vmul.f32 %v3936, %v3936
    %v3939 = vmul.f32 %v3937, %v3937
    %v3940 = vrot.slane %v3938, 4
    %v3941 = vadd.f32 %v3938, %v3940
    %v3942 = vrot.slane %v3941, 2
    %v3943 = vadd.f32 %v3941, %v3942
    %v3944 = vrot.slane %v3943, 1
    %v3945 = vadd.f32 %v3943, %v3944
    %v3946 = vrot.slane %v3939, 4
    %v3947 = vadd.f32 %v3939, %v3946
    %v3948 = vrot.slane %v3947, 2
    %v3949 = vadd.f32 %v3947, %v3948
    %v3950 = vrot.slane %v3949, 1
    %v3951 = vadd.f32 %v3949, %v3950
    %v3952 = vmul.f32 %v3945, %v3489
    %v3953 = vmul.f32 %v3951, %v3489
    %v3954 = vadd.f32 %v3952, 1e-05
    %v3955 = vadd.f32 %v3953, 1e-05
    %v3956 = vrsqrt.pop %v3954
    %v3957 = vmul.f32 %v3956, %v3954
    %v3958 = vmul.f32 %v3957, %v3956
    %v3959 = vmul.f32 0.5, %v3958
    %v3960 = vsub.f32 1.5, %v3959
    %v3961 = vmul.f32 %v3956, %v3960
    %vm3962 = vweird.f32 %v3954
    %vm3963 = vweird.f32 %v3956
    %vm3964 = vmor %vm3962, %vm3963
    %v3965 = vsel %vm3964, %v3956, %v3961
    %v3966 = vrsqrt.pop %v3955
    %v3967 = vmul.f32 %v3966, %v3955
    %v3968 = vmul.f32 %v3967, %v3966
    %v3969 = vmul.f32 0.5, %v3968
    %v3970 = vsub.f32 1.5, %v3969
    %v3971 = vmul.f32 %v3966, %v3970
    %vm3972 = vweird.f32 %v3955
    %vm3973 = vweird.f32 %v3966
    %vm3974 = vmor %vm3972, %vm3973
    %v3975 = vsel %vm3974, %v3966, %v3971
    %v3976 = vmul.f32 %v3936, %v3965
    %v3977 = vmul.f32 %v3937, %v3975
    %v3978 = vmul.f32 %v3976, %v3535
    %v3979 = vmul.f32 %v3977, %v3536
    %v3980 = vadd.f32 %v3978, %v3542
    %v3981 = vadd.f32 %v3979, %v3543
    %v3982 = vmax.f32 %v3980, 0.0
    %v3983 = vmax.f32 %v3981, 0.0
    %v3984 = vld [vmem:[#allocation22] sm:$0xf]
    %v3985 = vld [vmem:[#allocation22 + $0x4] sm:$0xf]
    %v3986 = vld [vmem:[#allocation22 + $0x8] sm:$0xf]
    %v3987 = vld [vmem:[#allocation22 + $0xc] sm:$0xf]
    %v3988 = vld [vmem:[#allocation22 + $0x10] sm:$0xf]
    %v3989 = vld [vmem:[#allocation22 + $0x14] sm:$0xf]
    %v3990 = vld [vmem:[#allocation22 + $0x18] sm:$0xf]
    %v3991 = vld [vmem:[#allocation22 + $0x1c] sm:$0xf]
    %v3992 = vld [vmem:[#allocation22 + $0x20] sm:$0xf]
    %v3993 = vld [vmem:[#allocation22 + $0x24] sm:$0xf]
    %v3994 = vld [vmem:[#allocation22 + $0x28] sm:$0xf]
    %v3995 = vld [vmem:[#allocation22 + $0x2c] sm:$0xf]
    %v3996 = vld [vmem:[#allocation22 + $0x30] sm:$0xf]
    %v3997 = vld [vmem:[#allocation22 + $0x34] sm:$0xf]
    %v3998 = vld [vmem:[#allocation22 + $0x38] sm:$0xf]
    %v3999 = vld [vmem:[#allocation22 + $0x3c] sm:$0xf]
    %v4000 = vld [vmem:[#allocation22 + $0x40] sm:$0xf]
    %v4001 = vld [vmem:[#allocation22 + $0x44] sm:$0xf]
    %v4002 = vld [vmem:[#allocation22 + $0x48] sm:$0xf]
    %v4003 = vld [vmem:[#allocation22 + $0x4c] sm:$0xf]
    %v4004 = vld [vmem:[#allocation22 + $0x50] sm:$0xf]
    %v4005 = vld [vmem:[#allocation22 + $0x54] sm:$0xf]
    %v4006 = vld [vmem:[#allocation22 + $0x58] sm:$0xf]
    %v4007 = vld [vmem:[#allocation22 + $0x5c] sm:$0xf]
    %v4008 = vld [vmem:[#allocation22 + $0x60] sm:$0xf]
    %v4009 = vld [vmem:[#allocation22 + $0x64] sm:$0xf]
    %v4010 = vld [vmem:[#allocation22 + $0x68] sm:$0xf]
    %v4011 = vld [vmem:[#allocation22 + $0x6c] sm:$0xf]
    %v4012 = vld [vmem:[#allocation22 + $0x70] sm:$0xf]
    %v4013 = vld [vmem:[#allocation22 + $0x74] sm:$0xf]
    %v4014 = vld [vmem:[#allocation22 + $0x78] sm:$0xf]
    %v4015 = vld [vmem:[#allocation22 + $0x7c] sm:$0xf]
    %v4016 = vld [vmem:[#allocation23] sm:$0x1]
    %v4017 = vpack.c.bf16 %v3610, %v3548
    %v4018 = vpack.c.bf16 %v3611, %v3549
    %v4019 = vpack.c.bf16 %v3734, %v3672
    %v4020 = vpack.c.bf16 %v3735, %v3673
    %v4021 = vpack.c.bf16 %v3858, %v3796
    %v4022 = vpack.c.bf16 %v3859, %v3797
    %v4023 = vpack.c.bf16 %v3982, %v3920
    %v4024 = vpack.c.bf16 %v3983, %v3921
    %v4026 = vperm.slane %v4016, 0
    %v4060 = vunpack.c.l.b16 %v3984
    %v4061 = vunpack.c.l.b16 %v3985
    %v4062 = vunpack.c.l.b16 %v3986
    %v4063 = vunpack.c.l.b16 %v3987
    %v4064 = vunpack.c.l.b16 %v3988
    %v4065 = vunpack.c.l.b16 %v3989
    %v4066 = vunpack.c.l.b16 %v3990
    %v4067 = vunpack.c.l.b16 %v3991
    %v4068 = vunpack.c.l.b16 %v3992
    %v4069 = vunpack.c.l.b16 %v3993
    %v4070 = vunpack.c.l.b16 %v3994
    %v4071 = vunpack.c.l.b16 %v3995
    %v4072 = vunpack.c.l.b16 %v3996
    %v4073 = vunpack.c.l.b16 %v3997
    %v4074 = vunpack.c.l.b16 %v3998
    %v4075 = vunpack.c.l.b16 %v3999
    %v4076 = vunpack.c.l.b16 %v4000
    %v4077 = vunpack.c.l.b16 %v4001
    %v4078 = vunpack.c.l.b16 %v4002
    %v4079 = vunpack.c.l.b16 %v4003
    %v4080 = vunpack.c.l.b16 %v4004
    %v4081 = vunpack.c.l.b16 %v4005
    %v4082 = vunpack.c.l.b16 %v4006
    %v4083 = vunpack.c.l.b16 %v4007
    %v4084 = vunpack.c.l.b16 %v4008
    %v4085 = vunpack.c.l.b16 %v4009
    %v4086 = vunpack.c.l.b16 %v4010
    %v4087 = vunpack.c.l.b16 %v4011
    %v4088 = vunpack.c.l.b16 %v4012
    %v4089 = vunpack.c.l.b16 %v4013
    %v4090 = vunpack.c.l.b16 %v4014
    %v4091 = vunpack.c.l.b16 %v4015
    %v4092 = vpack.c.b16 %v4061, %v4060
    %v4093 = vpack.c.b16 %v4063, %v4062
    %v4094 = vpack.c.b16 %v4065, %v4064
    %v4095 = vpack.c.b16 %v4067, %v4066
    %v4096 = vpack.c.b16 %v4069, %v4068
    %v4097 = vpack.c.b16 %v4071, %v4070
    %v4098 = vpack.c.b16 %v4073, %v4072
    %v4099 = vpack.c.b16 %v4075, %v4074
    %v4100 = vpack.c.b16 %v4077, %v4076
    %v4101 = vpack.c.b16 %v4079, %v4078
    %v4102 = vpack.c.b16 %v4081, %v4080
    %v4103 = vpack.c.b16 %v4083, %v4082
    %v4104 = vpack.c.b16 %v4085, %v4084
    %v4105 = vpack.c.b16 %v4087, %v4086
    %v4106 = vpack.c.b16 %v4089, %v4088
    %v4107 = vpack.c.b16 %v4091, %v4090
    %4124 = vmatpush.bf16.msra.mxu0 %v4099
    %4125 = vmatpush.bf16.msra.mxu0 %v4098
    %4126 = vmatpush.bf16.msra.mxu0 %v4097
    %4127 = vmatpush.bf16.msra.mxu0 %v4096
    %4128 = vmatpush.bf16.msra.mxu0 %v4095
    %4129 = vmatpush.bf16.msra.mxu0 %v4094
    %4130 = vmatpush.bf16.msra.mxu0 %v4093
    %4131 = vmatpush.bf16.msra.mxu0 %v4092
    %4132 = vmatmul.bf16.gmra.mxu0 %v4017
    %v4133 = vpop.f32.mrf.mxu0
    %v4134 = vadd.f32 %v4026, %v4133
    %v4135 = vpop.f32.mrf.mxu0
    %v4136 = vadd.f32 %v4026, %v4135
    %4137 = vmatmul.bf16.gmra.mxu0 %v4019
    %v4138 = vpop.f32.mrf.mxu0
    %v4139 = vadd.f32 %v4026, %v4138
    %v4140 = vpop.f32.mrf.mxu0
    %v4141 = vadd.f32 %v4026, %v4140
    %4142 = vmatmul.bf16.gmra.mxu0 %v4021
    %v4143 = vpop.f32.mrf.mxu0
    %v4144 = vadd.f32 %v4026, %v4143
    %v4145 = vpop.f32.mrf.mxu0
    %v4146 = vadd.f32 %v4026, %v4145
    %4147 = vmatmul.bf16.gmra.mxu0 %v4023
    %v4148 = vpop.f32.mrf.mxu0
    %v4149 = vadd.f32 %v4026, %v4148
    %v4150 = vpop.f32.mrf.mxu0
    %v4151 = vadd.f32 %v4026, %v4150
    %4152 = vdwg.mxu0
    %4153 = vmatpush.bf16.msra.mxu0 %v4107
    %4154 = vmatpush.bf16.msra.mxu0 %v4106
    %4155 = vmatpush.bf16.msra.mxu0 %v4105
    %4156 = vmatpush.bf16.msra.mxu0 %v4104
    %4157 = vmatpush.bf16.msra.mxu0 %v4103
    %4158 = vmatpush.bf16.msra.mxu0 %v4102
    %4159 = vmatpush.bf16.msra.mxu0 %v4101
    %4160 = vmatpush.bf16.msra.mxu0 %v4100
    %4161 = vmatmul.bf16.gmra.mxu0 %v4018
    %v4162 = vpop.f32.mrf.mxu0
    %v4163 = vadd.f32 %v4134, %v4162
    %v4164 = vpop.f32.mrf.mxu0
    %v4165 = vadd.f32 %v4136, %v4164
    %4166 = vmatmul.bf16.gmra.mxu0 %v4020
    %v4167 = vpop.f32.mrf.mxu0
    %v4168 = vadd.f32 %v4139, %v4167
    %v4169 = vpop.f32.mrf.mxu0
    %v4170 = vadd.f32 %v4141, %v4169
    %4171 = vmatmul.bf16.gmra.mxu0 %v4022
    %v4172 = vpop.f32.mrf.mxu0
    %v4173 = vadd.f32 %v4144, %v4172
    %v4174 = vpop.f32.mrf.mxu0
    %v4175 = vadd.f32 %v4146, %v4174
    %4176 = vmatmul.bf16.gmra.mxu0 %v4024
    %v4177 = vpop.f32.mrf.mxu0
    %v4178 = vadd.f32 %v4149, %v4177
    %v4179 = vpop.f32.mrf.mxu0
    %v4180 = vadd.f32 %v4151, %v4179
    %4181 = vdwg.mxu0
    %v4182 = vmul.f32 %v4163, %v4163
    %v4183 = vmul.f32 %v4165, %v4165
    %v4184 = vmul.f32 %v4168, %v4168
    %v4185 = vmul.f32 %v4170, %v4170
    %v4186 = vmul.f32 %v4173, %v4173
    %v4187 = vmul.f32 %v4175, %v4175
    %v4188 = vmul.f32 %v4178, %v4178
    %v4189 = vmul.f32 %v4180, %v4180
    %4190 = vadd.xlane.f32.xlu0 %v4182
    %v4191 = vpop.xlane.xlu0 %4190
    %4192 = vadd.xlane.f32.xlu0 %v4183
    %v4193 = vpop.xlane.xlu0 %4192
    %4194 = vadd.xlane.f32.xlu0 %v4184
    %v4195 = vpop.xlane.xlu0 %4194
    %4196 = vadd.xlane.f32.xlu0 %v4185
    %v4197 = vpop.xlane.xlu0 %4196
    %4198 = vadd.xlane.f32.xlu0 %v4186
    %v4199 = vpop.xlane.xlu0 %4198
    %4200 = vadd.xlane.f32.xlu0 %v4187
    %v4201 = vpop.xlane.xlu0 %4200
    %4202 = vadd.xlane.f32.xlu0 %v4188
    %v4203 = vpop.xlane.xlu0 %4202
    %4204 = vadd.xlane.f32.xlu0 %v4189
    %v4205 = vpop.xlane.xlu0 %4204
    %v4206 = vmax.f32 %v4191, 1e-24
    %v4207 = vmax.f32 %v4193, 1e-24
    %v4208 = vmax.f32 %v4195, 1e-24
    %v4209 = vmax.f32 %v4197, 1e-24
    %v4210 = vmax.f32 %v4199, 1e-24
    %v4211 = vmax.f32 %v4201, 1e-24
    %v4212 = vmax.f32 %v4203, 1e-24
    %v4213 = vmax.f32 %v4205, 1e-24
    %v4214 = vrsqrt.pop %v4206
    %v4215 = vmul.f32 %v4214, %v4206
    %v4216 = vmul.f32 %v4215, %v4214
    %v4217 = vmul.f32 0.5, %v4216
    %v4218 = vsub.f32 1.5, %v4217
    %v4219 = vmul.f32 %v4214, %v4218
    %vm4220 = vweird.f32 %v4206
    %vm4221 = vweird.f32 %v4214
    %vm4222 = vmor %vm4220, %vm4221
    %v4223 = vsel %vm4222, %v4214, %v4219
    %v4224 = vrsqrt.pop %v4207
    %v4225 = vmul.f32 %v4224, %v4207
    %v4226 = vmul.f32 %v4225, %v4224
    %v4227 = vmul.f32 0.5, %v4226
    %v4228 = vsub.f32 1.5, %v4227
    %v4229 = vmul.f32 %v4224, %v4228
    %vm4230 = vweird.f32 %v4207
    %vm4231 = vweird.f32 %v4224
    %vm4232 = vmor %vm4230, %vm4231
    %v4233 = vsel %vm4232, %v4224, %v4229
    %v4234 = vrsqrt.pop %v4208
    %v4235 = vmul.f32 %v4234, %v4208
    %v4236 = vmul.f32 %v4235, %v4234
    %v4237 = vmul.f32 0.5, %v4236
    %v4238 = vsub.f32 1.5, %v4237
    %v4239 = vmul.f32 %v4234, %v4238
    %vm4240 = vweird.f32 %v4208
    %vm4241 = vweird.f32 %v4234
    %vm4242 = vmor %vm4240, %vm4241
    %v4243 = vsel %vm4242, %v4234, %v4239
    %v4244 = vrsqrt.pop %v4209
    %v4245 = vmul.f32 %v4244, %v4209
    %v4246 = vmul.f32 %v4245, %v4244
    %v4247 = vmul.f32 0.5, %v4246
    %v4248 = vsub.f32 1.5, %v4247
    %v4249 = vmul.f32 %v4244, %v4248
    %vm4250 = vweird.f32 %v4209
    %vm4251 = vweird.f32 %v4244
    %vm4252 = vmor %vm4250, %vm4251
    %v4253 = vsel %vm4252, %v4244, %v4249
    %v4254 = vrsqrt.pop %v4210
    %v4255 = vmul.f32 %v4254, %v4210
    %v4256 = vmul.f32 %v4255, %v4254
    %v4257 = vmul.f32 0.5, %v4256
    %v4258 = vsub.f32 1.5, %v4257
    %v4259 = vmul.f32 %v4254, %v4258
    %vm4260 = vweird.f32 %v4210
    %vm4261 = vweird.f32 %v4254
    %vm4262 = vmor %vm4260, %vm4261
    %v4263 = vsel %vm4262, %v4254, %v4259
    %v4264 = vrsqrt.pop %v4211
    %v4265 = vmul.f32 %v4264, %v4211
    %v4266 = vmul.f32 %v4265, %v4264
    %v4267 = vmul.f32 0.5, %v4266
    %v4268 = vsub.f32 1.5, %v4267
    %v4269 = vmul.f32 %v4264, %v4268
    %vm4270 = vweird.f32 %v4211
    %vm4271 = vweird.f32 %v4264
    %vm4272 = vmor %vm4270, %vm4271
    %v4273 = vsel %vm4272, %v4264, %v4269
    %v4274 = vrsqrt.pop %v4212
    %v4275 = vmul.f32 %v4274, %v4212
    %v4276 = vmul.f32 %v4275, %v4274
    %v4277 = vmul.f32 0.5, %v4276
    %v4278 = vsub.f32 1.5, %v4277
    %v4279 = vmul.f32 %v4274, %v4278
    %vm4280 = vweird.f32 %v4212
    %vm4281 = vweird.f32 %v4274
    %vm4282 = vmor %vm4280, %vm4281
    %v4283 = vsel %vm4282, %v4274, %v4279
    %v4284 = vrsqrt.pop %v4213
    %v4285 = vmul.f32 %v4284, %v4213
    %v4286 = vmul.f32 %v4285, %v4284
    %v4287 = vmul.f32 0.5, %v4286
    %v4288 = vsub.f32 1.5, %v4287
    %v4289 = vmul.f32 %v4284, %v4288
    %vm4290 = vweird.f32 %v4213
    %vm4291 = vweird.f32 %v4284
    %vm4292 = vmor %vm4290, %vm4291
    %v4293 = vsel %vm4292, %v4284, %v4289
    %v4294 = vmul.f32 %v4163, %v4223
    %v4295 = vmul.f32 %v4165, %v4233
    %v4296 = vmul.f32 %v4168, %v4243
    %v4297 = vmul.f32 %v4170, %v4253
    %v4298 = vmul.f32 %v4173, %v4263
    %v4299 = vmul.f32 %v4175, %v4273
    %v4300 = vmul.f32 %v4178, %v4283
    %v4301 = vmul.f32 %v4180, %v4293
    %v4302 = vld [vmem:[#allocation25] sm:$0xff]
    %v4303 = vld [vmem:[#allocation25 + $0x8] sm:$0xff]
    %v4304 = vld [vmem:[#allocation25 + $0x10] sm:$0xff]
    %v4305 = vld [vmem:[#allocation25 + $0x18] sm:$0xff]
    %v4306 = vld [vmem:[#allocation25 + $0x20] sm:$0xff]
    %v4307 = vld [vmem:[#allocation25 + $0x28] sm:$0xff]
    %v4308 = vld [vmem:[#allocation25 + $0x30] sm:$0xff]
    %v4309 = vld [vmem:[#allocation25 + $0x38] sm:$0xff]
    %v4310 = vld [vmem:[#allocation25 + $0x40] sm:$0xff]
    %v4311 = vld [vmem:[#allocation25 + $0x48] sm:$0xff]
    %v4312 = vld [vmem:[#allocation25 + $0x50] sm:$0xff]
    %v4313 = vld [vmem:[#allocation25 + $0x58] sm:$0xff]
    %v4314 = vld [vmem:[#allocation25 + $0x60] sm:$0xff]
    %v4315 = vld [vmem:[#allocation25 + $0x68] sm:$0xff]
    %v4316 = vld [vmem:[#allocation25 + $0x70] sm:$0xff]
    %v4317 = vld [vmem:[#allocation25 + $0x78] sm:$0xff]
    %v4318 = vpack.c.bf16 %v4295, %v4294
    %v4319 = vpack.c.bf16 %v4297, %v4296
    %v4320 = vpack.c.bf16 %v4299, %v4298
    %v4321 = vpack.c.bf16 %v4301, %v4300
    %v4338 = vunpack.c.l.b16 %v4302
    %v4339 = vunpack.c.h.b16 %v4302
    %v4340 = vunpack.c.l.b16 %v4303
    %v4341 = vunpack.c.h.b16 %v4303
    %v4342 = vunpack.c.l.b16 %v4304
    %v4343 = vunpack.c.h.b16 %v4304
    %v4344 = vunpack.c.l.b16 %v4305
    %v4345 = vunpack.c.h.b16 %v4305
    %v4346 = vunpack.c.l.b16 %v4306
    %v4347 = vunpack.c.h.b16 %v4306
    %v4348 = vunpack.c.l.b16 %v4307
    %v4349 = vunpack.c.h.b16 %v4307
    %v4350 = vunpack.c.l.b16 %v4308
    %v4351 = vunpack.c.h.b16 %v4308
    %v4352 = vunpack.c.l.b16 %v4309
    %v4353 = vunpack.c.h.b16 %v4309
    %v4354 = vunpack.c.l.b16 %v4310
    %v4355 = vunpack.c.h.b16 %v4310
    %v4356 = vunpack.c.l.b16 %v4311
    %v4357 = vunpack.c.h.b16 %v4311
    %v4358 = vunpack.c.l.b16 %v4312
    %v4359 = vunpack.c.h.b16 %v4312
    %v4360 = vunpack.c.l.b16 %v4313
    %v4361 = vunpack.c.h.b16 %v4313
    %v4362 = vunpack.c.l.b16 %v4314
    %v4363 = vunpack.c.h.b16 %v4314
    %v4364 = vunpack.c.l.b16 %v4315
    %v4365 = vunpack.c.h.b16 %v4315
    %v4366 = vunpack.c.l.b16 %v4316
    %v4367 = vunpack.c.h.b16 %v4316
    %v4368 = vunpack.c.l.b16 %v4317
    %v4369 = vunpack.c.h.b16 %v4317
    %v4370 = vpack.c.b16 %v4340, %v4338
    %v4371 = vpack.c.b16 %v4341, %v4339
    %v4372 = vpack.c.b16 %v4344, %v4342
    %v4373 = vpack.c.b16 %v4345, %v4343
    %v4374 = vpack.c.b16 %v4348, %v4346
    %v4375 = vpack.c.b16 %v4349, %v4347
    %v4376 = vpack.c.b16 %v4352, %v4350
    %v4377 = vpack.c.b16 %v4353, %v4351
    %v4378 = vpack.c.b16 %v4356, %v4354
    %v4379 = vpack.c.b16 %v4357, %v4355
    %v4380 = vpack.c.b16 %v4360, %v4358
    %v4381 = vpack.c.b16 %v4361, %v4359
    %v4382 = vpack.c.b16 %v4364, %v4362
    %v4383 = vpack.c.b16 %v4365, %v4363
    %v4384 = vpack.c.b16 %v4368, %v4366
    %v4385 = vpack.c.b16 %v4369, %v4367
    %4402 = vmatpush.bf16.msra.mxu0 %v4384
    %4403 = vmatpush.bf16.msra.mxu0 %v4382
    %4404 = vmatpush.bf16.msra.mxu0 %v4380
    %4405 = vmatpush.bf16.msra.mxu0 %v4378
    %4406 = vmatpush.bf16.msra.mxu0 %v4376
    %4407 = vmatpush.bf16.msra.mxu0 %v4374
    %4408 = vmatpush.bf16.msra.mxu0 %v4372
    %4409 = vmatpush.bf16.msra.mxu0 %v4370
    %4410 = vmatmul.bf16.gmra.mxu0 %v4318
    %v4411 = vpop.f32.mrf.mxu0
    %v4412 = vadd.f32 0.0, %v4411
    %v4413 = vpop.f32.mrf.mxu0
    %v4414 = vadd.f32 0.0, %v4413
    %4415 = vmatmul.bf16.gmra.mxu0 %v4319
    %v4416 = vpop.f32.mrf.mxu0
    %v4417 = vadd.f32 0.0, %v4416
    %v4418 = vpop.f32.mrf.mxu0
    %v4419 = vadd.f32 0.0, %v4418
    %4420 = vmatmul.bf16.gmra.mxu0 %v4320
    %v4421 = vpop.f32.mrf.mxu0
    %v4422 = vadd.f32 0.0, %v4421
    %v4423 = vpop.f32.mrf.mxu0
    %v4424 = vadd.f32 0.0, %v4423
    %4425 = vmatmul.bf16.gmra.mxu0 %v4321
    %v4426 = vpop.f32.mrf.mxu0
    %v4427 = vadd.f32 0.0, %v4426
    %v4428 = vpop.f32.mrf.mxu0
    %v4429 = vadd.f32 0.0, %v4428
    %4430 = vdwg.mxu0
    %4431 = vmatpush.bf16.msra.mxu0 %v4385
    %4432 = vmatpush.bf16.msra.mxu0 %v4383
    %4433 = vmatpush.bf16.msra.mxu0 %v4381
    %4434 = vmatpush.bf16.msra.mxu0 %v4379
    %4435 = vmatpush.bf16.msra.mxu0 %v4377
    %4436 = vmatpush.bf16.msra.mxu0 %v4375
    %4437 = vmatpush.bf16.msra.mxu0 %v4373
    %4438 = vmatpush.bf16.msra.mxu0 %v4371
    %4439 = vmatmul.bf16.gmra.mxu0 %v4318
    %v4440 = vpop.f32.mrf.mxu0
    %v4441 = vadd.f32 0.0, %v4440
    %v4442 = vpop.f32.mrf.mxu0
    %v4443 = vadd.f32 0.0, %v4442
    %4444 = vmatmul.bf16.gmra.mxu0 %v4319
    %v4445 = vpop.f32.mrf.mxu0
    %v4446 = vadd.f32 0.0, %v4445
    %v4447 = vpop.f32.mrf.mxu0
    %v4448 = vadd.f32 0.0, %v4447
    %4449 = vmatmul.bf16.gmra.mxu0 %v4320
    %v4450 = vpop.f32.mrf.mxu0
    %v4451 = vadd.f32 0.0, %v4450
    %v4452 = vpop.f32.mrf.mxu0
    %v4453 = vadd.f32 0.0, %v4452
    %4454 = vmatmul.bf16.gmra.mxu0 %v4321
    %v4455 = vpop.f32.mrf.mxu0
    %v4456 = vadd.f32 0.0, %v4455
    %v4457 = vpop.f32.mrf.mxu0
    %v4458 = vadd.f32 0.0, %v4457
    %4459 = vdwg.mxu0
    %v4460 = vunpack.c.l.bf16 %v287
    %v4461 = vunpack.c.h.bf16 %v287
    %v4462 = vunpack.c.l.bf16 %v288
    %v4463 = vunpack.c.h.bf16 %v288
    %v4464 = vunpack.c.l.bf16 %v289
    %v4465 = vunpack.c.h.bf16 %v289
    %v4466 = vunpack.c.l.bf16 %v290
    %v4467 = vunpack.c.h.bf16 %v290
    %v4468 = vunpack.c.l.bf16 %v291
    %v4469 = vunpack.c.h.bf16 %v291
    %v4470 = vunpack.c.l.bf16 %v292
    %v4471 = vunpack.c.h.bf16 %v292
    %v4472 = vunpack.c.l.bf16 %v293
    %v4473 = vunpack.c.h.bf16 %v293
    %v4474 = vunpack.c.l.bf16 %v294
    %v4475 = vunpack.c.h.bf16 %v294
    %v4476 = vunpack.c.l.bf16 %v295
    %v4477 = vunpack.c.h.bf16 %v295
    %v4478 = vunpack.c.l.bf16 %v296
    %v4479 = vunpack.c.h.bf16 %v296
    %v4480 = vunpack.c.l.bf16 %v297
    %v4481 = vunpack.c.h.bf16 %v297
    %v4482 = vunpack.c.l.bf16 %v298
    %v4483 = vunpack.c.h.bf16 %v298
    %v4484 = vunpack.c.l.bf16 %v299
    %v4485 = vunpack.c.h.bf16 %v299
    %v4486 = vunpack.c.l.bf16 %v300
    %v4487 = vunpack.c.h.bf16 %v300
    %v4488 = vunpack.c.l.bf16 %v301
    %v4489 = vunpack.c.h.bf16 %v301
    %v4490 = vunpack.c.l.bf16 %v302
    %v4491 = vunpack.c.h.bf16 %v302
    %v4492 = vsub.f32 %v2689, %v4460
    %v4493 = vsub.f32 %v2690, %v4461
    %v4494 = vsub.f32 %v2691, %v4462
    %v4495 = vsub.f32 %v2692, %v4463
    %v4496 = vsub.f32 %v2693, %v4464
    %v4497 = vsub.f32 %v2694, %v4465
    %v4498 = vsub.f32 %v2695, %v4466
    %v4499 = vsub.f32 %v2696, %v4467
    %v4500 = vsub.f32 %v2697, %v4468
    %v4501 = vsub.f32 %v2698, %v4469
    %v4502 = vsub.f32 %v2699, %v4470
    %v4503 = vsub.f32 %v2700, %v4471
    %v4504 = vsub.f32 %v2701, %v4472
    %v4505 = vsub.f32 %v2702, %v4473
    %v4506 = vsub.f32 %v2703, %v4474
    %v4507 = vsub.f32 %v2704, %v4475
    %v4508 = vsub.f32 %v2705, %v4476
    %v4509 = vsub.f32 %v2706, %v4477
    %v4510 = vsub.f32 %v2707, %v4478
    %v4511 = vsub.f32 %v2708, %v4479
    %v4512 = vsub.f32 %v2709, %v4480
    %v4513 = vsub.f32 %v2710, %v4481
    %v4514 = vsub.f32 %v2711, %v4482
    %v4515 = vsub.f32 %v2712, %v4483
    %v4516 = vsub.f32 %v2713, %v4484
    %v4517 = vsub.f32 %v2714, %v4485
    %v4518 = vsub.f32 %v2715, %v4486
    %v4519 = vsub.f32 %v2716, %v4487
    %v4520 = vsub.f32 %v2717, %v4488
    %v4521 = vsub.f32 %v2718, %v4489
    %v4522 = vsub.f32 %v2719, %v4490
    %v4523 = vsub.f32 %v2720, %v4491
    %v4524 = vmul.f32 %v4492, %v4492
    %v4525 = vmul.f32 %v4493, %v4493
    %v4526 = vmul.f32 %v4494, %v4494
    %v4527 = vmul.f32 %v4495, %v4495
    %v4528 = vmul.f32 %v4496, %v4496
    %v4529 = vmul.f32 %v4497, %v4497
    %v4530 = vmul.f32 %v4498, %v4498
    %v4531 = vmul.f32 %v4499, %v4499
    %v4532 = vmul.f32 %v4500, %v4500
    %v4533 = vmul.f32 %v4501, %v4501
    %v4534 = vmul.f32 %v4502, %v4502
    %v4535 = vmul.f32 %v4503, %v4503
    %v4536 = vmul.f32 %v4504, %v4504
    %v4537 = vmul.f32 %v4505, %v4505
    %v4538 = vmul.f32 %v4506, %v4506
    %v4539 = vmul.f32 %v4507, %v4507
    %v4540 = vmul.f32 %v4508, %v4508
    %v4541 = vmul.f32 %v4509, %v4509
    %v4542 = vmul.f32 %v4510, %v4510
    %v4543 = vmul.f32 %v4511, %v4511
    %v4544 = vmul.f32 %v4512, %v4512
    %v4545 = vmul.f32 %v4513, %v4513
    %v4546 = vmul.f32 %v4514, %v4514
    %v4547 = vmul.f32 %v4515, %v4515
    %v4548 = vmul.f32 %v4516, %v4516
    %v4549 = vmul.f32 %v4517, %v4517
    %v4550 = vmul.f32 %v4518, %v4518
    %v4551 = vmul.f32 %v4519, %v4519
    %v4552 = vmul.f32 %v4520, %v4520
    %v4553 = vmul.f32 %v4521, %v4521
    %v4554 = vmul.f32 %v4522, %v4522
    %v4555 = vmul.f32 %v4523, %v4523
    %v4556 = vadd.f32 %v4524, %v4525
    %v4557 = vadd.f32 %v4556, %v4526
    %v4558 = vadd.f32 %v4557, %v4527
    %v4559 = vadd.f32 %v4558, %v4528
    %v4560 = vadd.f32 %v4559, %v4529
    %v4561 = vadd.f32 %v4560, %v4530
    %v4562 = vadd.f32 %v4561, %v4531
    %4563 = vadd.xlane.f32.xlu0 %v4562
    %v4564 = vpop.xlane.xlu0 %4563
    %v4565 = vadd.f32 %v4532, %v4533
    %v4566 = vadd.f32 %v4565, %v4534
    %v4567 = vadd.f32 %v4566, %v4535
    %v4568 = vadd.f32 %v4567, %v4536
    %v4569 = vadd.f32 %v4568, %v4537
    %v4570 = vadd.f32 %v4569, %v4538
    %v4571 = vadd.f32 %v4570, %v4539
    %4572 = vadd.xlane.f32.xlu0 %v4571
    %v4573 = vpop.xlane.xlu0 %4572
    %v4574 = vadd.f32 %v4540, %v4541
    %v4575 = vadd.f32 %v4574, %v4542
    %v4576 = vadd.f32 %v4575, %v4543
    %v4577 = vadd.f32 %v4576, %v4544
    %v4578 = vadd.f32 %v4577, %v4545
    %v4579 = vadd.f32 %v4578, %v4546
    %v4580 = vadd.f32 %v4579, %v4547
    %4581 = vadd.xlane.f32.xlu0 %v4580
    %v4582 = vpop.xlane.xlu0 %4581
    %v4583 = vadd.f32 %v4548, %v4549
    %v4584 = vadd.f32 %v4583, %v4550
    %v4585 = vadd.f32 %v4584, %v4551
    %v4586 = vadd.f32 %v4585, %v4552
    %v4587 = vadd.f32 %v4586, %v4553
    %v4588 = vadd.f32 %v4587, %v4554
    %v4589 = vadd.f32 %v4588, %v4555
    %4590 = vadd.xlane.f32.xlu0 %v4589
    %v4591 = vpop.xlane.xlu0 %4590
    %v4592 = vrcp.pop 1024.0
    %v4593 = vmul.f32 1024.0, %v4592
    %v4594 = vsub.f32 1.0, %v4593
    %v4595 = vmul.f32 %v4592, %v4594
    %v4596 = vadd.f32 %v4592, %v4595
    %vm4597 = vweird.f32 %v4592
    %v4598 = vsel %vm4597, %v4592, %v4596
    %v4599 = vmul.f32 %v4564, %v4598
    %v4600 = vmul.f32 %v4573, %v4598
    %v4601 = vmul.f32 %v4582, %v4598
    %v4602 = vmul.f32 %v4591, %v4598
    %v4603 = vunpack.c.l.bf16 %v303
    %v4604 = vunpack.c.h.bf16 %v303
    %v4605 = vunpack.c.l.bf16 %v304
    %v4606 = vunpack.c.h.bf16 %v304
    %v4607 = vunpack.c.l.bf16 %v305
    %v4608 = vunpack.c.h.bf16 %v305
    %v4609 = vunpack.c.l.bf16 %v306
    %v4610 = vunpack.c.h.bf16 %v306
    %v4611 = vunpack.c.l.bf16 %v307
    %v4612 = vunpack.c.h.bf16 %v307
    %v4613 = vunpack.c.l.bf16 %v308
    %v4614 = vunpack.c.h.bf16 %v308
    %v4615 = vunpack.c.l.bf16 %v309
    %v4616 = vunpack.c.h.bf16 %v309
    %v4617 = vunpack.c.l.bf16 %v310
    %v4618 = vunpack.c.h.bf16 %v310
    %v4619 = vunpack.c.l.bf16 %v311
    %v4620 = vunpack.c.h.bf16 %v311
    %v4621 = vunpack.c.l.bf16 %v312
    %v4622 = vunpack.c.h.bf16 %v312
    %v4623 = vunpack.c.l.bf16 %v313
    %v4624 = vunpack.c.h.bf16 %v313
    %v4625 = vunpack.c.l.bf16 %v314
    %v4626 = vunpack.c.h.bf16 %v314
    %v4627 = vunpack.c.l.bf16 %v315
    %v4628 = vunpack.c.h.bf16 %v315
    %v4629 = vunpack.c.l.bf16 %v316
    %v4630 = vunpack.c.h.bf16 %v316
    %v4631 = vunpack.c.l.bf16 %v317
    %v4632 = vunpack.c.h.bf16 %v317
    %v4633 = vunpack.c.l.bf16 %v318
    %v4634 = vunpack.c.h.bf16 %v318
    %v4635 = vsub.f32 %v3277, %v4603
    %v4636 = vsub.f32 %v3278, %v4604
    %v4637 = vsub.f32 %v3279, %v4605
    %v4638 = vsub.f32 %v3280, %v4606
    %v4639 = vsub.f32 %v3281, %v4607
    %v4640 = vsub.f32 %v3282, %v4608
    %v4641 = vsub.f32 %v3283, %v4609
    %v4642 = vsub.f32 %v3284, %v4610
    %v4643 = vsub.f32 %v3285, %v4611
    %v4644 = vsub.f32 %v3286, %v4612
    %v4645 = vsub.f32 %v3287, %v4613
    %v4646 = vsub.f32 %v3288, %v4614
    %v4647 = vsub.f32 %v3289, %v4615
    %v4648 = vsub.f32 %v3290, %v4616
    %v4649 = vsub.f32 %v3291, %v4617
    %v4650 = vsub.f32 %v3292, %v4618
    %v4651 = vsub.f32 %v3293, %v4619
    %v4652 = vsub.f32 %v3294, %v4620
    %v4653 = vsub.f32 %v3295, %v4621
    %v4654 = vsub.f32 %v3296, %v4622
    %v4655 = vsub.f32 %v3297, %v4623
    %v4656 = vsub.f32 %v3298, %v4624
    %v4657 = vsub.f32 %v3299, %v4625
    %v4658 = vsub.f32 %v3300, %v4626
    %v4659 = vsub.f32 %v3301, %v4627
    %v4660 = vsub.f32 %v3302, %v4628
    %v4661 = vsub.f32 %v3303, %v4629
    %v4662 = vsub.f32 %v3304, %v4630
    %v4663 = vsub.f32 %v3305, %v4631
    %v4664 = vsub.f32 %v3306, %v4632
    %v4665 = vsub.f32 %v3307, %v4633
    %v4666 = vsub.f32 %v3308, %v4634
    %v4667 = vmul.f32 %v4635, %v4635
    %v4668 = vmul.f32 %v4636, %v4636
    %v4669 = vmul.f32 %v4637, %v4637
    %v4670 = vmul.f32 %v4638, %v4638
    %v4671 = vmul.f32 %v4639, %v4639
    %v4672 = vmul.f32 %v4640, %v4640
    %v4673 = vmul.f32 %v4641, %v4641
    %v4674 = vmul.f32 %v4642, %v4642
    %v4675 = vmul.f32 %v4643, %v4643
    %v4676 = vmul.f32 %v4644, %v4644
    %v4677 = vmul.f32 %v4645, %v4645
    %v4678 = vmul.f32 %v4646, %v4646
    %v4679 = vmul.f32 %v4647, %v4647
    %v4680 = vmul.f32 %v4648, %v4648
    %v4681 = vmul.f32 %v4649, %v4649
    %v4682 = vmul.f32 %v4650, %v4650
    %v4683 = vmul.f32 %v4651, %v4651
    %v4684 = vmul.f32 %v4652, %v4652
    %v4685 = vmul.f32 %v4653, %v4653
    %v4686 = vmul.f32 %v4654, %v4654
    %v4687 = vmul.f32 %v4655, %v4655
    %v4688 = vmul.f32 %v4656, %v4656
    %v4689 = vmul.f32 %v4657, %v4657
    %v4690 = vmul.f32 %v4658, %v4658
    %v4691 = vmul.f32 %v4659, %v4659
    %v4692 = vmul.f32 %v4660, %v4660
    %v4693 = vmul.f32 %v4661, %v4661
    %v4694 = vmul.f32 %v4662, %v4662
    %v4695 = vmul.f32 %v4663, %v4663
    %v4696 = vmul.f32 %v4664, %v4664
    %v4697 = vmul.f32 %v4665, %v4665
    %v4698 = vmul.f32 %v4666, %v4666
    %v4699 = vadd.f32 %v4667, %v4668
    %v4700 = vadd.f32 %v4699, %v4669
    %v4701 = vadd.f32 %v4700, %v4670
    %v4702 = vadd.f32 %v4701, %v4671
    %v4703 = vadd.f32 %v4702, %v4672
    %v4704 = vadd.f32 %v4703, %v4673
    %v4705 = vadd.f32 %v4704, %v4674
    %4706 = vadd.xlane.f32.xlu0 %v4705
    %v4707 = vpop.xlane.xlu0 %4706
    %v4708 = vadd.f32 %v4675, %v4676
    %v4709 = vadd.f32 %v4708, %v4677
    %v4710 = vadd.f32 %v4709, %v4678
    %v4711 = vadd.f32 %v4710, %v4679
    %v4712 = vadd.f32 %v4711, %v4680
    %v4713 = vadd.f32 %v4712, %v4681
    %v4714 = vadd.f32 %v4713, %v4682
    %4715 = vadd.xlane.f32.xlu0 %v4714
    %v4716 = vpop.xlane.xlu0 %4715
    %v4717 = vadd.f32 %v4683, %v4684
    %v4718 = vadd.f32 %v4717, %v4685
    %v4719 = vadd.f32 %v4718, %v4686
    %v4720 = vadd.f32 %v4719, %v4687
    %v4721 = vadd.f32 %v4720, %v4688
    %v4722 = vadd.f32 %v4721, %v4689
    %v4723 = vadd.f32 %v4722, %v4690
    %4724 = vadd.xlane.f32.xlu0 %v4723
    %v4725 = vpop.xlane.xlu0 %4724
    %v4726 = vadd.f32 %v4691, %v4692
    %v4727 = vadd.f32 %v4726, %v4693
    %v4728 = vadd.f32 %v4727, %v4694
    %v4729 = vadd.f32 %v4728, %v4695
    %v4730 = vadd.f32 %v4729, %v4696
    %v4731 = vadd.f32 %v4730, %v4697
    %v4732 = vadd.f32 %v4731, %v4698
    %4733 = vadd.xlane.f32.xlu0 %v4732
    %v4734 = vpop.xlane.xlu0 %4733
    %v4735 = vmul.f32 %v4707, %v4598
    %v4736 = vmul.f32 %v4716, %v4598
    %v4737 = vmul.f32 %v4725, %v4598
    %v4738 = vmul.f32 %v4734, %v4598
    %4739 = vst [vmem:[#allocation26] sm:$0xff] %v1885
    %4740 = vst [vmem:[#allocation26 + $0x8] sm:$0xff] %v1886
    %4741 = vst [vmem:[#allocation26 + $0x10] sm:$0xff] %v1887
    %4742 = vst [vmem:[#allocation26 + $0x18] sm:$0xff] %v1888
    %4743 = vst [vmem:[#allocation27] sm:$0xff] %v1965
    %4744 = vst [vmem:[#allocation27 + $0x8] sm:$0xff] %v1966
    %4745 = vst [vmem:[#allocation27 + $0x10] sm:$0xff] %v1967
    %4746 = vst [vmem:[#allocation27 + $0x18] sm:$0xff] %v1968
    %4747 = vst [vmem:[#allocation29] sm:$0xff] %v4412
    %4748 = vst [vmem:[#allocation29 + $0x8] sm:$0xff] %v4441
    %4749 = vst [vmem:[#allocation29 + $0x10] sm:$0xff] %v4414
    %4750 = vst [vmem:[#allocation29 + $0x18] sm:$0xff] %v4443
    %4751 = vst [vmem:[#allocation29 + $0x20] sm:$0xff] %v4417
    %4752 = vst [vmem:[#allocation29 + $0x28] sm:$0xff] %v4446
    %4753 = vst [vmem:[#allocation29 + $0x30] sm:$0xff] %v4419
    %4754 = vst [vmem:[#allocation29 + $0x38] sm:$0xff] %v4448
    %4755 = vst [vmem:[#allocation30] sm:$0xff] %v4422
    %4756 = vst [vmem:[#allocation30 + $0x8] sm:$0xff] %v4451
    %4757 = vst [vmem:[#allocation30 + $0x10] sm:$0xff] %v4424
    %4758 = vst [vmem:[#allocation30 + $0x18] sm:$0xff] %v4453
    %4759 = vst [vmem:[#allocation30 + $0x20] sm:$0xff] %v4427
    %4760 = vst [vmem:[#allocation30 + $0x28] sm:$0xff] %v4456
    %4761 = vst [vmem:[#allocation30 + $0x30] sm:$0xff] %v4429
    %4762 = vst [vmem:[#allocation30 + $0x38] sm:$0xff] %v4458
    %v4763 = vadd.f32 %v4599, %v4735
    %v4764 = vadd.f32 %v4600, %v4736
    %v4765 = vadd.f32 %v4601, %v4737
    %v4766 = vadd.f32 %v4602, %v4738
    %4767 = vst [vmem:[%s23] sm:$0xff] %v4763
    %4768 = vst [vmem:[%s23 + $0x8] sm:$0xff] %v4764
    %4769 = vst [vmem:[%s23 + $0x10] sm:$0xff] %v4765
    %4770 = vst [vmem:[%s23 + $0x18] sm:$0xff] %v4766
    // Predicated region
    $region138: #{multimodal_transformer.1} parent=1 // pred_check
      _
    $region139: #{multimodal_transformer.1} parent=1 // pred_check_branch
      %4772 = sbr.rel (0) target = $region141
    $region140: #{multimodal_transformer.1} parent=1 // pred_region
      %4774 = vsyncadd [#allocation4], 0
      %s4775 = sshll.u32 [#allocation26], 4
      %s4776 = int_to_ptr.vmem [resolvable:$true] %s4775
      %s4777 = sshll.u32 %s19, 4
      %s4778 = int_to_ptr.hbm [resolvable:$true] %s4777
      %4783 = dma.vmem_to_hbm [thread:$0]  %s4776, 512, %s4778, [#allocation4], 128, 128, 8
    $region141: #{multimodal_transformer.1} parent=1 // pred_fallthru
      _
    // Predicated region
    $region142: #{multimodal_transformer.1} parent=1 // pred_check
      _
    $region143: #{multimodal_transformer.1} parent=1 // pred_check_branch
      %4785 = sbr.rel (0) target = $region145
    $region144: #{multimodal_transformer.1} parent=1 // pred_region
      %4787 = vsyncadd [#allocation28], 0
      %s4788 = sshll.u32 [#allocation27], 4
      %s4789 = int_to_ptr.vmem [resolvable:$true] %s4788
      %s4790 = sshll.u32 %s20, 4
      %s4791 = int_to_ptr.hbm [resolvable:$true] %s4790
      %4796 = dma.vmem_to_hbm [thread:$0]  %s4789, 512, %s4791, [#allocation28], 128, 128, 8
    $region145: #{multimodal_transformer.1} parent=1 // pred_fallthru
      _
    // Predicated region
    $region146: #{multimodal_transformer.1} parent=1 // pred_check
      _
    $region147: #{multimodal_transformer.1} parent=1 // pred_check_branch
      %4798 = sbr.rel (0) target = $region149
    $region148: #{multimodal_transformer.1} parent=1 // pred_region
      %4800 = vsyncadd [#allocation28], 0
      %s4801 = sshll.u32 [#allocation29], 4
      %s4802 = int_to_ptr.vmem [resolvable:$true] %s4801
      %s4803 = sshll.u32 %s21, 4
      %s4804 = int_to_ptr.hbm [resolvable:$true] %s4803
      %4809 = dma.vmem_to_hbm [thread:$0]  %s4802, 1024, %s4804, [#allocation28], 256, 256, 16
    $region149: #{multimodal_transformer.1} parent=1 // pred_fallthru
      _
    // Predicated region
    $region150: #{multimodal_transformer.1} parent=1 // pred_check
      _
    $region151: #{multimodal_transformer.1} parent=1 // pred_check_branch
      %4811 = sbr.rel (0) target = $region153
    $region152: #{multimodal_transformer.1} parent=1 // pred_region
      %4813 = vsyncadd [#allocation31], 0
      %s4814 = sshll.u32 [#allocation30], 4
      %s4815 = int_to_ptr.vmem [resolvable:$true] %s4814
      %s4816 = sshll.u32 %s22, 4
      %s4817 = int_to_ptr.hbm [resolvable:$true] %s4816
      %4822 = dma.vmem_to_hbm [thread:$0]  %s4815, 1024, %s4817, [#allocation31], 256, 256, 16
    $region153: #{multimodal_transformer.1} parent=1 // pred_fallthru
      _
    // Predicated region
    $region154: #{multimodal_transformer.1} parent=1 // pred_check
      _
    $region155: #{multimodal_transformer.1} parent=1 // pred_check_branch
      %4824 = sbr.rel (0) target = $region157
    $region156: #{multimodal_transformer.1} parent=1 // pred_region
      _
    $region157: #{multimodal_transformer.1} parent=1 // pred_fallthru
      _
    // Predicated region
    $region158: #{multimodal_transformer.1} parent=1 // pred_check
      _
    $region159: #{multimodal_transformer.1} parent=1 // pred_check_branch
      %4826 = sbr.rel (0) target = $region161
    $region160: #{multimodal_transformer.1} parent=1 // pred_region
      %4828 = dma.done [#allocation4], 512
    $region161: #{multimodal_transformer.1} parent=1 // pred_fallthru
      _
    // Predicated region
    $region162: #{multimodal_transformer.1} parent=1 // pred_check
      _
    $region163: #{multimodal_transformer.1} parent=1 // pred_check_branch
      %4830 = sbr.rel (0) target = $region165
    $region164: #{multimodal_transformer.1} parent=1 // pred_region
      %4832 = dma.done [#allocation28], 512
    $region165: #{multimodal_transformer.1} parent=1 // pred_fallthru
      _
    // Predicated region
    $region166: #{multimodal_transformer.1} parent=1 // pred_check
      _
    $region167: #{multimodal_transformer.1} parent=1 // pred_check_branch
      %4834 = sbr.rel (0) target = $region169
    $region168: #{multimodal_transformer.1} parent=1 // pred_region
      %4836 = dma.done [#allocation28], 1024
    $region169: #{multimodal_transformer.1} parent=1 // pred_fallthru
      _
    // Predicated region
    $region170: #{multimodal_transformer.1} parent=1 // pred_check
      _
    $region171: #{multimodal_transformer.1} parent=1 // pred_check_branch
      %4838 = sbr.rel (0) target = $region173
    $region172: #{multimodal_transformer.1} parent=1 // pred_region
      %4840 = dma.done [#allocation31], 1024
    $region173: #{multimodal_transformer.1} parent=1 // pred_fallthru
      _
    // Predicated region
    $region174: #{multimodal_transformer.1} parent=1 // pred_check
      _
    $region175: #{multimodal_transformer.1} parent=1 // pred_check_branch
      %4842 = sbr.rel (0) target = $region177
    $region176: #{multimodal_transformer.1} parent=1 // pred_region
      _
    $region177: #{multimodal_transformer.1} parent=1 // pred_fallthru
      _
    %4843 = vsyncpa [#allocation3], 1
    %4844 = vsyncpa [#allocation6], 1
    %4845 = vsyncpa [#allocation9], 1
    %4846 = vsyncpa [#allocation12], 1
    %4847 = vsyncpa [#allocation15], 1
    %4848 = vsyncpa [#allocation18], 1
    %4849 = vsyncpa [#allocation21], 1
    %4850 = vsyncpa [#allocation24], 1
    %4851 = vsyncpa [#allocation4], 1
    %4852 = vsyncpa [#allocation28], 1
    %4853 = vsyncpa [#allocation31], 1

</llo_original>
